<compile_context>
chip_gen: v6e
topology: v6e:2x2x1
jax: 0.10.0
libtpu: 0.0.40
codegen_flags: <defaults>
</compile_context>

<pallas_src>
import functools

import numpy as np

import jax
import jax.numpy as jnp
from jax.experimental import pallas as pl
from jax.experimental.pallas import tpu as pltpu


# ----------------------------------------------------------------------------
# Pallas kernel: full LinearAttention forward for one (Bb, C, N) batch block.
# Channels-first layout: x block (Bb, C, N), output block (Bb, dim, N) so the
# lane (last) dimension is the spatial axis N (lane-dense stores).
# ----------------------------------------------------------------------------
def _linear_attn_kernel(x_ref, wq_ref, wk_ref, wv_ref, wout_ref, mask_ref,
                        bout_ref, gamma_ref, beta_ref, o_ref, *,
                        block_batch, heads, dim_head, dim, scale, eps,
                        compute_dtype):
    hidden = heads * dim_head
    c = dim
    n = x_ref.shape[-1]
    cdt = compute_dtype
    dn_ab = (((1,), (0,)), ((), ()))     # A @ B
    dn_abt = (((1,), (1,)), ((), ()))    # A @ B^T (contract lane dims)

    # Resident weights / constants: same block every grid step -> DMA'd once.
    wq2 = wq_ref[...]          # (2*hidden, 2*C)  block-diag
    wk2 = wk_ref[...]
    wv2 = wv_ref[...]
    wout2 = wout_ref[...]      # (2*dim, 2*hidden) block-diag
    mask2 = mask_ref[...]      # (2*hidden, 2*hidden) block-diag (batch, head)
    bout = bout_ref[...]       # (dim, 1)
    gamma = gamma_ref[...]     # (dim, 1)
    beta = beta_ref[...]       # (dim, 1)

    def attend(xs, wq, wk, wv, wout, mask, nb):
        """xs: (nb*C, N) f32 (nb batches stacked along sublanes).

        Weights are nb-way block-diagonal.  Returns nb arrays of (dim, N) f32.
        """
        xs_c = xs.astype(cdt)

        # --- to_qkv : 1x1 conv (bias=False); three separate matmuls, f32 acc.
        q = jax.lax.dot_general(wq, xs_c, dn_ab,
                                preferred_element_type=jnp.float32)
        k = jax.lax.dot_general(wk, xs_c, dn_ab,
                                preferred_element_type=jnp.float32)
        v = jax.lax.dot_general(wv, xs_c, dn_ab,
                                preferred_element_type=jnp.float32)

        # --- q.softmax(dim=-2): over dim_head per (batch, head, position).
        # TODO(synk): on v6e/v7x the exp's could run in bf16 (~2x EUP) since
        # arguments are max-subtracted (<= 0); kept in f32 here for accuracy.
        q3 = q.reshape(nb * heads, dim_head, n)
        qmax = jnp.max(q3, axis=1, keepdims=True)
        qe = jnp.exp(q3 - qmax)
        qden = jnp.sum(qe, axis=1, keepdims=True)
        # Approx EUP reciprocal; attention scale folded into the same multiply.
        qs = (qe * (pl.reciprocal(qden, approx=True) * scale))
        qs = qs.reshape(nb * hidden, n)

        # --- k.softmax(dim=-1): over the spatial axis; exact normalization
        # (this feeds the MXU contraction over N).
        kmax = jnp.max(k, axis=-1, keepdims=True)
        ke = jnp.exp(k - kmax)
        kden = jnp.sum(ke, axis=-1, keepdims=True)
        ks = ke / kden

        # --- fused attention core: all heads (and both batches when nb == 2)
        # in single wide MXU matmuls.
        #   ctx[e, d] = sum_n v[e, n] * ks[d, n]        (A @ B^T)
        ctx = jax.lax.dot_general(v.astype(cdt), ks.astype(cdt), dn_abt,
                                  preferred_element_type=jnp.float32)
        # Keep only within-(batch, head) context: constant block-diag mask.
        ctx = ctx.astype(cdt) * mask
        #   out[e, n] = sum_d ctx[e, d] * qs[d, n]      (A @ B)
        out = jax.lax.dot_general(ctx, qs.astype(cdt), dn_ab,
                                  preferred_element_type=jnp.float32)

        # --- to_out[0] : 1x1 conv (block-diag Wout when nb == 2).
        y = jax.lax.dot_general(wout, out.astype(cdt), dn_ab,
                                preferred_element_type=jnp.float32)  # (nb*dim, n)

        # --- to_out[1] : GroupNorm(1, dim) per batch element.  Two-pass stats
        # (mean, then centered variance) in f32 for numerical safety.
        outs = []
        for b in range(nb):
            yb = y[b * dim:(b + 1) * dim, :] + bout
            mean = jnp.mean(yb)
            ybc = yb - mean
            var = jnp.mean(ybc * ybc)
            rstd = jax.lax.rsqrt(var + eps)
            outs.append(ybc * rstd * gamma + beta)
        return outs

    # Pair loop: trace-time constant trip count, fully unrolled (equivalent to
    # lax.fori_loop(..., unroll=True) but with static leading-axis indices).
    pairs = block_batch // 2
    for p in range(pairs):
        x0 = x_ref[2 * p]                        # (C, N)
        x1 = x_ref[2 * p + 1]                    # (C, N)
        xs = jnp.concatenate([x0, x1], axis=0)   # (2*C, N): batches on sublanes
        o0, o1 = attend(xs, wq2, wk2, wv2, wout2, mask2, 2)
        o_ref[2 * p] = o0.astype(o_ref.dtype)
        o_ref[2 * p + 1] = o1.astype(o_ref.dtype)

    # Odd tail: last batch alone, using the top-left weight / mask blocks.
    if block_batch % 2 == 1:
        b = block_batch - 1
        xs = x_ref[b]                            # (C, N)
        (ob,) = attend(xs, wq2[:hidden, :c], wk2[:hidden, :c],
                       wv2[:hidden, :c], wout2[:dim, :hidden],
                       mask2[:hidden, :hidden], 1)
        o_ref[b] = ob.astype(o_ref.dtype)


# ----------------------------------------------------------------------------
# VMEM budget helpers
# ----------------------------------------------------------------------------
def _vmem_cap_bytes():
    """~3/4 of physical VMEM (48 MiB v7x, 96 MiB v5e/v6e), with a safe fallback."""
    try:
        phys = int(pltpu.get_tpu_info().vmem_capacity_bytes)
    except Exception:
        phys = 64 << 20
    return max(32 << 20, (phys * 3) // 4)


def _vmem_limit_bytes(bb, c, n, hidden, dim, compute_dtype):
    f32 = 4
    cb = jnp.dtype(compute_dtype).itemsize
    h2, c2, d2 = 2 * hidden, 2 * c, 2 * dim
    io = 2 * bb * (c + dim) * n * f32                        # double-buffered x/out
    weights = 2 * ((3 * h2 * c2 + d2 * h2 + h2 * h2) * cb + 3 * dim * f32)
    per_pair = (3 * h2 * n * (f32 + cb)                      # q, k, v (+ cdt casts)
                + 4 * h2 * n * f32                           # softmax temporaries
                + 2 * h2 * h2 * f32                          # ctx (+ masked copy)
                + h2 * n * (f32 + cb)                        # out
                + 2 * d2 * n * f32)                          # y / normalized
    est = io + weights + 2 * per_pair + (4 << 20)
    return int(min(max(est, 32 << 20), _vmem_cap_bytes()))


# ----------------------------------------------------------------------------
# Wrapper
# ----------------------------------------------------------------------------
def linear_attention(x_nchw, params, *, heads, dim_head,
                     compute_dtype=jnp.bfloat16, block_batch=None):
    B, C, H, W = x_nchw.shape
    N = H * W
    hidden = heads * dim_head
    dim = C
    scale = dim_head ** (-0.5)
    eps = 1e-5

    # Batch blocking: several batches per grid step (prefer an even block so
    # the attention core runs as batch-paired 256-wide MXU matmuls).
    if block_batch is None:
        divisors = [d for d in range(1, min(B, 8) + 1) if B % d == 0]
        even = [d for d in divisors if d % 2 == 0]
        block_batch = max(even) if even else max(divisors)
    assert B % block_batch == 0
    Bb = block_batch

    # NCHW -> (B, C, N): pure reshape, no transpose (n = h*W + w).
    x_cn = x_nchw.reshape(B, C, N)

    # Conv2d weights (OC, IC, 1, 1) -> channels-first matmul matrices, then
    # 2x block-diagonal versions so a batch pair stacks along sublanes.
    wqkv = params["wqkv"].reshape(3 * hidden, C)
    wq, wk, wv = (wqkv[0:hidden], wqkv[hidden:2 * hidden], wqkv[2 * hidden:])
    wout = params["wout"].reshape(dim, hidden)

    def blkdiag2(w):
        z = jnp.zeros_like(w)
        top = jnp.concatenate([w, z], axis=1)
        bot = jnp.concatenate([z, w], axis=1)
        return jnp.concatenate([top, bot], axis=0)

    wq2 = blkdiag2(wq).astype(compute_dtype)        # (2*hidden, 2*C)
    wk2 = blkdiag2(wk).astype(compute_dtype)
    wv2 = blkdiag2(wv).astype(compute_dtype)
    wout2 = blkdiag2(wout).astype(compute_dtype)    # (2*dim, 2*hidden)

    # Trace-time constant block-diagonal (batch x head) mask for the fused
    # context matmul (replaces per-step iota/compare VPU work).
    ids = np.arange(2 * hidden) // dim_head
    mask2 = jnp.asarray(ids[:, None] == ids[None, :], dtype=compute_dtype)

    bout = params["bout"].reshape(dim, 1).astype(jnp.float32)
    gamma = params["gamma"].reshape(dim, 1).astype(jnp.float32)
    beta = params["beta"].reshape(dim, 1).astype(jnp.float32)

    kernel = functools.partial(
        _linear_attn_kernel, block_batch=Bb, heads=heads, dim_head=dim_head,
        dim=dim, scale=scale, eps=eps, compute_dtype=compute_dtype)

    # TODO(synk): for B == 1 on v7x, split the work over a second 'parallel'
    # grid axis (heads, or N halves with a two-pass ctx / GroupNorm) so both
    # TensorCores are used; for very large N add an 'arbitrary' N axis with a
    # VMEM ctx accumulator (flash-style running k-softmax rescale) + deferred
    # GroupNorm to stay inside v7x's 64 MiB VMEM, and feed x / write out in
    # bf16 from the wrapper to halve HBM traffic.
    out_cn = pl.pallas_call(
        kernel,
        out_shape=jax.ShapeDtypeStruct((B, dim, N), jnp.float32),
        grid_spec=pltpu.PrefetchScalarGridSpec(
            num_scalar_prefetch=0,
            grid=(B // Bb,),
            in_specs=[
                pl.BlockSpec((Bb, C, N), lambda g: (g, 0, 0)),             # x
                pl.BlockSpec((2 * hidden, 2 * C), lambda g: (0, 0)),       # Wq (blkdiag)
                pl.BlockSpec((2 * hidden, 2 * C), lambda g: (0, 0)),       # Wk (blkdiag)
                pl.BlockSpec((2 * hidden, 2 * C), lambda g: (0, 0)),       # Wv (blkdiag)
                pl.BlockSpec((2 * dim, 2 * hidden), lambda g: (0, 0)),     # Wout (blkdiag)
                pl.BlockSpec((2 * hidden, 2 * hidden), lambda g: (0, 0)),  # head/batch mask
                pl.BlockSpec((dim, 1), lambda g: (0, 0)),                  # bias
                pl.BlockSpec((dim, 1), lambda g: (0, 0)),                  # gamma
                pl.BlockSpec((dim, 1), lambda g: (0, 0)),                  # beta
            ],
            out_specs=pl.BlockSpec((Bb, dim, N), lambda g: (g, 0, 0)),
        ),
        compiler_params=pltpu.CompilerParams(
            dimension_semantics=("parallel",),
            vmem_limit_bytes=_vmem_limit_bytes(Bb, C, N, hidden, dim,
                                               compute_dtype),
        ),
    )(x_cn, wq2, wk2, wv2, wout2, mask2, bout, gamma, beta)

    # (B, dim, N) -> NCHW: pure reshape, no transpose.
    return out_cn.reshape(B, dim, H, W)


# ----------------------------------------------------------------------------
# Pure-JAX reference (mirrors the PyTorch forward) for verification.
# ----------------------------------------------------------------------------
def linear_attention_ref(x, params, *, heads, dim_head):
    B, C, H, W = x.shape
    N = H * W
    hidden = heads * dim_head
    scale = dim_head ** (-0.5)

    wqkv = params["wqkv"].reshape(3 * hidden, C)
    qkv = jnp.einsum("bchw,oc->bohw", x, wqkv)                 # (B, 3*hidden, H, W)
    q, k, v = jnp.split(qkv, 3, axis=1)

    def to_heads(t):
        return t.reshape(B, heads, dim_head, N)

    q, k, v = map(to_heads, (q, k, v))
    q = jax.nn.softmax(q, axis=-2) * scale
    k = jax.nn.softmax(k, axis=-1)
    context = jnp.einsum("bhdn,bhen->bhde", k, v)
    out = jnp.einsum("bhde,bhdn->bhen", context, q)            # (B, heads, dh, N)
    out = out.reshape(B, hidden, H, W)

    wout = params["wout"].reshape(C, hidden)
    y = jnp.einsum("bchw,oc->bohw", out, wout) + params["bout"].reshape(1, C, 1, 1)

    mean = jnp.mean(y, axis=(1, 2, 3), keepdims=True)
    var = jnp.var(y, axis=(1, 2, 3), keepdims=True)
    y = (y - mean) / jnp.sqrt(var + 1e-5)
    return y * params["gamma"].reshape(1, C, 1, 1) + params["beta"].reshape(1, C, 1, 1)


if __name__ == "__main__":
    heads, dim_head = 4, 32
    hidden = heads * dim_head
    dim = 8

    key = jax.random.PRNGKey(0)
    kx, k1, k2, k3, k4, k5, kx2 = jax.random.split(key, 7)

    params = {
        "wqkv": 0.1 * jax.random.normal(k1, (3 * hidden, dim, 1, 1), jnp.float32),
        "wout": 0.1 * jax.random.normal(k2, (dim, hidden, 1, 1), jnp.float32),
        "bout": 0.1 * jax.random.normal(k3, (dim,), jnp.float32),
        "gamma": 1.0 + 0.1 * jax.random.normal(k4, (dim,), jnp.float32),
        "beta": 0.1 * jax.random.normal(k5, (dim,), jnp.float32),
    }

    # --- main test: B=2 (one batch-paired grid step) ------------------------
    x = jax.random.normal(kx, (2, dim, 16, 16), dtype=jnp.float32)
    ref = linear_attention_ref(x, params, heads=heads, dim_head=dim_head)

    # f32 matmul operands: tight check of the paired-head math (tolerance
    # covers the approximate EUP reciprocal in the q-softmax).
    out_f32 = jax.block_until_ready(
        linear_attention(x, params, heads=heads, dim_head=dim_head,
                         compute_dtype=jnp.float32))
    assert out_f32.shape == x.shape
    err_f32 = float(jnp.max(jnp.abs(out_f32 - ref)))
    assert jnp.allclose(out_f32, ref, atol=5e-3, rtol=5e-3), err_f32

    # Default perf config: bf16 matmul operands, f32 accumulation/elementwise.
    out_bf16 = jax.block_until_ready(
        linear_attention(x, params, heads=heads, dim_head=dim_head))
    err_bf16 = float(jnp.max(jnp.abs(out_bf16 - ref)))
    assert jnp.allclose(out_bf16, ref, atol=3e-2, rtol=3e-2), err_bf16

    # --- secondary test: odd batch block (2 pairs + tail path), small N -----
    x5 = jax.random.normal(kx2, (5, dim, 8, 8), dtype=jnp.float32)
    ref5 = linear_attention_ref(x5, params, heads=heads, dim_head=dim_head)
    out5 = jax.block_until_ready(
        linear_attention(x5, params, heads=heads, dim_head=dim_head,
                         compute_dtype=jnp.float32))
    err5 = float(jnp.max(jnp.abs(out5 - ref5)))
    assert jnp.allclose(out5, ref5, atol=5e-3, rtol=5e-3), err5

    print("KERNEL_OK")
</pallas_src>

<mosaic_0001>
module attributes {stable_mosaic.version = 11 : i64} {
  func.func @_linear_attn_kernel(%arg0: i32, %arg1: memref<2x8x256xf32, #tpu.memory_space<vmem>>, %arg2: memref<256x16xf32, #tpu.memory_space<vmem>>, %arg3: memref<256x16xf32, #tpu.memory_space<vmem>>, %arg4: memref<256x16xf32, #tpu.memory_space<vmem>>, %arg5: memref<16x256xf32, #tpu.memory_space<vmem>>, %arg6: memref<256x256xf32, #tpu.memory_space<vmem>>, %arg7: memref<8x1xf32, #tpu.memory_space<vmem>>, %arg8: memref<8x1xf32, #tpu.memory_space<vmem>>, %arg9: memref<8x1xf32, #tpu.memory_space<vmem>>, %arg10: memref<2x8x256xf32, #tpu.memory_space<vmem>>) attributes {dimension_semantics = [#tpu.dimension_semantics<parallel>], iteration_bounds = array<i64: 1>, scalar_prefetch = 0 : i64, scratch_operands = 0 : i64, tpu.core_type = #tpu.core_type<tc>, window_params = [{transform_indices = @transform_0, window_bounds = array<i64: 2, 8, 256>}, {pipeline_mode = #tpu.pipeline_mode<synchronous>, transform_indices = @transform_1, window_bounds = array<i64: 256, 16>}, {pipeline_mode = #tpu.pipeline_mode<synchronous>, transform_indices = @transform_2, window_bounds = array<i64: 256, 16>}, {pipeline_mode = #tpu.pipeline_mode<synchronous>, transform_indices = @transform_3, window_bounds = array<i64: 256, 16>}, {pipeline_mode = #tpu.pipeline_mode<synchronous>, transform_indices = @transform_4, window_bounds = array<i64: 16, 256>}, {pipeline_mode = #tpu.pipeline_mode<synchronous>, transform_indices = @transform_5, window_bounds = array<i64: 256, 256>}, {pipeline_mode = #tpu.pipeline_mode<synchronous>, transform_indices = @transform_6, window_bounds = array<i64: 8, 1>}, {pipeline_mode = #tpu.pipeline_mode<synchronous>, transform_indices = @transform_7, window_bounds = array<i64: 8, 1>}, {pipeline_mode = #tpu.pipeline_mode<synchronous>, transform_indices = @transform_8, window_bounds = array<i64: 8, 1>}, {transform_indices = @transform_9, window_bounds = array<i64: 2, 8, 256>}]} {
    %c0 = arith.constant 0 : index
    %c0_0 = arith.constant 0 : index
    %0 = vector.load %arg2[%c0, %c0_0] : memref<256x16xf32, #tpu.memory_space<vmem>>, vector<256x16xf32>
    %c0_1 = arith.constant 0 : index
    %c0_2 = arith.constant 0 : index
    %1 = vector.load %arg3[%c0_1, %c0_2] : memref<256x16xf32, #tpu.memory_space<vmem>>, vector<256x16xf32>
    %c0_3 = arith.constant 0 : index
    %c0_4 = arith.constant 0 : index
    %2 = vector.load %arg4[%c0_3, %c0_4] : memref<256x16xf32, #tpu.memory_space<vmem>>, vector<256x16xf32>
    %c0_5 = arith.constant 0 : index
    %c0_6 = arith.constant 0 : index
    %3 = vector.load %arg5[%c0_5, %c0_6] : memref<16x256xf32, #tpu.memory_space<vmem>>, vector<16x256xf32>
    %c0_7 = arith.constant 0 : index
    %c0_8 = arith.constant 0 : index
    %4 = vector.load %arg6[%c0_7, %c0_8] : memref<256x256xf32, #tpu.memory_space<vmem>>, vector<256x256xf32>
    %c0_9 = arith.constant 0 : index
    %c0_10 = arith.constant 0 : index
    %5 = vector.load %arg7[%c0_9, %c0_10] : memref<8x1xf32, #tpu.memory_space<vmem>>, vector<8x1xf32>
    %c0_11 = arith.constant 0 : index
    %c0_12 = arith.constant 0 : index
    %6 = vector.load %arg8[%c0_11, %c0_12] : memref<8x1xf32, #tpu.memory_space<vmem>>, vector<8x1xf32>
    %c0_13 = arith.constant 0 : index
    %c0_14 = arith.constant 0 : index
    %7 = vector.load %arg9[%c0_13, %c0_14] : memref<8x1xf32, #tpu.memory_space<vmem>>, vector<8x1xf32>
    %c0_15 = arith.constant 0 : index
    %c0_16 = arith.constant 0 : index
    %c0_17 = arith.constant 0 : index
    %8 = vector.load %arg1[%c0_15, %c0_16, %c0_17] : memref<2x8x256xf32, #tpu.memory_space<vmem>>, vector<1x8x256xf32>
    %9 = vector.shape_cast %8 : vector<1x8x256xf32> to vector<8x256xf32>
    %c1 = arith.constant 1 : index
    %c0_18 = arith.constant 0 : index
    %c0_19 = arith.constant 0 : index
    %10 = vector.load %arg1[%c1, %c0_18, %c0_19] : memref<2x8x256xf32, #tpu.memory_space<vmem>>, vector<1x8x256xf32>
    %11 = vector.shape_cast %10 : vector<1x8x256xf32> to vector<8x256xf32>
    %12 = tpu.concatenate %9, %11 in 0 : vector<8x256xf32>, vector<8x256xf32> -> vector<16x256xf32>
    %cst = arith.constant dense<0.000000e+00> : vector<256x256xf32>
    %13 = tpu.matmul %0, %12, %cst {dimension_numbers = #tpu.dot_dimension_numbers<[1], [0], [0], [1], [0, 0, 1, 1], [], []>} : vector<256x16xf32>, vector<16x256xf32>, vector<256x256xf32> -> vector<256x256xf32>
    %cst_20 = arith.constant dense<0.000000e+00> : vector<256x256xf32>
    %14 = tpu.matmul %1, %12, %cst_20 {dimension_numbers = #tpu.dot_dimension_numbers<[1], [0], [0], [1], [0, 0, 1, 1], [], []>} : vector<256x16xf32>, vector<16x256xf32>, vector<256x256xf32> -> vector<256x256xf32>
    %cst_21 = arith.constant dense<0.000000e+00> : vector<256x256xf32>
    %15 = tpu.matmul %2, %12, %cst_21 {dimension_numbers = #tpu.dot_dimension_numbers<[1], [0], [0], [1], [0, 0, 1, 1], [], []>} : vector<256x16xf32>, vector<16x256xf32>, vector<256x256xf32> -> vector<256x256xf32>
    %16 = vector.shape_cast %13 : vector<256x256xf32> to vector<8x32x256xf32>
    %cst_22 = arith.constant dense<0xFF800000> : vector<8x256xf32>
    %17 = vector.multi_reduction <maximumf>, %16, %cst_22 [1] : vector<8x32x256xf32> to vector<8x256xf32>
    %18 = vector.shape_cast %17 : vector<8x256xf32> to vector<8x1x256xf32>
    %19 = vector.broadcast %18 : vector<8x1x256xf32> to vector<8x32x256xf32>
    %20 = arith.subf %16, %19 : vector<8x32x256xf32>
    %21 = math.exp %20 : vector<8x32x256xf32>
    %cst_23 = arith.constant dense<0.000000e+00> : vector<8x256xf32>
    %22 = vector.multi_reduction <add>, %21, %cst_23 [1] : vector<8x32x256xf32> to vector<8x256xf32>
    %23 = vector.shape_cast %22 : vector<8x256xf32> to vector<8x1x256xf32>
    %24 = tpu.reciprocal %23 {approx = true} : vector<8x1x256xf32> -> vector<8x1x256xf32>
    %cst_24 = arith.constant 0.176776692 : f32
    %25 = vector.broadcast %cst_24 : f32 to vector<8x1x256xf32>
    %26 = arith.mulf %24, %25 : vector<8x1x256xf32>
    %27 = vector.broadcast %26 : vector<8x1x256xf32> to vector<8x32x256xf32>
    %28 = arith.mulf %21, %27 : vector<8x32x256xf32>
    %29 = vector.shape_cast %28 : vector<8x32x256xf32> to vector<256x256xf32>
    %cst_25 = arith.constant dense<0xFF800000> : vector<256xf32>
    %30 = vector.multi_reduction <maximumf>, %14, %cst_25 [1] : vector<256x256xf32> to vector<256xf32>
    %31 = vector.shape_cast %30 : vector<256xf32> to vector<256x1xf32>
    %32 = vector.broadcast %31 : vector<256x1xf32> to vector<256x256xf32>
    %33 = arith.subf %14, %32 : vector<256x256xf32>
    %34 = math.exp %33 : vector<256x256xf32>
    %cst_26 = arith.constant dense<0.000000e+00> : vector<256xf32>
    %35 = vector.multi_reduction <add>, %34, %cst_26 [1] : vector<256x256xf32> to vector<256xf32>
    %36 = vector.shape_cast %35 : vector<256xf32> to vector<256x1xf32>
    %37 = vector.broadcast %36 : vector<256x1xf32> to vector<256x256xf32>
    %38 = arith.divf %34, %37 : vector<256x256xf32>
    %cst_27 = arith.constant dense<0.000000e+00> : vector<256x256xf32>
    %39 = tpu.matmul %15, %38, %cst_27 {dimension_numbers = #tpu.dot_dimension_numbers<[1], [1], [0], [0], [0, 0, 1, 0], [], []>} : vector<256x256xf32>, vector<256x256xf32>, vector<256x256xf32> -> vector<256x256xf32>
    %40 = arith.mulf %39, %4 : vector<256x256xf32>
    %cst_28 = arith.constant dense<0.000000e+00> : vector<256x256xf32>
    %41 = tpu.matmul %40, %29, %cst_28 {dimension_numbers = #tpu.dot_dimension_numbers<[1], [0], [0], [1], [0, 0, 1, 1], [], []>} : vector<256x256xf32>, vector<256x256xf32>, vector<256x256xf32> -> vector<256x256xf32>
    %cst_29 = arith.constant dense<0.000000e+00> : vector<16x256xf32>
    %42 = tpu.matmul %3, %41, %cst_29 {dimension_numbers = #tpu.dot_dimension_numbers<[1], [0], [0], [1], [0, 0, 1, 1], [], []>} : vector<16x256xf32>, vector<256x256xf32>, vector<16x256xf32> -> vector<16x256xf32>
    %43 = vector.extract_strided_slice %42 {offsets = [0, 0], sizes = [8, 256], strides = [1, 1]} : vector<16x256xf32> to vector<8x256xf32>
    %44 = vector.broadcast %5 : vector<8x1xf32> to vector<8x256xf32>
    %45 = arith.addf %43, %44 : vector<8x256xf32>
    %46 = vector.shape_cast %45 : vector<8x256xf32> to vector<1x8x256xf32>
    %cst_30 = arith.constant dense<0.000000e+00> : vector<1xf32>
    %47 = vector.multi_reduction <add>, %46, %cst_30 [1, 2] : vector<1x8x256xf32> to vector<1xf32>
    %48 = vector.shape_cast %47 : vector<1xf32> to vector<1x1x1xf32>
    %49 = vector.extract %48[0, 0, 0] : f32 from vector<1x1x1xf32>
    %cst_31 = arith.constant 2.048000e+03 : f32
    %50 = arith.divf %49, %cst_31 : f32
    %51 = vector.broadcast %50 : f32 to vector<8x256xf32>
    %52 = arith.subf %45, %51 : vector<8x256xf32>
    %53 = arith.mulf %52, %52 : vector<8x256xf32>
    %54 = vector.shape_cast %53 : vector<8x256xf32> to vector<1x8x256xf32>
    %cst_32 = arith.constant dense<0.000000e+00> : vector<1xf32>
    %55 = vector.multi_reduction <add>, %54, %cst_32 [1, 2] : vector<1x8x256xf32> to vector<1xf32>
    %56 = vector.shape_cast %55 : vector<1xf32> to vector<1x1x1xf32>
    %57 = vector.extract %56[0, 0, 0] : f32 from vector<1x1x1xf32>
    %cst_33 = arith.constant 2.048000e+03 : f32
    %58 = arith.divf %57, %cst_33 : f32
    %cst_34 = arith.constant 9.99999974E-6 : f32
    %59 = arith.addf %58, %cst_34 : f32
    %60 = math.rsqrt %59 : f32
    %61 = vector.broadcast %60 : f32 to vector<8x256xf32>
    %62 = arith.mulf %52, %61 : vector<8x256xf32>
    %63 = vector.broadcast %6 : vector<8x1xf32> to vector<8x256xf32>
    %64 = arith.mulf %62, %63 : vector<8x256xf32>
    %65 = vector.broadcast %7 : vector<8x1xf32> to vector<8x256xf32>
    %66 = arith.addf %64, %65 : vector<8x256xf32>
    %67 = vector.extract_strided_slice %42 {offsets = [8, 0], sizes = [8, 256], strides = [1, 1]} : vector<16x256xf32> to vector<8x256xf32>
    %68 = vector.broadcast %5 : vector<8x1xf32> to vector<8x256xf32>
    %69 = arith.addf %67, %68 : vector<8x256xf32>
    %70 = vector.shape_cast %69 : vector<8x256xf32> to vector<1x8x256xf32>
    %cst_35 = arith.constant dense<0.000000e+00> : vector<1xf32>
    %71 = vector.multi_reduction <add>, %70, %cst_35 [1, 2] : vector<1x8x256xf32> to vector<1xf32>
    %72 = vector.shape_cast %71 : vector<1xf32> to vector<1x1x1xf32>
    %73 = vector.extract %72[0, 0, 0] : f32 from vector<1x1x1xf32>
    %cst_36 = arith.constant 2.048000e+03 : f32
    %74 = arith.divf %73, %cst_36 : f32
    %75 = vector.broadcast %74 : f32 to vector<8x256xf32>
    %76 = arith.subf %69, %75 : vector<8x256xf32>
    %77 = arith.mulf %76, %76 : vector<8x256xf32>
    %78 = vector.shape_cast %77 : vector<8x256xf32> to vector<1x8x256xf32>
    %cst_37 = arith.constant dense<0.000000e+00> : vector<1xf32>
    %79 = vector.multi_reduction <add>, %78, %cst_37 [1, 2] : vector<1x8x256xf32> to vector<1xf32>
    %80 = vector.shape_cast %79 : vector<1xf32> to vector<1x1x1xf32>
    %81 = vector.extract %80[0, 0, 0] : f32 from vector<1x1x1xf32>
    %cst_38 = arith.constant 2.048000e+03 : f32
    %82 = arith.divf %81, %cst_38 : f32
    %cst_39 = arith.constant 9.99999974E-6 : f32
    %83 = arith.addf %82, %cst_39 : f32
    %84 = math.rsqrt %83 : f32
    %85 = vector.broadcast %84 : f32 to vector<8x256xf32>
    %86 = arith.mulf %76, %85 : vector<8x256xf32>
    %87 = vector.broadcast %6 : vector<8x1xf32> to vector<8x256xf32>
    %88 = arith.mulf %86, %87 : vector<8x256xf32>
    %89 = vector.broadcast %7 : vector<8x1xf32> to vector<8x256xf32>
    %90 = arith.addf %88, %89 : vector<8x256xf32>
    %c0_40 = arith.constant 0 : index
    %c0_41 = arith.constant 0 : index
    %c0_42 = arith.constant 0 : index
    %91 = vector.load %arg10[%c0_40, %c0_41, %c0_42] : memref<2x8x256xf32, #tpu.memory_space<vmem>>, vector<1x8x256xf32>
    %92 = vector.shape_cast %91 : vector<1x8x256xf32> to vector<8x256xf32>
    %93 = vector.shape_cast %66 : vector<8x256xf32> to vector<1x8x256xf32>
    tpu.vector_store %arg10[%c0_40, %c0_41, %c0_42], %93 {strides = array<i32>} : memref<2x8x256xf32, #tpu.memory_space<vmem>>, vector<1x8x256xf32>,
    %c1_43 = arith.constant 1 : index
    %c0_44 = arith.constant 0 : index
    %c0_45 = arith.constant 0 : index
    %94 = vector.load %arg10[%c1_43, %c0_44, %c0_45] : memref<2x8x256xf32, #tpu.memory_space<vmem>>, vector<1x8x256xf32>
    %95 = vector.shape_cast %94 : vector<1x8x256xf32> to vector<8x256xf32>
    %96 = vector.shape_cast %90 : vector<8x256xf32> to vector<1x8x256xf32>
    tpu.vector_store %arg10[%c1_43, %c0_44, %c0_45], %96 {strides = array<i32>} : memref<2x8x256xf32, #tpu.memory_space<vmem>>, vector<1x8x256xf32>,
    return
  }
  func.func @transform_0(%arg0: i32) -> (i32, i32, i32) {
    %c0_i32 = arith.constant 0 : i32
    %c0_i32_0 = arith.constant 0 : i32
    %c0_i32_1 = arith.constant 0 : i32
    return %arg0, %c0_i32, %c0_i32_0 : i32, i32, i32
  }
  func.func @transform_1(%arg0: i32) -> (i32, i32) {
    %c0_i32 = arith.constant 0 : i32
    %c0_i32_0 = arith.constant 0 : i32
    %c0_i32_1 = arith.constant 0 : i32
    return %c0_i32, %c0_i32_0 : i32, i32
  }
  func.func @transform_2(%arg0: i32) -> (i32, i32) {
    %c0_i32 = arith.constant 0 : i32
    %c0_i32_0 = arith.constant 0 : i32
    %c0_i32_1 = arith.constant 0 : i32
    return %c0_i32, %c0_i32_0 : i32, i32
  }
  func.func @transform_3(%arg0: i32) -> (i32, i32) {
    %c0_i32 = arith.constant 0 : i32
    %c0_i32_0 = arith.constant 0 : i32
    %c0_i32_1 = arith.constant 0 : i32
    return %c0_i32, %c0_i32_0 : i32, i32
  }
  func.func @transform_4(%arg0: i32) -> (i32, i32) {
    %c0_i32 = arith.constant 0 : i32
    %c0_i32_0 = arith.constant 0 : i32
    %c0_i32_1 = arith.constant 0 : i32
    return %c0_i32, %c0_i32_0 : i32, i32
  }
  func.func @transform_5(%arg0: i32) -> (i32, i32) {
    %c0_i32 = arith.constant 0 : i32
    %c0_i32_0 = arith.constant 0 : i32
    %c0_i32_1 = arith.constant 0 : i32
    return %c0_i32, %c0_i32_0 : i32, i32
  }
  func.func @transform_6(%arg0: i32) -> (i32, i32) {
    %c0_i32 = arith.constant 0 : i32
    %c0_i32_0 = arith.constant 0 : i32
    %c0_i32_1 = arith.constant 0 : i32
    return %c0_i32, %c0_i32_0 : i32, i32
  }
  func.func @transform_7(%arg0: i32) -> (i32, i32) {
    %c0_i32 = arith.constant 0 : i32
    %c0_i32_0 = arith.constant 0 : i32
    %c0_i32_1 = arith.constant 0 : i32
    return %c0_i32, %c0_i32_0 : i32, i32
  }
  func.func @transform_8(%arg0: i32) -> (i32, i32) {
    %c0_i32 = arith.constant 0 : i32
    %c0_i32_0 = arith.constant 0 : i32
    %c0_i32_1 = arith.constant 0 : i32
    return %c0_i32, %c0_i32_0 : i32, i32
  }
  func.func @transform_9(%arg0: i32) -> (i32, i32, i32) {
    %c0_i32 = arith.constant 0 : i32
    %c0_i32_0 = arith.constant 0 : i32
    %c0_i32_1 = arith.constant 0 : i32
    return %arg0, %c0_i32, %c0_i32_0 : i32, i32, i32
  }
}

</mosaic_0001>

<llo_original>
// kernel: tpu_custom_call.1
$region0: #{tpu_custom_call.1}
  #allocation0 [shape = 'u32[]', space=smem, size = 0x4, offset = 0x4, fixed_abs, tag = 'smem constant byte address 0x4 - core index']
  #allocation1 [shape = 'u32[144,128]{1,0:T(1,128)}', space=vmem, size = 0x12000, scoped, tag = 'internal scratch']
  %s0 = inlined_call_operand.vmem [shape: f32[2,8,256], index: 0, kind: input, shape index: {}]
  %s1 = inlined_call_operand.vmem [shape: f32[256,16], index: 1, kind: input, shape index: {}]
  %s2 = inlined_call_operand.vmem [shape: f32[256,16], index: 2, kind: input, shape index: {}]
  %s3 = inlined_call_operand.vmem [shape: f32[256,16], index: 3, kind: input, shape index: {}]
  %s4 = inlined_call_operand.vmem [shape: f32[16,256], index: 4, kind: input, shape index: {}]
  %s5 = inlined_call_operand.vmem [shape: f32[256,256], index: 5, kind: input, shape index: {}]
  %s6 = inlined_call_operand.vmem [shape: f32[8,1], index: 6, kind: input, shape index: {}]
  %s7 = inlined_call_operand.vmem [shape: f32[8,1], index: 7, kind: input, shape index: {}]
  %s8 = inlined_call_operand.vmem [shape: f32[8,1], index: 8, kind: input, shape index: {}]
  %s9 = inlined_call_operand.hbm [shape: f32[2,8,256], index: 9, kind: output, shape index: {}]
  %s10 = sld [smem:[#allocation0]]
  $region46: #{tpu_custom_call.1} parent=0
    _
  %s12 = ssub.s32 1, %s10
  %s13 = scalar_select 0, %s12, %s10
  $region1: #{tpu_custom_call.1} parent=0
    #allocation2 [shape = 'u8[16384]{0}', space=vmem, size = 0x4000, scoped, tag = 'output window, operand 0, single buffered']
    #allocation3 [shape = 's32[1]{0}', space=sflag, size = 0x4, scoped, tag = 'scoped memory for tpu_custom_call.1']
    %14 = vsyncpa [#allocation3], 0
    // Predicated region
    $region2: #{tpu_custom_call.1} parent=1 // pred_check
      _
    $region3: #{tpu_custom_call.1} parent=1 // pred_check_branch
      %16 = sbr.rel (0) target = $region5
    $region4: #{tpu_custom_call.1} parent=1 // pred_region
      _
    $region5: #{tpu_custom_call.1} parent=1 // pred_fallthru
      _
    // Predicated region
    $region6: #{tpu_custom_call.1} parent=1 // pred_check
      _
    $region7: #{tpu_custom_call.1} parent=1 // pred_check_branch
      %18 = sbr.rel (0) target = $region9
    $region8: #{tpu_custom_call.1} parent=1 // pred_region
      _
    $region9: #{tpu_custom_call.1} parent=1 // pred_fallthru
      _
    // Predicated region
    $region10: #{tpu_custom_call.1} parent=1 // pred_check
      _
    $region11: #{tpu_custom_call.1} parent=1 // pred_check_branch
      %20 = sbr.rel (0) target = $region13
    $region12: #{tpu_custom_call.1} parent=1 // pred_region
      _
    $region13: #{tpu_custom_call.1} parent=1 // pred_fallthru
      _
    // Predicated region
    $region14: #{tpu_custom_call.1} parent=1 // pred_check
      _
    $region15: #{tpu_custom_call.1} parent=1 // pred_check_branch
      %22 = sbr.rel (0) target = $region17
    $region16: #{tpu_custom_call.1} parent=1 // pred_region
      _
    $region17: #{tpu_custom_call.1} parent=1 // pred_fallthru
      _
    // Predicated region
    $region18: #{tpu_custom_call.1} parent=1 // pred_check
      _
    $region19: #{tpu_custom_call.1} parent=1 // pred_check_branch
      %24 = sbr.rel (0) target = $region21
    $region20: #{tpu_custom_call.1} parent=1 // pred_region
      _
    $region21: #{tpu_custom_call.1} parent=1 // pred_fallthru
      _
    // Predicated region
    $region22: #{tpu_custom_call.1} parent=1 // pred_check
      _
    $region23: #{tpu_custom_call.1} parent=1 // pred_check_branch
      %26 = sbr.rel (0) target = $region25
    $region24: #{tpu_custom_call.1} parent=1 // pred_region
      _
    $region25: #{tpu_custom_call.1} parent=1 // pred_fallthru
      _
    // Predicated region
    $region26: #{tpu_custom_call.1} parent=1 // pred_check
      _
    $region27: #{tpu_custom_call.1} parent=1 // pred_check_branch
      %28 = sbr.rel (0) target = $region29
    $region28: #{tpu_custom_call.1} parent=1 // pred_region
      _
    $region29: #{tpu_custom_call.1} parent=1 // pred_fallthru
      _
    // Predicated region
    $region30: #{tpu_custom_call.1} parent=1 // pred_check
      _
    $region31: #{tpu_custom_call.1} parent=1 // pred_check_branch
      %30 = sbr.rel (0) target = $region33
    $region32: #{tpu_custom_call.1} parent=1 // pred_region
      _
    $region33: #{tpu_custom_call.1} parent=1 // pred_fallthru
      _
    // Predicated region
    $region34: #{tpu_custom_call.1} parent=1 // pred_check
      _
    $region35: #{tpu_custom_call.1} parent=1 // pred_check_branch
      %32 = sbr.rel (0) target = $region37
    $region36: #{tpu_custom_call.1} parent=1 // pred_region
      _
    $region37: #{tpu_custom_call.1} parent=1 // pred_fallthru
      _
    %v33 = vld [vmem:[%s1] sm:$0xff]
    %v34 = vld [vmem:[%s1 + $0x8] sm:$0xff]
    %v35 = vld [vmem:[%s1 + $0x10] sm:$0xff]
    %v36 = vld [vmem:[%s1 + $0x18] sm:$0xff]
    %v37 = vld [vmem:[%s1 + $0x20] sm:$0xff]
    %v38 = vld [vmem:[%s1 + $0x28] sm:$0xff]
    %v39 = vld [vmem:[%s1 + $0x30] sm:$0xff]
    %v40 = vld [vmem:[%s1 + $0x38] sm:$0xff]
    %v41 = vld [vmem:[%s1 + $0x40] sm:$0xff]
    %v42 = vld [vmem:[%s1 + $0x48] sm:$0xff]
    %v43 = vld [vmem:[%s1 + $0x50] sm:$0xff]
    %v44 = vld [vmem:[%s1 + $0x58] sm:$0xff]
    %v45 = vld [vmem:[%s1 + $0x60] sm:$0xff]
    %v46 = vld [vmem:[%s1 + $0x68] sm:$0xff]
    %v47 = vld [vmem:[%s1 + $0x70] sm:$0xff]
    %v48 = vld [vmem:[%s1 + $0x78] sm:$0xff]
    %v49 = vld [vmem:[%s1 + $0x80] sm:$0xff]
    %v50 = vld [vmem:[%s1 + $0x88] sm:$0xff]
    %v51 = vld [vmem:[%s1 + $0x90] sm:$0xff]
    %v52 = vld [vmem:[%s1 + $0x98] sm:$0xff]
    %v53 = vld [vmem:[%s1 + $0xa0] sm:$0xff]
    %v54 = vld [vmem:[%s1 + $0xa8] sm:$0xff]
    %v55 = vld [vmem:[%s1 + $0xb0] sm:$0xff]
    %v56 = vld [vmem:[%s1 + $0xb8] sm:$0xff]
    %v57 = vld [vmem:[%s1 + $0xc0] sm:$0xff]
    %v58 = vld [vmem:[%s1 + $0xc8] sm:$0xff]
    %v59 = vld [vmem:[%s1 + $0xd0] sm:$0xff]
    %v60 = vld [vmem:[%s1 + $0xd8] sm:$0xff]
    %v61 = vld [vmem:[%s1 + $0xe0] sm:$0xff]
    %v62 = vld [vmem:[%s1 + $0xe8] sm:$0xff]
    %v63 = vld [vmem:[%s1 + $0xf0] sm:$0xff]
    %v64 = vld [vmem:[%s1 + $0xf8] sm:$0xff]
    %v65 = vld [vmem:[%s2] sm:$0xff]
    %v66 = vld [vmem:[%s2 + $0x8] sm:$0xff]
    %v67 = vld [vmem:[%s2 + $0x10] sm:$0xff]
    %v68 = vld [vmem:[%s2 + $0x18] sm:$0xff]
    %v69 = vld [vmem:[%s2 + $0x20] sm:$0xff]
    %v70 = vld [vmem:[%s2 + $0x28] sm:$0xff]
    %v71 = vld [vmem:[%s2 + $0x30] sm:$0xff]
    %v72 = vld [vmem:[%s2 + $0x38] sm:$0xff]
    %v73 = vld [vmem:[%s2 + $0x40] sm:$0xff]
    %v74 = vld [vmem:[%s2 + $0x48] sm:$0xff]
    %v75 = vld [vmem:[%s2 + $0x50] sm:$0xff]
    %v76 = vld [vmem:[%s2 + $0x58] sm:$0xff]
    %v77 = vld [vmem:[%s2 + $0x60] sm:$0xff]
    %v78 = vld [vmem:[%s2 + $0x68] sm:$0xff]
    %v79 = vld [vmem:[%s2 + $0x70] sm:$0xff]
    %v80 = vld [vmem:[%s2 + $0x78] sm:$0xff]
    %v81 = vld [vmem:[%s2 + $0x80] sm:$0xff]
    %v82 = vld [vmem:[%s2 + $0x88] sm:$0xff]
    %v83 = vld [vmem:[%s2 + $0x90] sm:$0xff]
    %v84 = vld [vmem:[%s2 + $0x98] sm:$0xff]
    %v85 = vld [vmem:[%s2 + $0xa0] sm:$0xff]
    %v86 = vld [vmem:[%s2 + $0xa8] sm:$0xff]
    %v87 = vld [vmem:[%s2 + $0xb0] sm:$0xff]
    %v88 = vld [vmem:[%s2 + $0xb8] sm:$0xff]
    %v89 = vld [vmem:[%s2 + $0xc0] sm:$0xff]
    %v90 = vld [vmem:[%s2 + $0xc8] sm:$0xff]
    %v91 = vld [vmem:[%s2 + $0xd0] sm:$0xff]
    %v92 = vld [vmem:[%s2 + $0xd8] sm:$0xff]
    %v93 = vld [vmem:[%s2 + $0xe0] sm:$0xff]
    %v94 = vld [vmem:[%s2 + $0xe8] sm:$0xff]
    %v95 = vld [vmem:[%s2 + $0xf0] sm:$0xff]
    %v96 = vld [vmem:[%s2 + $0xf8] sm:$0xff]
    %v97 = vld [vmem:[%s3] sm:$0xff]
    %v98 = vld [vmem:[%s3 + $0x8] sm:$0xff]
    %v99 = vld [vmem:[%s3 + $0x10] sm:$0xff]
    %v100 = vld [vmem:[%s3 + $0x18] sm:$0xff]
    %v101 = vld [vmem:[%s3 + $0x20] sm:$0xff]
    %v102 = vld [vmem:[%s3 + $0x28] sm:$0xff]
    %v103 = vld [vmem:[%s3 + $0x30] sm:$0xff]
    %v104 = vld [vmem:[%s3 + $0x38] sm:$0xff]
    %v105 = vld [vmem:[%s3 + $0x40] sm:$0xff]
    %v106 = vld [vmem:[%s3 + $0x48] sm:$0xff]
    %v107 = vld [vmem:[%s3 + $0x50] sm:$0xff]
    %v108 = vld [vmem:[%s3 + $0x58] sm:$0xff]
    %v109 = vld [vmem:[%s3 + $0x60] sm:$0xff]
    %v110 = vld [vmem:[%s3 + $0x68] sm:$0xff]
    %v111 = vld [vmem:[%s3 + $0x70] sm:$0xff]
    %v112 = vld [vmem:[%s3 + $0x78] sm:$0xff]
    %v113 = vld [vmem:[%s3 + $0x80] sm:$0xff]
    %v114 = vld [vmem:[%s3 + $0x88] sm:$0xff]
    %v115 = vld [vmem:[%s3 + $0x90] sm:$0xff]
    %v116 = vld [vmem:[%s3 + $0x98] sm:$0xff]
    %v117 = vld [vmem:[%s3 + $0xa0] sm:$0xff]
    %v118 = vld [vmem:[%s3 + $0xa8] sm:$0xff]
    %v119 = vld [vmem:[%s3 + $0xb0] sm:$0xff]
    %v120 = vld [vmem:[%s3 + $0xb8] sm:$0xff]
    %v121 = vld [vmem:[%s3 + $0xc0] sm:$0xff]
    %v122 = vld [vmem:[%s3 + $0xc8] sm:$0xff]
    %v123 = vld [vmem:[%s3 + $0xd0] sm:$0xff]
    %v124 = vld [vmem:[%s3 + $0xd8] sm:$0xff]
    %v125 = vld [vmem:[%s3 + $0xe0] sm:$0xff]
    %v126 = vld [vmem:[%s3 + $0xe8] sm:$0xff]
    %v127 = vld [vmem:[%s3 + $0xf0] sm:$0xff]
    %v128 = vld [vmem:[%s3 + $0xf8] sm:$0xff]
    %v129 = vld [vmem:[%s4] sm:$0xff]
    %v130 = vld [vmem:[%s4 + $0x8] sm:$0xff]
    %v131 = vld [vmem:[%s4 + $0x10] sm:$0xff]
    %v132 = vld [vmem:[%s4 + $0x18] sm:$0xff]
    %v133 = vld [vmem:[%s5] sm:$0xff]
    %v134 = vld [vmem:[%s5 + $0x8] sm:$0xff]
    %v135 = vld [vmem:[%s5 + $0x10] sm:$0xff]
    %v136 = vld [vmem:[%s5 + $0x18] sm:$0xff]
    %v137 = vld [vmem:[%s5 + $0x20] sm:$0xff]
    %v138 = vld [vmem:[%s5 + $0x28] sm:$0xff]
    %v139 = vld [vmem:[%s5 + $0x30] sm:$0xff]
    %v140 = vld [vmem:[%s5 + $0x38] sm:$0xff]
    %v141 = vld [vmem:[%s5 + $0x40] sm:$0xff]
    %v142 = vld [vmem:[%s5 + $0x48] sm:$0xff]
    %v143 = vld [vmem:[%s5 + $0x50] sm:$0xff]
    %v144 = vld [vmem:[%s5 + $0x58] sm:$0xff]
    %v145 = vld [vmem:[%s5 + $0x60] sm:$0xff]
    %v146 = vld [vmem:[%s5 + $0x68] sm:$0xff]
    %v147 = vld [vmem:[%s5 + $0x70] sm:$0xff]
    %v148 = vld [vmem:[%s5 + $0x78] sm:$0xff]
    %v149 = vld [vmem:[%s5 + $0x80] sm:$0xff]
    %v150 = vld [vmem:[%s5 + $0x88] sm:$0xff]
    %v151 = vld [vmem:[%s5 + $0x90] sm:$0xff]
    %v152 = vld [vmem:[%s5 + $0x98] sm:$0xff]
    %v153 = vld [vmem:[%s5 + $0xa0] sm:$0xff]
    %v154 = vld [vmem:[%s5 + $0xa8] sm:$0xff]
    %v155 = vld [vmem:[%s5 + $0xb0] sm:$0xff]
    %v156 = vld [vmem:[%s5 + $0xb8] sm:$0xff]
    %v157 = vld [vmem:[%s5 + $0xc0] sm:$0xff]
    %v158 = vld [vmem:[%s5 + $0xc8] sm:$0xff]
    %v159 = vld [vmem:[%s5 + $0xd0] sm:$0xff]
    %v160 = vld [vmem:[%s5 + $0xd8] sm:$0xff]
    %v161 = vld [vmem:[%s5 + $0xe0] sm:$0xff]
    %v162 = vld [vmem:[%s5 + $0xe8] sm:$0xff]
    %v163 = vld [vmem:[%s5 + $0xf0] sm:$0xff]
    %v164 = vld [vmem:[%s5 + $0xf8] sm:$0xff]
    %v165 = vld [vmem:[%s5 + $0x100] sm:$0xff]
    %v166 = vld [vmem:[%s5 + $0x108] sm:$0xff]
    %v167 = vld [vmem:[%s5 + $0x110] sm:$0xff]
    %v168 = vld [vmem:[%s5 + $0x118] sm:$0xff]
    %v169 = vld [vmem:[%s5 + $0x120] sm:$0xff]
    %v170 = vld [vmem:[%s5 + $0x128] sm:$0xff]
    %v171 = vld [vmem:[%s5 + $0x130] sm:$0xff]
    %v172 = vld [vmem:[%s5 + $0x138] sm:$0xff]
    %v173 = vld [vmem:[%s5 + $0x140] sm:$0xff]
    %v174 = vld [vmem:[%s5 + $0x148] sm:$0xff]
    %v175 = vld [vmem:[%s5 + $0x150] sm:$0xff]
    %v176 = vld [vmem:[%s5 + $0x158] sm:$0xff]
    %v177 = vld [vmem:[%s5 + $0x160] sm:$0xff]
    %v178 = vld [vmem:[%s5 + $0x168] sm:$0xff]
    %v179 = vld [vmem:[%s5 + $0x170] sm:$0xff]
    %v180 = vld [vmem:[%s5 + $0x178] sm:$0xff]
    %v181 = vld [vmem:[%s5 + $0x180] sm:$0xff]
    %v182 = vld [vmem:[%s5 + $0x188] sm:$0xff]
    %v183 = vld [vmem:[%s5 + $0x190] sm:$0xff]
    %v184 = vld [vmem:[%s5 + $0x198] sm:$0xff]
    %v185 = vld [vmem:[%s5 + $0x1a0] sm:$0xff]
    %v186 = vld [vmem:[%s5 + $0x1a8] sm:$0xff]
    %v187 = vld [vmem:[%s5 + $0x1b0] sm:$0xff]
    %v188 = vld [vmem:[%s5 + $0x1b8] sm:$0xff]
    %v189 = vld [vmem:[%s5 + $0x1c0] sm:$0xff]
    %v190 = vld [vmem:[%s5 + $0x1c8] sm:$0xff]
    %v191 = vld [vmem:[%s5 + $0x1d0] sm:$0xff]
    %v192 = vld [vmem:[%s5 + $0x1d8] sm:$0xff]
    %v193 = vld [vmem:[%s5 + $0x1e0] sm:$0xff]
    %v194 = vld [vmem:[%s5 + $0x1e8] sm:$0xff]
    %v195 = vld [vmem:[%s5 + $0x1f0] sm:$0xff]
    %v196 = vld [vmem:[%s5 + $0x1f8] sm:$0xff]
    %v197 = vld [vmem:[%s6] sm:$0xff]
    %v198 = vld [vmem:[%s7] sm:$0xff]
    %v199 = vld [vmem:[%s8] sm:$0xff]
    %v200 = vld [vmem:[%s0] sm:$0xff]
    %v201 = vld [vmem:[%s0 + $0x8] sm:$0xff]
    %s202 = scalar_lea.vmem %s0, 16
    %v203 = vld [vmem:[%s202] sm:$0xff]
    %v204 = vld [vmem:[%s202 + $0x8] sm:$0xff]
    %vm205 = vcmask 130048
    %v207 = vsel %vm205, %v33, 0
    %v210 = vsel %vm205, %v34, 0
    %v213 = vsel %vm205, %v35, 0
    %v216 = vsel %vm205, %v36, 0
    %v219 = vsel %vm205, %v37, 0
    %v222 = vsel %vm205, %v38, 0
    %v225 = vsel %vm205, %v39, 0
    %v228 = vsel %vm205, %v40, 0
    %v231 = vsel %vm205, %v41, 0
    %v234 = vsel %vm205, %v42, 0
    %v237 = vsel %vm205, %v43, 0
    %v240 = vsel %vm205, %v44, 0
    %v243 = vsel %vm205, %v45, 0
    %v246 = vsel %vm205, %v46, 0
    %v249 = vsel %vm205, %v47, 0
    %v252 = vsel %vm205, %v48, 0
    %v255 = vsel %vm205, %v49, 0
    %v258 = vsel %vm205, %v50, 0
    %v261 = vsel %vm205, %v51, 0
    %v264 = vsel %vm205, %v52, 0
    %v267 = vsel %vm205, %v53, 0
    %v270 = vsel %vm205, %v54, 0
    %v273 = vsel %vm205, %v55, 0
    %v276 = vsel %vm205, %v56, 0
    %v279 = vsel %vm205, %v57, 0
    %v282 = vsel %vm205, %v58, 0
    %v285 = vsel %vm205, %v59, 0
    %v288 = vsel %vm205, %v60, 0
    %v291 = vsel %vm205, %v61, 0
    %v294 = vsel %vm205, %v62, 0
    %v297 = vsel %vm205, %v63, 0
    %v300 = vsel %vm205, %v64, 0
    %302 = vmatprep.subr.mxu0 0.0
    %303 = vmatpush1.msra.mxu0 0.0
    %304 = vmatprep.subr.mxu0 0.0
    %305 = vmatpush1.msra.mxu0 0.0
    %306 = vmatprep.subr.mxu0 0.0
    %307 = vmatpush1.msra.mxu0 0.0
    %308 = vmatprep.subr.mxu0 0.0
    %309 = vmatpush1.msra.mxu0 0.0
    %310 = vmatprep.subr.mxu0 0.0
    %311 = vmatpush1.msra.mxu0 0.0
    %312 = vmatprep.subr.mxu0 0.0
    %313 = vmatpush1.msra.mxu0 0.0
    %314 = vmatprep.subr.mxu0 0.0
    %315 = vmatpush1.msra.mxu0 0.0
    %316 = vmatprep.subr.mxu0 0.0
    %317 = vmatpush1.msra.mxu0 0.0
    %318 = vmatprep.subr.mxu0 0.0
    %319 = vmatpush1.msra.mxu0 0.0
    %320 = vmatprep.subr.mxu0 0.0
    %321 = vmatpush1.msra.mxu0 0.0
    %322 = vmatprep.subr.mxu0 0.0
    %323 = vmatpush1.msra.mxu0 0.0
    %324 = vmatprep.subr.mxu0 0.0
    %325 = vmatpush1.msra.mxu0 0.0
    %326 = vmatprep.subr.mxu0 0.0
    %327 = vmatpush1.msra.mxu0 0.0
    %328 = vmatprep.subr.mxu0 0.0
    %329 = vmatpush1.msra.mxu0 0.0
    %330 = vmatprep.subr.mxu0 %v204
    %331 = vmatpush1.msra.mxu0 %v203
    %332 = vmatprep.subr.mxu0 %v201
    %333 = vmatpush1.msra.mxu0 %v200
    %334 = vmatprep.subr.mxu0 0.0
    %335 = vmatpush2.msra.mxu0 0.0
    %336 = vmatprep.subr.mxu0 0.0
    %337 = vmatpush2.msra.mxu0 0.0
    %338 = vmatprep.subr.mxu0 0.0
    %339 = vmatpush2.msra.mxu0 0.0
    %340 = vmatprep.subr.mxu0 0.0
    %341 = vmatpush2.msra.mxu0 0.0
    %342 = vmatprep.subr.mxu0 0.0
    %343 = vmatpush2.msra.mxu0 0.0
    %344 = vmatprep.subr.mxu0 0.0
    %345 = vmatpush2.msra.mxu0 0.0
    %346 = vmatprep.subr.mxu0 0.0
    %347 = vmatpush2.msra.mxu0 0.0
    %348 = vmatprep.subr.mxu0 0.0
    %349 = vmatpush2.msra.mxu0 0.0
    %350 = vmatprep.subr.mxu0 0.0
    %351 = vmatpush2.msra.mxu0 0.0
    %352 = vmatprep.subr.mxu0 0.0
    %353 = vmatpush2.msra.mxu0 0.0
    %354 = vmatprep.subr.mxu0 0.0
    %355 = vmatpush2.msra.mxu0 0.0
    %356 = vmatprep.subr.mxu0 0.0
    %357 = vmatpush2.msra.mxu0 0.0
    %358 = vmatprep.subr.mxu0 0.0
    %359 = vmatpush2.msra.mxu0 0.0
    %360 = vmatprep.subr.mxu0 0.0
    %361 = vmatpush2.msra.mxu0 0.0
    %362 = vmatprep.subr.mxu0 0.0
    %363 = vmatpush2.msra.mxu0 0.0
    %364 = vmatprep.subr.mxu0 0.0
    %365 = vmatpush2.msra.mxu0 0.0
    %366 = vmatprep.mubr.f32.mxu0 0.0
    %367 = vmatmul.mubr.f32.gmra.mxu0 %v207
    %v368 = vpop.f32.mrf.mxu0
    %v369 = vadd.f32 0.0, %v368
    %v370 = vpop.f32.mrf.mxu0
    %v371 = vadd.f32 0.0, %v370
    %372 = vmatprep.mubr.f32.mxu0 0.0
    %373 = vmatmul.mubr.f32.gmra.mxu0 %v210
    %v374 = vpop.f32.mrf.mxu0
    %v375 = vadd.f32 0.0, %v374
    %v376 = vpop.f32.mrf.mxu0
    %v377 = vadd.f32 0.0, %v376
    %378 = vmatprep.mubr.f32.mxu0 0.0
    %379 = vmatmul.mubr.f32.gmra.mxu0 %v213
    %v380 = vpop.f32.mrf.mxu0
    %v381 = vadd.f32 0.0, %v380
    %v382 = vpop.f32.mrf.mxu0
    %v383 = vadd.f32 0.0, %v382
    %384 = vmatprep.mubr.f32.mxu0 0.0
    %385 = vmatmul.mubr.f32.gmra.mxu0 %v216
    %v386 = vpop.f32.mrf.mxu0
    %v387 = vadd.f32 0.0, %v386
    %v388 = vpop.f32.mrf.mxu0
    %v389 = vadd.f32 0.0, %v388
    %390 = vmatprep.mubr.f32.mxu0 0.0
    %391 = vmatmul.mubr.f32.gmra.mxu0 %v219
    %v392 = vpop.f32.mrf.mxu0
    %v393 = vadd.f32 0.0, %v392
    %v394 = vpop.f32.mrf.mxu0
    %v395 = vadd.f32 0.0, %v394
    %396 = vmatprep.mubr.f32.mxu0 0.0
    %397 = vmatmul.mubr.f32.gmra.mxu0 %v222
    %v398 = vpop.f32.mrf.mxu0
    %v399 = vadd.f32 0.0, %v398
    %v400 = vpop.f32.mrf.mxu0
    %v401 = vadd.f32 0.0, %v400
    %402 = vmatprep.mubr.f32.mxu0 0.0
    %403 = vmatmul.mubr.f32.gmra.mxu0 %v225
    %v404 = vpop.f32.mrf.mxu0
    %v405 = vadd.f32 0.0, %v404
    %v406 = vpop.f32.mrf.mxu0
    %v407 = vadd.f32 0.0, %v406
    %408 = vmatprep.mubr.f32.mxu0 0.0
    %409 = vmatmul.mubr.f32.gmra.mxu0 %v228
    %v410 = vpop.f32.mrf.mxu0
    %v411 = vadd.f32 0.0, %v410
    %v412 = vpop.f32.mrf.mxu0
    %v413 = vadd.f32 0.0, %v412
    %414 = vmatprep.mubr.f32.mxu0 0.0
    %415 = vmatmul.mubr.f32.gmra.mxu0 %v231
    %v416 = vpop.f32.mrf.mxu0
    %v417 = vadd.f32 0.0, %v416
    %v418 = vpop.f32.mrf.mxu0
    %v419 = vadd.f32 0.0, %v418
    %420 = vmatprep.mubr.f32.mxu0 0.0
    %421 = vmatmul.mubr.f32.gmra.mxu0 %v234
    %v422 = vpop.f32.mrf.mxu0
    %v423 = vadd.f32 0.0, %v422
    %v424 = vpop.f32.mrf.mxu0
    %v425 = vadd.f32 0.0, %v424
    %426 = vmatprep.mubr.f32.mxu0 0.0
    %427 = vmatmul.mubr.f32.gmra.mxu0 %v237
    %v428 = vpop.f32.mrf.mxu0
    %v429 = vadd.f32 0.0, %v428
    %v430 = vpop.f32.mrf.mxu0
    %v431 = vadd.f32 0.0, %v430
    %432 = vmatprep.mubr.f32.mxu0 0.0
    %433 = vmatmul.mubr.f32.gmra.mxu0 %v240
    %v434 = vpop.f32.mrf.mxu0
    %v435 = vadd.f32 0.0, %v434
    %v436 = vpop.f32.mrf.mxu0
    %v437 = vadd.f32 0.0, %v436
    %438 = vmatprep.mubr.f32.mxu0 0.0
    %439 = vmatmul.mubr.f32.gmra.mxu0 %v243
    %v440 = vpop.f32.mrf.mxu0
    %v441 = vadd.f32 0.0, %v440
    %v442 = vpop.f32.mrf.mxu0
    %v443 = vadd.f32 0.0, %v442
    %444 = vmatprep.mubr.f32.mxu0 0.0
    %445 = vmatmul.mubr.f32.gmra.mxu0 %v246
    %v446 = vpop.f32.mrf.mxu0
    %v447 = vadd.f32 0.0, %v446
    %v448 = vpop.f32.mrf.mxu0
    %v449 = vadd.f32 0.0, %v448
    %450 = vmatprep.mubr.f32.mxu0 0.0
    %451 = vmatmul.mubr.f32.gmra.mxu0 %v249
    %v452 = vpop.f32.mrf.mxu0
    %v453 = vadd.f32 0.0, %v452
    %v454 = vpop.f32.mrf.mxu0
    %v455 = vadd.f32 0.0, %v454
    %456 = vmatprep.mubr.f32.mxu0 0.0
    %457 = vmatmul.mubr.f32.gmra.mxu0 %v252
    %v458 = vpop.f32.mrf.mxu0
    %v459 = vadd.f32 0.0, %v458
    %v460 = vpop.f32.mrf.mxu0
    %v461 = vadd.f32 0.0, %v460
    %462 = vmatprep.mubr.f32.mxu0 0.0
    %463 = vmatmul.mubr.f32.gmra.mxu0 %v255
    %v464 = vpop.f32.mrf.mxu0
    %v465 = vadd.f32 0.0, %v464
    %v466 = vpop.f32.mrf.mxu0
    %v467 = vadd.f32 0.0, %v466
    %468 = vmatprep.mubr.f32.mxu0 0.0
    %469 = vmatmul.mubr.f32.gmra.mxu0 %v258
    %v470 = vpop.f32.mrf.mxu0
    %v471 = vadd.f32 0.0, %v470
    %v472 = vpop.f32.mrf.mxu0
    %v473 = vadd.f32 0.0, %v472
    %474 = vmatprep.mubr.f32.mxu0 0.0
    %475 = vmatmul.mubr.f32.gmra.mxu0 %v261
    %v476 = vpop.f32.mrf.mxu0
    %v477 = vadd.f32 0.0, %v476
    %v478 = vpop.f32.mrf.mxu0
    %v479 = vadd.f32 0.0, %v478
    %480 = vmatprep.mubr.f32.mxu0 0.0
    %481 = vmatmul.mubr.f32.gmra.mxu0 %v264
    %v482 = vpop.f32.mrf.mxu0
    %v483 = vadd.f32 0.0, %v482
    %v484 = vpop.f32.mrf.mxu0
    %v485 = vadd.f32 0.0, %v484
    %486 = vmatprep.mubr.f32.mxu0 0.0
    %487 = vmatmul.mubr.f32.gmra.mxu0 %v267
    %v488 = vpop.f32.mrf.mxu0
    %v489 = vadd.f32 0.0, %v488
    %v490 = vpop.f32.mrf.mxu0
    %v491 = vadd.f32 0.0, %v490
    %492 = vmatprep.mubr.f32.mxu0 0.0
    %493 = vmatmul.mubr.f32.gmra.mxu0 %v270
    %v494 = vpop.f32.mrf.mxu0
    %v495 = vadd.f32 0.0, %v494
    %v496 = vpop.f32.mrf.mxu0
    %v497 = vadd.f32 0.0, %v496
    %498 = vmatprep.mubr.f32.mxu0 0.0
    %499 = vmatmul.mubr.f32.gmra.mxu0 %v273
    %v500 = vpop.f32.mrf.mxu0
    %v501 = vadd.f32 0.0, %v500
    %v502 = vpop.f32.mrf.mxu0
    %v503 = vadd.f32 0.0, %v502
    %504 = vmatprep.mubr.f32.mxu0 0.0
    %505 = vmatmul.mubr.f32.gmra.mxu0 %v276
    %v506 = vpop.f32.mrf.mxu0
    %v507 = vadd.f32 0.0, %v506
    %v508 = vpop.f32.mrf.mxu0
    %v509 = vadd.f32 0.0, %v508
    %510 = vmatprep.mubr.f32.mxu0 0.0
    %511 = vmatmul.mubr.f32.gmra.mxu0 %v279
    %v512 = vpop.f32.mrf.mxu0
    %v513 = vadd.f32 0.0, %v512
    %v514 = vpop.f32.mrf.mxu0
    %v515 = vadd.f32 0.0, %v514
    %516 = vmatprep.mubr.f32.mxu0 0.0
    %517 = vmatmul.mubr.f32.gmra.mxu0 %v282
    %v518 = vpop.f32.mrf.mxu0
    %v519 = vadd.f32 0.0, %v518
    %v520 = vpop.f32.mrf.mxu0
    %v521 = vadd.f32 0.0, %v520
    %522 = vmatprep.mubr.f32.mxu0 0.0
    %523 = vmatmul.mubr.f32.gmra.mxu0 %v285
    %v524 = vpop.f32.mrf.mxu0
    %v525 = vadd.f32 0.0, %v524
    %v526 = vpop.f32.mrf.mxu0
    %v527 = vadd.f32 0.0, %v526
    %528 = vmatprep.mubr.f32.mxu0 0.0
    %529 = vmatmul.mubr.f32.gmra.mxu0 %v288
    %v530 = vpop.f32.mrf.mxu0
    %v531 = vadd.f32 0.0, %v530
    %v532 = vpop.f32.mrf.mxu0
    %v533 = vadd.f32 0.0, %v532
    %534 = vmatprep.mubr.f32.mxu0 0.0
    %535 = vmatmul.mubr.f32.gmra.mxu0 %v291
    %v536 = vpop.f32.mrf.mxu0
    %v537 = vadd.f32 0.0, %v536
    %v538 = vpop.f32.mrf.mxu0
    %v539 = vadd.f32 0.0, %v538
    %540 = vmatprep.mubr.f32.mxu0 0.0
    %541 = vmatmul.mubr.f32.gmra.mxu0 %v294
    %v542 = vpop.f32.mrf.mxu0
    %v543 = vadd.f32 0.0, %v542
    %v544 = vpop.f32.mrf.mxu0
    %v545 = vadd.f32 0.0, %v544
    %546 = vmatprep.mubr.f32.mxu0 0.0
    %547 = vmatmul.mubr.f32.gmra.mxu0 %v297
    %v548 = vpop.f32.mrf.mxu0
    %v549 = vadd.f32 0.0, %v548
    %v550 = vpop.f32.mrf.mxu0
    %v551 = vadd.f32 0.0, %v550
    %552 = vmatprep.mubr.f32.mxu0 0.0
    %553 = vmatmul.mubr.f32.gmra.mxu0 %v300
    %v554 = vpop.f32.mrf.mxu0
    %v555 = vadd.f32 0.0, %v554
    %v556 = vpop.f32.mrf.mxu0
    %v557 = vadd.f32 0.0, %v556
    %558 = vdwg.mxu0
    %v560 = vsel %vm205, %v65, 0
    %v563 = vsel %vm205, %v66, 0
    %v566 = vsel %vm205, %v67, 0
    %v569 = vsel %vm205, %v68, 0
    %v572 = vsel %vm205, %v69, 0
    %v575 = vsel %vm205, %v70, 0
    %v578 = vsel %vm205, %v71, 0
    %v581 = vsel %vm205, %v72, 0
    %v584 = vsel %vm205, %v73, 0
    %v587 = vsel %vm205, %v74, 0
    %v590 = vsel %vm205, %v75, 0
    %v593 = vsel %vm205, %v76, 0
    %v596 = vsel %vm205, %v77, 0
    %v599 = vsel %vm205, %v78, 0
    %v602 = vsel %vm205, %v79, 0
    %v605 = vsel %vm205, %v80, 0
    %v608 = vsel %vm205, %v81, 0
    %v611 = vsel %vm205, %v82, 0
    %v614 = vsel %vm205, %v83, 0
    %v617 = vsel %vm205, %v84, 0
    %v620 = vsel %vm205, %v85, 0
    %v623 = vsel %vm205, %v86, 0
    %v626 = vsel %vm205, %v87, 0
    %v629 = vsel %vm205, %v88, 0
    %v632 = vsel %vm205, %v89, 0
    %v635 = vsel %vm205, %v90, 0
    %v638 = vsel %vm205, %v91, 0
    %v641 = vsel %vm205, %v92, 0
    %v644 = vsel %vm205, %v93, 0
    %v647 = vsel %vm205, %v94, 0
    %v650 = vsel %vm205, %v95, 0
    %v653 = vsel %vm205, %v96, 0
    %655 = vmatprep.subr.mxu0 0.0
    %656 = vmatpush1.msra.mxu0 0.0
    %657 = vmatprep.subr.mxu0 0.0
    %658 = vmatpush1.msra.mxu0 0.0
    %659 = vmatprep.subr.mxu0 0.0
    %660 = vmatpush1.msra.mxu0 0.0
    %661 = vmatprep.subr.mxu0 0.0
    %662 = vmatpush1.msra.mxu0 0.0
    %663 = vmatprep.subr.mxu0 0.0
    %664 = vmatpush1.msra.mxu0 0.0
    %665 = vmatprep.subr.mxu0 0.0
    %666 = vmatpush1.msra.mxu0 0.0
    %667 = vmatprep.subr.mxu0 0.0
    %668 = vmatpush1.msra.mxu0 0.0
    %669 = vmatprep.subr.mxu0 0.0
    %670 = vmatpush1.msra.mxu0 0.0
    %671 = vmatprep.subr.mxu0 0.0
    %672 = vmatpush1.msra.mxu0 0.0
    %673 = vmatprep.subr.mxu0 0.0
    %674 = vmatpush1.msra.mxu0 0.0
    %675 = vmatprep.subr.mxu0 0.0
    %676 = vmatpush1.msra.mxu0 0.0
    %677 = vmatprep.subr.mxu0 0.0
    %678 = vmatpush1.msra.mxu0 0.0
    %679 = vmatprep.subr.mxu0 0.0
    %680 = vmatpush1.msra.mxu0 0.0
    %681 = vmatprep.subr.mxu0 0.0
    %682 = vmatpush1.msra.mxu0 0.0
    %683 = vmatprep.subr.mxu0 %v204
    %684 = vmatpush1.msra.mxu0 %v203
    %685 = vmatprep.subr.mxu0 %v201
    %686 = vmatpush1.msra.mxu0 %v200
    %687 = vmatprep.subr.mxu0 0.0
    %688 = vmatpush2.msra.mxu0 0.0
    %689 = vmatprep.subr.mxu0 0.0
    %690 = vmatpush2.msra.mxu0 0.0
    %691 = vmatprep.subr.mxu0 0.0
    %692 = vmatpush2.msra.mxu0 0.0
    %693 = vmatprep.subr.mxu0 0.0
    %694 = vmatpush2.msra.mxu0 0.0
    %695 = vmatprep.subr.mxu0 0.0
    %696 = vmatpush2.msra.mxu0 0.0
    %697 = vmatprep.subr.mxu0 0.0
    %698 = vmatpush2.msra.mxu0 0.0
    %699 = vmatprep.subr.mxu0 0.0
    %700 = vmatpush2.msra.mxu0 0.0
    %701 = vmatprep.subr.mxu0 0.0
    %702 = vmatpush2.msra.mxu0 0.0
    %703 = vmatprep.subr.mxu0 0.0
    %704 = vmatpush2.msra.mxu0 0.0
    %705 = vmatprep.subr.mxu0 0.0
    %706 = vmatpush2.msra.mxu0 0.0
    %707 = vmatprep.subr.mxu0 0.0
    %708 = vmatpush2.msra.mxu0 0.0
    %709 = vmatprep.subr.mxu0 0.0
    %710 = vmatpush2.msra.mxu0 0.0
    %711 = vmatprep.subr.mxu0 0.0
    %712 = vmatpush2.msra.mxu0 0.0
    %713 = vmatprep.subr.mxu0 0.0
    %714 = vmatpush2.msra.mxu0 0.0
    %715 = vmatprep.subr.mxu0 0.0
    %716 = vmatpush2.msra.mxu0 0.0
    %717 = vmatprep.subr.mxu0 0.0
    %718 = vmatpush2.msra.mxu0 0.0
    %719 = vmatprep.mubr.f32.mxu0 0.0
    %720 = vmatmul.mubr.f32.gmra.mxu0 %v560
    %v721 = vpop.f32.mrf.mxu0
    %v722 = vadd.f32 0.0, %v721
    %v723 = vpop.f32.mrf.mxu0
    %v724 = vadd.f32 0.0, %v723
    %725 = vmatprep.mubr.f32.mxu0 0.0
    %726 = vmatmul.mubr.f32.gmra.mxu0 %v563
    %v727 = vpop.f32.mrf.mxu0
    %v728 = vadd.f32 0.0, %v727
    %v729 = vpop.f32.mrf.mxu0
    %v730 = vadd.f32 0.0, %v729
    %731 = vmatprep.mubr.f32.mxu0 0.0
    %732 = vmatmul.mubr.f32.gmra.mxu0 %v566
    %v733 = vpop.f32.mrf.mxu0
    %v734 = vadd.f32 0.0, %v733
    %v735 = vpop.f32.mrf.mxu0
    %v736 = vadd.f32 0.0, %v735
    %737 = vmatprep.mubr.f32.mxu0 0.0
    %738 = vmatmul.mubr.f32.gmra.mxu0 %v569
    %v739 = vpop.f32.mrf.mxu0
    %v740 = vadd.f32 0.0, %v739
    %v741 = vpop.f32.mrf.mxu0
    %v742 = vadd.f32 0.0, %v741
    %743 = vmatprep.mubr.f32.mxu0 0.0
    %744 = vmatmul.mubr.f32.gmra.mxu0 %v572
    %v745 = vpop.f32.mrf.mxu0
    %v746 = vadd.f32 0.0, %v745
    %v747 = vpop.f32.mrf.mxu0
    %v748 = vadd.f32 0.0, %v747
    %749 = vmatprep.mubr.f32.mxu0 0.0
    %750 = vmatmul.mubr.f32.gmra.mxu0 %v575
    %v751 = vpop.f32.mrf.mxu0
    %v752 = vadd.f32 0.0, %v751
    %v753 = vpop.f32.mrf.mxu0
    %v754 = vadd.f32 0.0, %v753
    %755 = vmatprep.mubr.f32.mxu0 0.0
    %756 = vmatmul.mubr.f32.gmra.mxu0 %v578
    %v757 = vpop.f32.mrf.mxu0
    %v758 = vadd.f32 0.0, %v757
    %v759 = vpop.f32.mrf.mxu0
    %v760 = vadd.f32 0.0, %v759
    %761 = vmatprep.mubr.f32.mxu0 0.0
    %762 = vmatmul.mubr.f32.gmra.mxu0 %v581
    %v763 = vpop.f32.mrf.mxu0
    %v764 = vadd.f32 0.0, %v763
    %v765 = vpop.f32.mrf.mxu0
    %v766 = vadd.f32 0.0, %v765
    %767 = vmatprep.mubr.f32.mxu0 0.0
    %768 = vmatmul.mubr.f32.gmra.mxu0 %v584
    %v769 = vpop.f32.mrf.mxu0
    %v770 = vadd.f32 0.0, %v769
    %v771 = vpop.f32.mrf.mxu0
    %v772 = vadd.f32 0.0, %v771
    %773 = vmatprep.mubr.f32.mxu0 0.0
    %774 = vmatmul.mubr.f32.gmra.mxu0 %v587
    %v775 = vpop.f32.mrf.mxu0
    %v776 = vadd.f32 0.0, %v775
    %v777 = vpop.f32.mrf.mxu0
    %v778 = vadd.f32 0.0, %v777
    %779 = vmatprep.mubr.f32.mxu0 0.0
    %780 = vmatmul.mubr.f32.gmra.mxu0 %v590
    %v781 = vpop.f32.mrf.mxu0
    %v782 = vadd.f32 0.0, %v781
    %v783 = vpop.f32.mrf.mxu0
    %v784 = vadd.f32 0.0, %v783
    %785 = vmatprep.mubr.f32.mxu0 0.0
    %786 = vmatmul.mubr.f32.gmra.mxu0 %v593
    %v787 = vpop.f32.mrf.mxu0
    %v788 = vadd.f32 0.0, %v787
    %v789 = vpop.f32.mrf.mxu0
    %v790 = vadd.f32 0.0, %v789
    %791 = vmatprep.mubr.f32.mxu0 0.0
    %792 = vmatmul.mubr.f32.gmra.mxu0 %v596
    %v793 = vpop.f32.mrf.mxu0
    %v794 = vadd.f32 0.0, %v793
    %v795 = vpop.f32.mrf.mxu0
    %v796 = vadd.f32 0.0, %v795
    %797 = vmatprep.mubr.f32.mxu0 0.0
    %798 = vmatmul.mubr.f32.gmra.mxu0 %v599
    %v799 = vpop.f32.mrf.mxu0
    %v800 = vadd.f32 0.0, %v799
    %v801 = vpop.f32.mrf.mxu0
    %v802 = vadd.f32 0.0, %v801
    %803 = vmatprep.mubr.f32.mxu0 0.0
    %804 = vmatmul.mubr.f32.gmra.mxu0 %v602
    %v805 = vpop.f32.mrf.mxu0
    %v806 = vadd.f32 0.0, %v805
    %v807 = vpop.f32.mrf.mxu0
    %v808 = vadd.f32 0.0, %v807
    %809 = vmatprep.mubr.f32.mxu0 0.0
    %810 = vmatmul.mubr.f32.gmra.mxu0 %v605
    %v811 = vpop.f32.mrf.mxu0
    %v812 = vadd.f32 0.0, %v811
    %v813 = vpop.f32.mrf.mxu0
    %v814 = vadd.f32 0.0, %v813
    %815 = vmatprep.mubr.f32.mxu0 0.0
    %816 = vmatmul.mubr.f32.gmra.mxu0 %v608
    %v817 = vpop.f32.mrf.mxu0
    %v818 = vadd.f32 0.0, %v817
    %v819 = vpop.f32.mrf.mxu0
    %v820 = vadd.f32 0.0, %v819
    %821 = vmatprep.mubr.f32.mxu0 0.0
    %822 = vmatmul.mubr.f32.gmra.mxu0 %v611
    %v823 = vpop.f32.mrf.mxu0
    %v824 = vadd.f32 0.0, %v823
    %v825 = vpop.f32.mrf.mxu0
    %v826 = vadd.f32 0.0, %v825
    %827 = vmatprep.mubr.f32.mxu0 0.0
    %828 = vmatmul.mubr.f32.gmra.mxu0 %v614
    %v829 = vpop.f32.mrf.mxu0
    %v830 = vadd.f32 0.0, %v829
    %v831 = vpop.f32.mrf.mxu0
    %v832 = vadd.f32 0.0, %v831
    %833 = vmatprep.mubr.f32.mxu0 0.0
    %834 = vmatmul.mubr.f32.gmra.mxu0 %v617
    %v835 = vpop.f32.mrf.mxu0
    %v836 = vadd.f32 0.0, %v835
    %v837 = vpop.f32.mrf.mxu0
    %v838 = vadd.f32 0.0, %v837
    %839 = vmatprep.mubr.f32.mxu0 0.0
    %840 = vmatmul.mubr.f32.gmra.mxu0 %v620
    %v841 = vpop.f32.mrf.mxu0
    %v842 = vadd.f32 0.0, %v841
    %v843 = vpop.f32.mrf.mxu0
    %v844 = vadd.f32 0.0, %v843
    %845 = vmatprep.mubr.f32.mxu0 0.0
    %846 = vmatmul.mubr.f32.gmra.mxu0 %v623
    %v847 = vpop.f32.mrf.mxu0
    %v848 = vadd.f32 0.0, %v847
    %v849 = vpop.f32.mrf.mxu0
    %v850 = vadd.f32 0.0, %v849
    %851 = vmatprep.mubr.f32.mxu0 0.0
    %852 = vmatmul.mubr.f32.gmra.mxu0 %v626
    %v853 = vpop.f32.mrf.mxu0
    %v854 = vadd.f32 0.0, %v853
    %v855 = vpop.f32.mrf.mxu0
    %v856 = vadd.f32 0.0, %v855
    %857 = vmatprep.mubr.f32.mxu0 0.0
    %858 = vmatmul.mubr.f32.gmra.mxu0 %v629
    %v859 = vpop.f32.mrf.mxu0
    %v860 = vadd.f32 0.0, %v859
    %v861 = vpop.f32.mrf.mxu0
    %v862 = vadd.f32 0.0, %v861
    %863 = vmatprep.mubr.f32.mxu0 0.0
    %864 = vmatmul.mubr.f32.gmra.mxu0 %v632
    %v865 = vpop.f32.mrf.mxu0
    %v866 = vadd.f32 0.0, %v865
    %v867 = vpop.f32.mrf.mxu0
    %v868 = vadd.f32 0.0, %v867
    %869 = vmatprep.mubr.f32.mxu0 0.0
    %870 = vmatmul.mubr.f32.gmra.mxu0 %v635
    %v871 = vpop.f32.mrf.mxu0
    %v872 = vadd.f32 0.0, %v871
    %v873 = vpop.f32.mrf.mxu0
    %v874 = vadd.f32 0.0, %v873
    %875 = vmatprep.mubr.f32.mxu0 0.0
    %876 = vmatmul.mubr.f32.gmra.mxu0 %v638
    %v877 = vpop.f32.mrf.mxu0
    %v878 = vadd.f32 0.0, %v877
    %v879 = vpop.f32.mrf.mxu0
    %v880 = vadd.f32 0.0, %v879
    %881 = vmatprep.mubr.f32.mxu0 0.0
    %882 = vmatmul.mubr.f32.gmra.mxu0 %v641
    %v883 = vpop.f32.mrf.mxu0
    %v884 = vadd.f32 0.0, %v883
    %v885 = vpop.f32.mrf.mxu0
    %v886 = vadd.f32 0.0, %v885
    %887 = vmatprep.mubr.f32.mxu0 0.0
    %888 = vmatmul.mubr.f32.gmra.mxu0 %v644
    %v889 = vpop.f32.mrf.mxu0
    %v890 = vadd.f32 0.0, %v889
    %v891 = vpop.f32.mrf.mxu0
    %v892 = vadd.f32 0.0, %v891
    %893 = vmatprep.mubr.f32.mxu0 0.0
    %894 = vmatmul.mubr.f32.gmra.mxu0 %v647
    %v895 = vpop.f32.mrf.mxu0
    %v896 = vadd.f32 0.0, %v895
    %v897 = vpop.f32.mrf.mxu0
    %v898 = vadd.f32 0.0, %v897
    %899 = vmatprep.mubr.f32.mxu0 0.0
    %900 = vmatmul.mubr.f32.gmra.mxu0 %v650
    %v901 = vpop.f32.mrf.mxu0
    %v902 = vadd.f32 0.0, %v901
    %v903 = vpop.f32.mrf.mxu0
    %v904 = vadd.f32 0.0, %v903
    %905 = vmatprep.mubr.f32.mxu0 0.0
    %906 = vmatmul.mubr.f32.gmra.mxu0 %v653
    %v907 = vpop.f32.mrf.mxu0
    %v908 = vadd.f32 0.0, %v907
    %v909 = vpop.f32.mrf.mxu0
    %v910 = vadd.f32 0.0, %v909
    %911 = vdwg.mxu0
    %v913 = vsel %vm205, %v97, 0
    %v916 = vsel %vm205, %v98, 0
    %v919 = vsel %vm205, %v99, 0
    %v922 = vsel %vm205, %v100, 0
    %v925 = vsel %vm205, %v101, 0
    %v928 = vsel %vm205, %v102, 0
    %v931 = vsel %vm205, %v103, 0
    %v934 = vsel %vm205, %v104, 0
    %v937 = vsel %vm205, %v105, 0
    %v940 = vsel %vm205, %v106, 0
    %v943 = vsel %vm205, %v107, 0
    %v946 = vsel %vm205, %v108, 0
    %v949 = vsel %vm205, %v109, 0
    %v952 = vsel %vm205, %v110, 0
    %v955 = vsel %vm205, %v111, 0
    %v958 = vsel %vm205, %v112, 0
    %v961 = vsel %vm205, %v113, 0
    %v964 = vsel %vm205, %v114, 0
    %v967 = vsel %vm205, %v115, 0
    %v970 = vsel %vm205, %v116, 0
    %v973 = vsel %vm205, %v117, 0
    %v976 = vsel %vm205, %v118, 0
    %v979 = vsel %vm205, %v119, 0
    %v982 = vsel %vm205, %v120, 0
    %v985 = vsel %vm205, %v121, 0
    %v988 = vsel %vm205, %v122, 0
    %v991 = vsel %vm205, %v123, 0
    %v994 = vsel %vm205, %v124, 0
    %v997 = vsel %vm205, %v125, 0
    %v1000 = vsel %vm205, %v126, 0
    %v1003 = vsel %vm205, %v127, 0
    %v1006 = vsel %vm205, %v128, 0
    %1008 = vmatprep.subr.mxu0 0.0
    %1009 = vmatpush1.msra.mxu0 0.0
    %1010 = vmatprep.subr.mxu0 0.0
    %1011 = vmatpush1.msra.mxu0 0.0
    %1012 = vmatprep.subr.mxu0 0.0
    %1013 = vmatpush1.msra.mxu0 0.0
    %1014 = vmatprep.subr.mxu0 0.0
    %1015 = vmatpush1.msra.mxu0 0.0
    %1016 = vmatprep.subr.mxu0 0.0
    %1017 = vmatpush1.msra.mxu0 0.0
    %1018 = vmatprep.subr.mxu0 0.0
    %1019 = vmatpush1.msra.mxu0 0.0
    %1020 = vmatprep.subr.mxu0 0.0
    %1021 = vmatpush1.msra.mxu0 0.0
    %1022 = vmatprep.subr.mxu0 0.0
    %1023 = vmatpush1.msra.mxu0 0.0
    %1024 = vmatprep.subr.mxu0 0.0
    %1025 = vmatpush1.msra.mxu0 0.0
    %1026 = vmatprep.subr.mxu0 0.0
    %1027 = vmatpush1.msra.mxu0 0.0
    %1028 = vmatprep.subr.mxu0 0.0
    %1029 = vmatpush1.msra.mxu0 0.0
    %1030 = vmatprep.subr.mxu0 0.0
    %1031 = vmatpush1.msra.mxu0 0.0
    %1032 = vmatprep.subr.mxu0 0.0
    %1033 = vmatpush1.msra.mxu0 0.0
    %1034 = vmatprep.subr.mxu0 0.0
    %1035 = vmatpush1.msra.mxu0 0.0
    %1036 = vmatprep.subr.mxu0 %v204
    %1037 = vmatpush1.msra.mxu0 %v203
    %1038 = vmatprep.subr.mxu0 %v201
    %1039 = vmatpush1.msra.mxu0 %v200
    %1040 = vmatprep.subr.mxu0 0.0
    %1041 = vmatpush2.msra.mxu0 0.0
    %1042 = vmatprep.subr.mxu0 0.0
    %1043 = vmatpush2.msra.mxu0 0.0
    %1044 = vmatprep.subr.mxu0 0.0
    %1045 = vmatpush2.msra.mxu0 0.0
    %1046 = vmatprep.subr.mxu0 0.0
    %1047 = vmatpush2.msra.mxu0 0.0
    %1048 = vmatprep.subr.mxu0 0.0
    %1049 = vmatpush2.msra.mxu0 0.0
    %1050 = vmatprep.subr.mxu0 0.0
    %1051 = vmatpush2.msra.mxu0 0.0
    %1052 = vmatprep.subr.mxu0 0.0
    %1053 = vmatpush2.msra.mxu0 0.0
    %1054 = vmatprep.subr.mxu0 0.0
    %1055 = vmatpush2.msra.mxu0 0.0
    %1056 = vmatprep.subr.mxu0 0.0
    %1057 = vmatpush2.msra.mxu0 0.0
    %1058 = vmatprep.subr.mxu0 0.0
    %1059 = vmatpush2.msra.mxu0 0.0
    %1060 = vmatprep.subr.mxu0 0.0
    %1061 = vmatpush2.msra.mxu0 0.0
    %1062 = vmatprep.subr.mxu0 0.0
    %1063 = vmatpush2.msra.mxu0 0.0
    %1064 = vmatprep.subr.mxu0 0.0
    %1065 = vmatpush2.msra.mxu0 0.0
    %1066 = vmatprep.subr.mxu0 0.0
    %1067 = vmatpush2.msra.mxu0 0.0
    %1068 = vmatprep.subr.mxu0 0.0
    %1069 = vmatpush2.msra.mxu0 0.0
    %1070 = vmatprep.subr.mxu0 0.0
    %1071 = vmatpush2.msra.mxu0 0.0
    %1072 = vmatprep.mubr.f32.mxu0 0.0
    %1073 = vmatmul.mubr.f32.gmra.mxu0 %v913
    %v1074 = vpop.f32.mrf.mxu0
    %v1075 = vadd.f32 0.0, %v1074
    %v1076 = vpop.f32.mrf.mxu0
    %v1077 = vadd.f32 0.0, %v1076
    %1078 = vmatprep.mubr.f32.mxu0 0.0
    %1079 = vmatmul.mubr.f32.gmra.mxu0 %v916
    %v1080 = vpop.f32.mrf.mxu0
    %v1081 = vadd.f32 0.0, %v1080
    %v1082 = vpop.f32.mrf.mxu0
    %v1083 = vadd.f32 0.0, %v1082
    %1084 = vmatprep.mubr.f32.mxu0 0.0
    %1085 = vmatmul.mubr.f32.gmra.mxu0 %v919
    %v1086 = vpop.f32.mrf.mxu0
    %v1087 = vadd.f32 0.0, %v1086
    %v1088 = vpop.f32.mrf.mxu0
    %v1089 = vadd.f32 0.0, %v1088
    %1090 = vmatprep.mubr.f32.mxu0 0.0
    %1091 = vmatmul.mubr.f32.gmra.mxu0 %v922
    %v1092 = vpop.f32.mrf.mxu0
    %v1093 = vadd.f32 0.0, %v1092
    %v1094 = vpop.f32.mrf.mxu0
    %v1095 = vadd.f32 0.0, %v1094
    %1096 = vmatprep.mubr.f32.mxu0 0.0
    %1097 = vmatmul.mubr.f32.gmra.mxu0 %v925
    %v1098 = vpop.f32.mrf.mxu0
    %v1099 = vadd.f32 0.0, %v1098
    %v1100 = vpop.f32.mrf.mxu0
    %v1101 = vadd.f32 0.0, %v1100
    %1102 = vmatprep.mubr.f32.mxu0 0.0
    %1103 = vmatmul.mubr.f32.gmra.mxu0 %v928
    %v1104 = vpop.f32.mrf.mxu0
    %v1105 = vadd.f32 0.0, %v1104
    %v1106 = vpop.f32.mrf.mxu0
    %v1107 = vadd.f32 0.0, %v1106
    %1108 = vmatprep.mubr.f32.mxu0 0.0
    %1109 = vmatmul.mubr.f32.gmra.mxu0 %v931
    %v1110 = vpop.f32.mrf.mxu0
    %v1111 = vadd.f32 0.0, %v1110
    %v1112 = vpop.f32.mrf.mxu0
    %v1113 = vadd.f32 0.0, %v1112
    %1114 = vmatprep.mubr.f32.mxu0 0.0
    %1115 = vmatmul.mubr.f32.gmra.mxu0 %v934
    %v1116 = vpop.f32.mrf.mxu0
    %v1117 = vadd.f32 0.0, %v1116
    %v1118 = vpop.f32.mrf.mxu0
    %v1119 = vadd.f32 0.0, %v1118
    %1120 = vmatprep.mubr.f32.mxu0 0.0
    %1121 = vmatmul.mubr.f32.gmra.mxu0 %v937
    %v1122 = vpop.f32.mrf.mxu0
    %v1123 = vadd.f32 0.0, %v1122
    %v1124 = vpop.f32.mrf.mxu0
    %v1125 = vadd.f32 0.0, %v1124
    %1126 = vmatprep.mubr.f32.mxu0 0.0
    %1127 = vmatmul.mubr.f32.gmra.mxu0 %v940
    %v1128 = vpop.f32.mrf.mxu0
    %v1129 = vadd.f32 0.0, %v1128
    %v1130 = vpop.f32.mrf.mxu0
    %v1131 = vadd.f32 0.0, %v1130
    %1132 = vmatprep.mubr.f32.mxu0 0.0
    %1133 = vmatmul.mubr.f32.gmra.mxu0 %v943
    %v1134 = vpop.f32.mrf.mxu0
    %v1135 = vadd.f32 0.0, %v1134
    %v1136 = vpop.f32.mrf.mxu0
    %v1137 = vadd.f32 0.0, %v1136
    %1138 = vmatprep.mubr.f32.mxu0 0.0
    %1139 = vmatmul.mubr.f32.gmra.mxu0 %v946
    %v1140 = vpop.f32.mrf.mxu0
    %v1141 = vadd.f32 0.0, %v1140
    %v1142 = vpop.f32.mrf.mxu0
    %v1143 = vadd.f32 0.0, %v1142
    %1144 = vmatprep.mubr.f32.mxu0 0.0
    %1145 = vmatmul.mubr.f32.gmra.mxu0 %v949
    %v1146 = vpop.f32.mrf.mxu0
    %v1147 = vadd.f32 0.0, %v1146
    %v1148 = vpop.f32.mrf.mxu0
    %v1149 = vadd.f32 0.0, %v1148
    %1150 = vmatprep.mubr.f32.mxu0 0.0
    %1151 = vmatmul.mubr.f32.gmra.mxu0 %v952
    %v1152 = vpop.f32.mrf.mxu0
    %v1153 = vadd.f32 0.0, %v1152
    %v1154 = vpop.f32.mrf.mxu0
    %v1155 = vadd.f32 0.0, %v1154
    %1156 = vmatprep.mubr.f32.mxu0 0.0
    %1157 = vmatmul.mubr.f32.gmra.mxu0 %v955
    %v1158 = vpop.f32.mrf.mxu0
    %v1159 = vadd.f32 0.0, %v1158
    %v1160 = vpop.f32.mrf.mxu0
    %v1161 = vadd.f32 0.0, %v1160
    %1162 = vmatprep.mubr.f32.mxu0 0.0
    %1163 = vmatmul.mubr.f32.gmra.mxu0 %v958
    %v1164 = vpop.f32.mrf.mxu0
    %v1165 = vadd.f32 0.0, %v1164
    %v1166 = vpop.f32.mrf.mxu0
    %v1167 = vadd.f32 0.0, %v1166
    %1168 = vmatprep.mubr.f32.mxu0 0.0
    %1169 = vmatmul.mubr.f32.gmra.mxu0 %v961
    %v1170 = vpop.f32.mrf.mxu0
    %v1171 = vadd.f32 0.0, %v1170
    %v1172 = vpop.f32.mrf.mxu0
    %v1173 = vadd.f32 0.0, %v1172
    %1174 = vmatprep.mubr.f32.mxu0 0.0
    %1175 = vmatmul.mubr.f32.gmra.mxu0 %v964
    %v1176 = vpop.f32.mrf.mxu0
    %v1177 = vadd.f32 0.0, %v1176
    %v1178 = vpop.f32.mrf.mxu0
    %v1179 = vadd.f32 0.0, %v1178
    %1180 = vmatprep.mubr.f32.mxu0 0.0
    %1181 = vmatmul.mubr.f32.gmra.mxu0 %v967
    %v1182 = vpop.f32.mrf.mxu0
    %v1183 = vadd.f32 0.0, %v1182
    %v1184 = vpop.f32.mrf.mxu0
    %v1185 = vadd.f32 0.0, %v1184
    %1186 = vmatprep.mubr.f32.mxu0 0.0
    %1187 = vmatmul.mubr.f32.gmra.mxu0 %v970
    %v1188 = vpop.f32.mrf.mxu0
    %v1189 = vadd.f32 0.0, %v1188
    %v1190 = vpop.f32.mrf.mxu0
    %v1191 = vadd.f32 0.0, %v1190
    %1192 = vmatprep.mubr.f32.mxu0 0.0
    %1193 = vmatmul.mubr.f32.gmra.mxu0 %v973
    %v1194 = vpop.f32.mrf.mxu0
    %v1195 = vadd.f32 0.0, %v1194
    %v1196 = vpop.f32.mrf.mxu0
    %v1197 = vadd.f32 0.0, %v1196
    %1198 = vmatprep.mubr.f32.mxu0 0.0
    %1199 = vmatmul.mubr.f32.gmra.mxu0 %v976
    %v1200 = vpop.f32.mrf.mxu0
    %v1201 = vadd.f32 0.0, %v1200
    %v1202 = vpop.f32.mrf.mxu0
    %v1203 = vadd.f32 0.0, %v1202
    %1204 = vmatprep.mubr.f32.mxu0 0.0
    %1205 = vmatmul.mubr.f32.gmra.mxu0 %v979
    %v1206 = vpop.f32.mrf.mxu0
    %v1207 = vadd.f32 0.0, %v1206
    %v1208 = vpop.f32.mrf.mxu0
    %v1209 = vadd.f32 0.0, %v1208
    %1210 = vmatprep.mubr.f32.mxu0 0.0
    %1211 = vmatmul.mubr.f32.gmra.mxu0 %v982
    %v1212 = vpop.f32.mrf.mxu0
    %v1213 = vadd.f32 0.0, %v1212
    %v1214 = vpop.f32.mrf.mxu0
    %v1215 = vadd.f32 0.0, %v1214
    %1216 = vmatprep.mubr.f32.mxu0 0.0
    %1217 = vmatmul.mubr.f32.gmra.mxu0 %v985
    %v1218 = vpop.f32.mrf.mxu0
    %v1219 = vadd.f32 0.0, %v1218
    %v1220 = vpop.f32.mrf.mxu0
    %v1221 = vadd.f32 0.0, %v1220
    %1222 = vmatprep.mubr.f32.mxu0 0.0
    %1223 = vmatmul.mubr.f32.gmra.mxu0 %v988
    %v1224 = vpop.f32.mrf.mxu0
    %v1225 = vadd.f32 0.0, %v1224
    %v1226 = vpop.f32.mrf.mxu0
    %v1227 = vadd.f32 0.0, %v1226
    %1228 = vmatprep.mubr.f32.mxu0 0.0
    %1229 = vmatmul.mubr.f32.gmra.mxu0 %v991
    %v1230 = vpop.f32.mrf.mxu0
    %v1231 = vadd.f32 0.0, %v1230
    %v1232 = vpop.f32.mrf.mxu0
    %v1233 = vadd.f32 0.0, %v1232
    %1234 = vmatprep.mubr.f32.mxu0 0.0
    %1235 = vmatmul.mubr.f32.gmra.mxu0 %v994
    %v1236 = vpop.f32.mrf.mxu0
    %v1237 = vadd.f32 0.0, %v1236
    %v1238 = vpop.f32.mrf.mxu0
    %v1239 = vadd.f32 0.0, %v1238
    %1240 = vmatprep.mubr.f32.mxu0 0.0
    %1241 = vmatmul.mubr.f32.gmra.mxu0 %v997
    %v1242 = vpop.f32.mrf.mxu0
    %v1243 = vadd.f32 0.0, %v1242
    %v1244 = vpop.f32.mrf.mxu0
    %v1245 = vadd.f32 0.0, %v1244
    %1246 = vmatprep.mubr.f32.mxu0 0.0
    %1247 = vmatmul.mubr.f32.gmra.mxu0 %v1000
    %v1248 = vpop.f32.mrf.mxu0
    %v1249 = vadd.f32 0.0, %v1248
    %v1250 = vpop.f32.mrf.mxu0
    %v1251 = vadd.f32 0.0, %v1250
    %1252 = vmatprep.mubr.f32.mxu0 0.0
    %1253 = vmatmul.mubr.f32.gmra.mxu0 %v1003
    %v1254 = vpop.f32.mrf.mxu0
    %v1255 = vadd.f32 0.0, %v1254
    %v1256 = vpop.f32.mrf.mxu0
    %v1257 = vadd.f32 0.0, %v1256
    %1258 = vmatprep.mubr.f32.mxu0 0.0
    %1259 = vmatmul.mubr.f32.gmra.mxu0 %v1006
    %v1260 = vpop.f32.mrf.mxu0
    %v1261 = vadd.f32 0.0, %v1260
    %v1262 = vpop.f32.mrf.mxu0
    %v1263 = vadd.f32 0.0, %v1262
    %1264 = vdwg.mxu0
    %v1265 = vmax.f32 %v369, %v375
    %v1266 = vmax.f32 %v1265, %v381
    %v1267 = vmax.f32 %v1266, %v387
    %v1268 = vrot.slane %v1267, 4
    %v1269 = vmax.f32 %v1267, %v1268
    %v1270 = vrot.slane %v1269, 2
    %v1271 = vmax.f32 %v1269, %v1270
    %v1272 = vrot.slane %v1271, 1
    %v1273 = vmax.f32 %v1271, %v1272
    %v1274 = vmax.f32 %v371, %v377
    %v1275 = vmax.f32 %v1274, %v383
    %v1276 = vmax.f32 %v1275, %v389
    %v1277 = vrot.slane %v1276, 4
    %v1278 = vmax.f32 %v1276, %v1277
    %v1279 = vrot.slane %v1278, 2
    %v1280 = vmax.f32 %v1278, %v1279
    %v1281 = vrot.slane %v1280, 1
    %v1282 = vmax.f32 %v1280, %v1281
    %v1283 = vmax.f32 %v393, %v399
    %v1284 = vmax.f32 %v1283, %v405
    %v1285 = vmax.f32 %v1284, %v411
    %v1286 = vrot.slane %v1285, 4
    %v1287 = vmax.f32 %v1285, %v1286
    %v1288 = vrot.slane %v1287, 2
    %v1289 = vmax.f32 %v1287, %v1288
    %v1290 = vrot.slane %v1289, 1
    %v1291 = vmax.f32 %v1289, %v1290
    %v1292 = vmax.f32 %v395, %v401
    %v1293 = vmax.f32 %v1292, %v407
    %v1294 = vmax.f32 %v1293, %v413
    %v1295 = vrot.slane %v1294, 4
    %v1296 = vmax.f32 %v1294, %v1295
    %v1297 = vrot.slane %v1296, 2
    %v1298 = vmax.f32 %v1296, %v1297
    %v1299 = vrot.slane %v1298, 1
    %v1300 = vmax.f32 %v1298, %v1299
    %v1301 = vmax.f32 %v417, %v423
    %v1302 = vmax.f32 %v1301, %v429
    %v1303 = vmax.f32 %v1302, %v435
    %v1304 = vrot.slane %v1303, 4
    %v1305 = vmax.f32 %v1303, %v1304
    %v1306 = vrot.slane %v1305, 2
    %v1307 = vmax.f32 %v1305, %v1306
    %v1308 = vrot.slane %v1307, 1
    %v1309 = vmax.f32 %v1307, %v1308
    %v1310 = vmax.f32 %v419, %v425
    %v1311 = vmax.f32 %v1310, %v431
    %v1312 = vmax.f32 %v1311, %v437
    %v1313 = vrot.slane %v1312, 4
    %v1314 = vmax.f32 %v1312, %v1313
    %v1315 = vrot.slane %v1314, 2
    %v1316 = vmax.f32 %v1314, %v1315
    %v1317 = vrot.slane %v1316, 1
    %v1318 = vmax.f32 %v1316, %v1317
    %v1319 = vmax.f32 %v441, %v447
    %v1320 = vmax.f32 %v1319, %v453
    %v1321 = vmax.f32 %v1320, %v459
    %v1322 = vrot.slane %v1321, 4
    %v1323 = vmax.f32 %v1321, %v1322
    %v1324 = vrot.slane %v1323, 2
    %v1325 = vmax.f32 %v1323, %v1324
    %v1326 = vrot.slane %v1325, 1
    %v1327 = vmax.f32 %v1325, %v1326
    %v1328 = vmax.f32 %v443, %v449
    %v1329 = vmax.f32 %v1328, %v455
    %v1330 = vmax.f32 %v1329, %v461
    %v1331 = vrot.slane %v1330, 4
    %v1332 = vmax.f32 %v1330, %v1331
    %v1333 = vrot.slane %v1332, 2
    %v1334 = vmax.f32 %v1332, %v1333
    %v1335 = vrot.slane %v1334, 1
    %v1336 = vmax.f32 %v1334, %v1335
    %v1337 = vmax.f32 %v465, %v471
    %v1338 = vmax.f32 %v1337, %v477
    %v1339 = vmax.f32 %v1338, %v483
    %v1340 = vrot.slane %v1339, 4
    %v1341 = vmax.f32 %v1339, %v1340
    %v1342 = vrot.slane %v1341, 2
    %v1343 = vmax.f32 %v1341, %v1342
    %v1344 = vrot.slane %v1343, 1
    %v1345 = vmax.f32 %v1343, %v1344
    %v1346 = vmax.f32 %v467, %v473
    %v1347 = vmax.f32 %v1346, %v479
    %v1348 = vmax.f32 %v1347, %v485
    %v1349 = vrot.slane %v1348, 4
    %v1350 = vmax.f32 %v1348, %v1349
    %v1351 = vrot.slane %v1350, 2
    %v1352 = vmax.f32 %v1350, %v1351
    %v1353 = vrot.slane %v1352, 1
    %v1354 = vmax.f32 %v1352, %v1353
    %v1355 = vmax.f32 %v489, %v495
    %v1356 = vmax.f32 %v1355, %v501
    %v1357 = vmax.f32 %v1356, %v507
    %v1358 = vrot.slane %v1357, 4
    %v1359 = vmax.f32 %v1357, %v1358
    %v1360 = vrot.slane %v1359, 2
    %v1361 = vmax.f32 %v1359, %v1360
    %v1362 = vrot.slane %v1361, 1
    %v1363 = vmax.f32 %v1361, %v1362
    %v1364 = vmax.f32 %v491, %v497
    %v1365 = vmax.f32 %v1364, %v503
    %v1366 = vmax.f32 %v1365, %v509
    %v1367 = vrot.slane %v1366, 4
    %v1368 = vmax.f32 %v1366, %v1367
    %v1369 = vrot.slane %v1368, 2
    %v1370 = vmax.f32 %v1368, %v1369
    %v1371 = vrot.slane %v1370, 1
    %v1372 = vmax.f32 %v1370, %v1371
    %v1373 = vmax.f32 %v513, %v519
    %v1374 = vmax.f32 %v1373, %v525
    %v1375 = vmax.f32 %v1374, %v531
    %v1376 = vrot.slane %v1375, 4
    %v1377 = vmax.f32 %v1375, %v1376
    %v1378 = vrot.slane %v1377, 2
    %v1379 = vmax.f32 %v1377, %v1378
    %v1380 = vrot.slane %v1379, 1
    %v1381 = vmax.f32 %v1379, %v1380
    %v1382 = vmax.f32 %v515, %v521
    %v1383 = vmax.f32 %v1382, %v527
    %v1384 = vmax.f32 %v1383, %v533
    %v1385 = vrot.slane %v1384, 4
    %v1386 = vmax.f32 %v1384, %v1385
    %v1387 = vrot.slane %v1386, 2
    %v1388 = vmax.f32 %v1386, %v1387
    %v1389 = vrot.slane %v1388, 1
    %v1390 = vmax.f32 %v1388, %v1389
    %v1391 = vmax.f32 %v537, %v543
    %v1392 = vmax.f32 %v1391, %v549
    %v1393 = vmax.f32 %v1392, %v555
    %v1394 = vrot.slane %v1393, 4
    %v1395 = vmax.f32 %v1393, %v1394
    %v1396 = vrot.slane %v1395, 2
    %v1397 = vmax.f32 %v1395, %v1396
    %v1398 = vrot.slane %v1397, 1
    %v1399 = vmax.f32 %v1397, %v1398
    %v1400 = vmax.f32 %v539, %v545
    %v1401 = vmax.f32 %v1400, %v551
    %v1402 = vmax.f32 %v1401, %v557
    %v1403 = vrot.slane %v1402, 4
    %v1404 = vmax.f32 %v1402, %v1403
    %v1405 = vrot.slane %v1404, 2
    %v1406 = vmax.f32 %v1404, %v1405
    %v1407 = vrot.slane %v1406, 1
    %v1408 = vmax.f32 %v1406, %v1407
    %v1409 = vsub.f32 %v369, %v1273
    %v1410 = vsub.f32 %v371, %v1282
    %v1411 = vsub.f32 %v375, %v1273
    %v1412 = vsub.f32 %v377, %v1282
    %v1413 = vsub.f32 %v381, %v1273
    %v1414 = vsub.f32 %v383, %v1282
    %v1415 = vsub.f32 %v387, %v1273
    %v1416 = vsub.f32 %v389, %v1282
    %v1417 = vsub.f32 %v393, %v1291
    %v1418 = vsub.f32 %v395, %v1300
    %v1419 = vsub.f32 %v399, %v1291
    %v1420 = vsub.f32 %v401, %v1300
    %v1421 = vsub.f32 %v405, %v1291
    %v1422 = vsub.f32 %v407, %v1300
    %v1423 = vsub.f32 %v411, %v1291
    %v1424 = vsub.f32 %v413, %v1300
    %v1425 = vsub.f32 %v417, %v1309
    %v1426 = vsub.f32 %v419, %v1318
    %v1427 = vsub.f32 %v423, %v1309
    %v1428 = vsub.f32 %v425, %v1318
    %v1429 = vsub.f32 %v429, %v1309
    %v1430 = vsub.f32 %v431, %v1318
    %v1431 = vsub.f32 %v435, %v1309
    %v1432 = vsub.f32 %v437, %v1318
    %v1433 = vsub.f32 %v441, %v1327
    %v1434 = vsub.f32 %v443, %v1336
    %v1435 = vsub.f32 %v447, %v1327
    %v1436 = vsub.f32 %v449, %v1336
    %v1437 = vsub.f32 %v453, %v1327
    %v1438 = vsub.f32 %v455, %v1336
    %v1439 = vsub.f32 %v459, %v1327
    %v1440 = vsub.f32 %v461, %v1336
    %v1441 = vsub.f32 %v465, %v1345
    %v1442 = vsub.f32 %v467, %v1354
    %v1443 = vsub.f32 %v471, %v1345
    %v1444 = vsub.f32 %v473, %v1354
    %v1445 = vsub.f32 %v477, %v1345
    %v1446 = vsub.f32 %v479, %v1354
    %v1447 = vsub.f32 %v483, %v1345
    %v1448 = vsub.f32 %v485, %v1354
    %v1449 = vsub.f32 %v489, %v1363
    %v1450 = vsub.f32 %v491, %v1372
    %v1451 = vsub.f32 %v495, %v1363
    %v1452 = vsub.f32 %v497, %v1372
    %v1453 = vsub.f32 %v501, %v1363
    %v1454 = vsub.f32 %v503, %v1372
    %v1455 = vsub.f32 %v507, %v1363
    %v1456 = vsub.f32 %v509, %v1372
    %v1457 = vsub.f32 %v513, %v1381
    %v1458 = vsub.f32 %v515, %v1390
    %v1459 = vsub.f32 %v519, %v1381
    %v1460 = vsub.f32 %v521, %v1390
    %v1461 = vsub.f32 %v525, %v1381
    %v1462 = vsub.f32 %v527, %v1390
    %v1463 = vsub.f32 %v531, %v1381
    %v1464 = vsub.f32 %v533, %v1390
    %v1465 = vsub.f32 %v537, %v1399
    %v1466 = vsub.f32 %v539, %v1408
    %v1467 = vsub.f32 %v543, %v1399
    %v1468 = vsub.f32 %v545, %v1408
    %v1469 = vsub.f32 %v549, %v1399
    %v1470 = vsub.f32 %v551, %v1408
    %v1471 = vsub.f32 %v555, %v1399
    %v1472 = vsub.f32 %v557, %v1408
    %v1473 = vmul.f32 %v1409, 1.442695
    %v1474 = vpow.pop %v1473
    %v1475 = vmul.f32 %v1410, 1.442695
    %v1476 = vpow.pop %v1475
    %v1477 = vmul.f32 %v1411, 1.442695
    %v1478 = vpow.pop %v1477
    %v1479 = vmul.f32 %v1412, 1.442695
    %v1480 = vpow.pop %v1479
    %v1481 = vmul.f32 %v1413, 1.442695
    %v1482 = vpow.pop %v1481
    %v1483 = vmul.f32 %v1414, 1.442695
    %v1484 = vpow.pop %v1483
    %v1485 = vmul.f32 %v1415, 1.442695
    %v1486 = vpow.pop %v1485
    %v1487 = vmul.f32 %v1416, 1.442695
    %v1488 = vpow.pop %v1487
    %v1489 = vmul.f32 %v1417, 1.442695
    %v1490 = vpow.pop %v1489
    %v1491 = vmul.f32 %v1418, 1.442695
    %v1492 = vpow.pop %v1491
    %v1493 = vmul.f32 %v1419, 1.442695
    %v1494 = vpow.pop %v1493
    %v1495 = vmul.f32 %v1420, 1.442695
    %v1496 = vpow.pop %v1495
    %v1497 = vmul.f32 %v1421, 1.442695
    %v1498 = vpow.pop %v1497
    %v1499 = vmul.f32 %v1422, 1.442695
    %v1500 = vpow.pop %v1499
    %v1501 = vmul.f32 %v1423, 1.442695
    %v1502 = vpow.pop %v1501
    %v1503 = vmul.f32 %v1424, 1.442695
    %v1504 = vpow.pop %v1503
    %v1505 = vmul.f32 %v1425, 1.442695
    %v1506 = vpow.pop %v1505
    %v1507 = vmul.f32 %v1426, 1.442695
    %v1508 = vpow.pop %v1507
    %v1509 = vmul.f32 %v1427, 1.442695
    %v1510 = vpow.pop %v1509
    %v1511 = vmul.f32 %v1428, 1.442695
    %v1512 = vpow.pop %v1511
    %v1513 = vmul.f32 %v1429, 1.442695
    %v1514 = vpow.pop %v1513
    %v1515 = vmul.f32 %v1430, 1.442695
    %v1516 = vpow.pop %v1515
    %v1517 = vmul.f32 %v1431, 1.442695
    %v1518 = vpow.pop %v1517
    %v1519 = vmul.f32 %v1432, 1.442695
    %v1520 = vpow.pop %v1519
    %v1521 = vmul.f32 %v1433, 1.442695
    %v1522 = vpow.pop %v1521
    %v1523 = vmul.f32 %v1434, 1.442695
    %v1524 = vpow.pop %v1523
    %v1525 = vmul.f32 %v1435, 1.442695
    %v1526 = vpow.pop %v1525
    %v1527 = vmul.f32 %v1436, 1.442695
    %v1528 = vpow.pop %v1527
    %v1529 = vmul.f32 %v1437, 1.442695
    %v1530 = vpow.pop %v1529
    %v1531 = vmul.f32 %v1438, 1.442695
    %v1532 = vpow.pop %v1531
    %v1533 = vmul.f32 %v1439, 1.442695
    %v1534 = vpow.pop %v1533
    %v1535 = vmul.f32 %v1440, 1.442695
    %v1536 = vpow.pop %v1535
    %v1537 = vmul.f32 %v1441, 1.442695
    %v1538 = vpow.pop %v1537
    %v1539 = vmul.f32 %v1442, 1.442695
    %v1540 = vpow.pop %v1539
    %v1541 = vmul.f32 %v1443, 1.442695
    %v1542 = vpow.pop %v1541
    %v1543 = vmul.f32 %v1444, 1.442695
    %v1544 = vpow.pop %v1543
    %v1545 = vmul.f32 %v1445, 1.442695
    %v1546 = vpow.pop %v1545
    %v1547 = vmul.f32 %v1446, 1.442695
    %v1548 = vpow.pop %v1547
    %v1549 = vmul.f32 %v1447, 1.442695
    %v1550 = vpow.pop %v1549
    %v1551 = vmul.f32 %v1448, 1.442695
    %v1552 = vpow.pop %v1551
    %v1553 = vmul.f32 %v1449, 1.442695
    %v1554 = vpow.pop %v1553
    %v1555 = vmul.f32 %v1450, 1.442695
    %v1556 = vpow.pop %v1555
    %v1557 = vmul.f32 %v1451, 1.442695
    %v1558 = vpow.pop %v1557
    %v1559 = vmul.f32 %v1452, 1.442695
    %v1560 = vpow.pop %v1559
    %v1561 = vmul.f32 %v1453, 1.442695
    %v1562 = vpow.pop %v1561
    %v1563 = vmul.f32 %v1454, 1.442695
    %v1564 = vpow.pop %v1563
    %v1565 = vmul.f32 %v1455, 1.442695
    %v1566 = vpow.pop %v1565
    %v1567 = vmul.f32 %v1456, 1.442695
    %v1568 = vpow.pop %v1567
    %v1569 = vmul.f32 %v1457, 1.442695
    %v1570 = vpow.pop %v1569
    %v1571 = vmul.f32 %v1458, 1.442695
    %v1572 = vpow.pop %v1571
    %v1573 = vmul.f32 %v1459, 1.442695
    %v1574 = vpow.pop %v1573
    %v1575 = vmul.f32 %v1460, 1.442695
    %v1576 = vpow.pop %v1575
    %v1577 = vmul.f32 %v1461, 1.442695
    %v1578 = vpow.pop %v1577
    %v1579 = vmul.f32 %v1462, 1.442695
    %v1580 = vpow.pop %v1579
    %v1581 = vmul.f32 %v1463, 1.442695
    %v1582 = vpow.pop %v1581
    %v1583 = vmul.f32 %v1464, 1.442695
    %v1584 = vpow.pop %v1583
    %v1585 = vmul.f32 %v1465, 1.442695
    %v1586 = vpow.pop %v1585
    %v1587 = vmul.f32 %v1466, 1.442695
    %v1588 = vpow.pop %v1587
    %v1589 = vmul.f32 %v1467, 1.442695
    %v1590 = vpow.pop %v1589
    %v1591 = vmul.f32 %v1468, 1.442695
    %v1592 = vpow.pop %v1591
    %v1593 = vmul.f32 %v1469, 1.442695
    %v1594 = vpow.pop %v1593
    %v1595 = vmul.f32 %v1470, 1.442695
    %v1596 = vpow.pop %v1595
    %v1597 = vmul.f32 %v1471, 1.442695
    %v1598 = vpow.pop %v1597
    %v1599 = vmul.f32 %v1472, 1.442695
    %v1600 = vpow.pop %v1599
    %v1601 = vadd.f32 %v1474, %v1478
    %v1602 = vadd.f32 %v1601, %v1482
    %v1603 = vadd.f32 %v1602, %v1486
    %v1604 = vrot.slane %v1603, 4
    %v1605 = vadd.f32 %v1603, %v1604
    %v1606 = vrot.slane %v1605, 2
    %v1607 = vadd.f32 %v1605, %v1606
    %v1608 = vrot.slane %v1607, 1
    %v1609 = vadd.f32 %v1607, %v1608
    %v1610 = vadd.f32 %v1476, %v1480
    %v1611 = vadd.f32 %v1610, %v1484
    %v1612 = vadd.f32 %v1611, %v1488
    %v1613 = vrot.slane %v1612, 4
    %v1614 = vadd.f32 %v1612, %v1613
    %v1615 = vrot.slane %v1614, 2
    %v1616 = vadd.f32 %v1614, %v1615
    %v1617 = vrot.slane %v1616, 1
    %v1618 = vadd.f32 %v1616, %v1617
    %v1619 = vadd.f32 %v1490, %v1494
    %v1620 = vadd.f32 %v1619, %v1498
    %v1621 = vadd.f32 %v1620, %v1502
    %v1622 = vrot.slane %v1621, 4
    %v1623 = vadd.f32 %v1621, %v1622
    %v1624 = vrot.slane %v1623, 2
    %v1625 = vadd.f32 %v1623, %v1624
    %v1626 = vrot.slane %v1625, 1
    %v1627 = vadd.f32 %v1625, %v1626
    %v1628 = vadd.f32 %v1492, %v1496
    %v1629 = vadd.f32 %v1628, %v1500
    %v1630 = vadd.f32 %v1629, %v1504
    %v1631 = vrot.slane %v1630, 4
    %v1632 = vadd.f32 %v1630, %v1631
    %v1633 = vrot.slane %v1632, 2
    %v1634 = vadd.f32 %v1632, %v1633
    %v1635 = vrot.slane %v1634, 1
    %v1636 = vadd.f32 %v1634, %v1635
    %v1637 = vadd.f32 %v1506, %v1510
    %v1638 = vadd.f32 %v1637, %v1514
    %v1639 = vadd.f32 %v1638, %v1518
    %v1640 = vrot.slane %v1639, 4
    %v1641 = vadd.f32 %v1639, %v1640
    %v1642 = vrot.slane %v1641, 2
    %v1643 = vadd.f32 %v1641, %v1642
    %v1644 = vrot.slane %v1643, 1
    %v1645 = vadd.f32 %v1643, %v1644
    %v1646 = vadd.f32 %v1508, %v1512
    %v1647 = vadd.f32 %v1646, %v1516
    %v1648 = vadd.f32 %v1647, %v1520
    %v1649 = vrot.slane %v1648, 4
    %v1650 = vadd.f32 %v1648, %v1649
    %v1651 = vrot.slane %v1650, 2
    %v1652 = vadd.f32 %v1650, %v1651
    %v1653 = vrot.slane %v1652, 1
    %v1654 = vadd.f32 %v1652, %v1653
    %v1655 = vadd.f32 %v1522, %v1526
    %v1656 = vadd.f32 %v1655, %v1530
    %v1657 = vadd.f32 %v1656, %v1534
    %v1658 = vrot.slane %v1657, 4
    %v1659 = vadd.f32 %v1657, %v1658
    %v1660 = vrot.slane %v1659, 2
    %v1661 = vadd.f32 %v1659, %v1660
    %v1662 = vrot.slane %v1661, 1
    %v1663 = vadd.f32 %v1661, %v1662
    %v1664 = vadd.f32 %v1524, %v1528
    %v1665 = vadd.f32 %v1664, %v1532
    %v1666 = vadd.f32 %v1665, %v1536
    %v1667 = vrot.slane %v1666, 4
    %v1668 = vadd.f32 %v1666, %v1667
    %v1669 = vrot.slane %v1668, 2
    %v1670 = vadd.f32 %v1668, %v1669
    %v1671 = vrot.slane %v1670, 1
    %v1672 = vadd.f32 %v1670, %v1671
    %v1673 = vadd.f32 %v1538, %v1542
    %v1674 = vadd.f32 %v1673, %v1546
    %v1675 = vadd.f32 %v1674, %v1550
    %v1676 = vrot.slane %v1675, 4
    %v1677 = vadd.f32 %v1675, %v1676
    %v1678 = vrot.slane %v1677, 2
    %v1679 = vadd.f32 %v1677, %v1678
    %v1680 = vrot.slane %v1679, 1
    %v1681 = vadd.f32 %v1679, %v1680
    %v1682 = vadd.f32 %v1540, %v1544
    %v1683 = vadd.f32 %v1682, %v1548
    %v1684 = vadd.f32 %v1683, %v1552
    %v1685 = vrot.slane %v1684, 4
    %v1686 = vadd.f32 %v1684, %v1685
    %v1687 = vrot.slane %v1686, 2
    %v1688 = vadd.f32 %v1686, %v1687
    %v1689 = vrot.slane %v1688, 1
    %v1690 = vadd.f32 %v1688, %v1689
    %v1691 = vadd.f32 %v1554, %v1558
    %v1692 = vadd.f32 %v1691, %v1562
    %v1693 = vadd.f32 %v1692, %v1566
    %v1694 = vrot.slane %v1693, 4
    %v1695 = vadd.f32 %v1693, %v1694
    %v1696 = vrot.slane %v1695, 2
    %v1697 = vadd.f32 %v1695, %v1696
    %v1698 = vrot.slane %v1697, 1
    %v1699 = vadd.f32 %v1697, %v1698
    %v1700 = vadd.f32 %v1556, %v1560
    %v1701 = vadd.f32 %v1700, %v1564
    %v1702 = vadd.f32 %v1701, %v1568
    %v1703 = vrot.slane %v1702, 4
    %v1704 = vadd.f32 %v1702, %v1703
    %v1705 = vrot.slane %v1704, 2
    %v1706 = vadd.f32 %v1704, %v1705
    %v1707 = vrot.slane %v1706, 1
    %v1708 = vadd.f32 %v1706, %v1707
    %v1709 = vadd.f32 %v1570, %v1574
    %v1710 = vadd.f32 %v1709, %v1578
    %v1711 = vadd.f32 %v1710, %v1582
    %v1712 = vrot.slane %v1711, 4
    %v1713 = vadd.f32 %v1711, %v1712
    %v1714 = vrot.slane %v1713, 2
    %v1715 = vadd.f32 %v1713, %v1714
    %v1716 = vrot.slane %v1715, 1
    %v1717 = vadd.f32 %v1715, %v1716
    %v1718 = vadd.f32 %v1572, %v1576
    %v1719 = vadd.f32 %v1718, %v1580
    %v1720 = vadd.f32 %v1719, %v1584
    %v1721 = vrot.slane %v1720, 4
    %v1722 = vadd.f32 %v1720, %v1721
    %v1723 = vrot.slane %v1722, 2
    %v1724 = vadd.f32 %v1722, %v1723
    %v1725 = vrot.slane %v1724, 1
    %v1726 = vadd.f32 %v1724, %v1725
    %v1727 = vadd.f32 %v1586, %v1590
    %v1728 = vadd.f32 %v1727, %v1594
    %v1729 = vadd.f32 %v1728, %v1598
    %v1730 = vrot.slane %v1729, 4
    %v1731 = vadd.f32 %v1729, %v1730
    %v1732 = vrot.slane %v1731, 2
    %v1733 = vadd.f32 %v1731, %v1732
    %v1734 = vrot.slane %v1733, 1
    %v1735 = vadd.f32 %v1733, %v1734
    %v1736 = vadd.f32 %v1588, %v1592
    %v1737 = vadd.f32 %v1736, %v1596
    %v1738 = vadd.f32 %v1737, %v1600
    %v1739 = vrot.slane %v1738, 4
    %v1740 = vadd.f32 %v1738, %v1739
    %v1741 = vrot.slane %v1740, 2
    %v1742 = vadd.f32 %v1740, %v1741
    %v1743 = vrot.slane %v1742, 1
    %v1744 = vadd.f32 %v1742, %v1743
    %v1745 = vrcp.pop %v1609
    %v1746 = vrcp.pop %v1618
    %v1747 = vrcp.pop %v1627
    %v1748 = vrcp.pop %v1636
    %v1749 = vrcp.pop %v1645
    %v1750 = vrcp.pop %v1654
    %v1751 = vrcp.pop %v1663
    %v1752 = vrcp.pop %v1672
    %v1753 = vrcp.pop %v1681
    %v1754 = vrcp.pop %v1690
    %v1755 = vrcp.pop %v1699
    %v1756 = vrcp.pop %v1708
    %v1757 = vrcp.pop %v1717
    %v1758 = vrcp.pop %v1726
    %v1759 = vrcp.pop %v1735
    %v1760 = vrcp.pop %v1744
    %v1761 = vmul.f32 %v1745, 0.17677669
    %v1762 = vmul.f32 %v1746, 0.17677669
    %v1763 = vmul.f32 %v1747, 0.17677669
    %v1764 = vmul.f32 %v1748, 0.17677669
    %v1765 = vmul.f32 %v1749, 0.17677669
    %v1766 = vmul.f32 %v1750, 0.17677669
    %v1767 = vmul.f32 %v1751, 0.17677669
    %v1768 = vmul.f32 %v1752, 0.17677669
    %v1769 = vmul.f32 %v1753, 0.17677669
    %v1770 = vmul.f32 %v1754, 0.17677669
    %v1771 = vmul.f32 %v1755, 0.17677669
    %v1772 = vmul.f32 %v1756, 0.17677669
    %v1773 = vmul.f32 %v1757, 0.17677669
    %v1774 = vmul.f32 %v1758, 0.17677669
    %v1775 = vmul.f32 %v1759, 0.17677669
    %v1776 = vmul.f32 %v1760, 0.17677669
    %v1777 = vmul.f32 %v1474, %v1761
    %v1778 = vmul.f32 %v1476, %v1762
    %v1779 = vmul.f32 %v1478, %v1761
    %v1780 = vmul.f32 %v1480, %v1762
    %v1781 = vmul.f32 %v1482, %v1761
    %v1782 = vmul.f32 %v1484, %v1762
    %v1783 = vmul.f32 %v1486, %v1761
    %v1784 = vmul.f32 %v1488, %v1762
    %v1785 = vmul.f32 %v1490, %v1763
    %v1786 = vmul.f32 %v1492, %v1764
    %v1787 = vmul.f32 %v1494, %v1763
    %v1788 = vmul.f32 %v1496, %v1764
    %v1789 = vmul.f32 %v1498, %v1763
    %v1790 = vmul.f32 %v1500, %v1764
    %v1791 = vmul.f32 %v1502, %v1763
    %v1792 = vmul.f32 %v1504, %v1764
    %v1793 = vmul.f32 %v1506, %v1765
    %v1794 = vmul.f32 %v1508, %v1766
    %v1795 = vmul.f32 %v1510, %v1765
    %v1796 = vmul.f32 %v1512, %v1766
    %v1797 = vmul.f32 %v1514, %v1765
    %v1798 = vmul.f32 %v1516, %v1766
    %v1799 = vmul.f32 %v1518, %v1765
    %v1800 = vmul.f32 %v1520, %v1766
    %v1801 = vmul.f32 %v1522, %v1767
    %v1802 = vmul.f32 %v1524, %v1768
    %v1803 = vmul.f32 %v1526, %v1767
    %v1804 = vmul.f32 %v1528, %v1768
    %v1805 = vmul.f32 %v1530, %v1767
    %v1806 = vmul.f32 %v1532, %v1768
    %v1807 = vmul.f32 %v1534, %v1767
    %v1808 = vmul.f32 %v1536, %v1768
    %v1809 = vmul.f32 %v1538, %v1769
    %v1810 = vmul.f32 %v1540, %v1770
    %v1811 = vmul.f32 %v1542, %v1769
    %v1812 = vmul.f32 %v1544, %v1770
    %v1813 = vmul.f32 %v1546, %v1769
    %v1814 = vmul.f32 %v1548, %v1770
    %v1815 = vmul.f32 %v1550, %v1769
    %v1816 = vmul.f32 %v1552, %v1770
    %v1817 = vmul.f32 %v1554, %v1771
    %v1818 = vmul.f32 %v1556, %v1772
    %v1819 = vmul.f32 %v1558, %v1771
    %v1820 = vmul.f32 %v1560, %v1772
    %v1821 = vmul.f32 %v1562, %v1771
    %v1822 = vmul.f32 %v1564, %v1772
    %v1823 = vmul.f32 %v1566, %v1771
    %v1824 = vmul.f32 %v1568, %v1772
    %v1825 = vmul.f32 %v1570, %v1773
    %v1826 = vmul.f32 %v1572, %v1774
    %v1827 = vmul.f32 %v1574, %v1773
    %v1828 = vmul.f32 %v1576, %v1774
    %v1829 = vmul.f32 %v1578, %v1773
    %v1830 = vmul.f32 %v1580, %v1774
    %v1831 = vmul.f32 %v1582, %v1773
    %v1832 = vmul.f32 %v1584, %v1774
    %v1833 = vmul.f32 %v1586, %v1775
    %v1834 = vmul.f32 %v1588, %v1776
    %v1835 = vmul.f32 %v1590, %v1775
    %v1836 = vmul.f32 %v1592, %v1776
    %v1837 = vmul.f32 %v1594, %v1775
    %v1838 = vmul.f32 %v1596, %v1776
    %v1839 = vmul.f32 %v1598, %v1775
    %v1840 = vmul.f32 %v1600, %v1776
    %v1841 = vmax.f32 %v722, %v724
    %1842 = vmax.xlane.f32.xlu0 %v1841
    %v1843 = vpop.xlane.xlu0 %1842
    %v1844 = vmax.f32 %v728, %v730
    %1845 = vmax.xlane.f32.xlu0 %v1844
    %v1846 = vpop.xlane.xlu0 %1845
    %v1847 = vmax.f32 %v734, %v736
    %1848 = vmax.xlane.f32.xlu0 %v1847
    %v1849 = vpop.xlane.xlu0 %1848
    %v1850 = vmax.f32 %v740, %v742
    %1851 = vmax.xlane.f32.xlu0 %v1850
    %v1852 = vpop.xlane.xlu0 %1851
    %v1853 = vmax.f32 %v746, %v748
    %1854 = vmax.xlane.f32.xlu0 %v1853
    %v1855 = vpop.xlane.xlu0 %1854
    %v1856 = vmax.f32 %v752, %v754
    %1857 = vmax.xlane.f32.xlu0 %v1856
    %v1858 = vpop.xlane.xlu0 %1857
    %v1859 = vmax.f32 %v758, %v760
    %1860 = vmax.xlane.f32.xlu0 %v1859
    %v1861 = vpop.xlane.xlu0 %1860
    %v1862 = vmax.f32 %v764, %v766
    %1863 = vmax.xlane.f32.xlu0 %v1862
    %v1864 = vpop.xlane.xlu0 %1863
    %v1865 = vmax.f32 %v770, %v772
    %1866 = vmax.xlane.f32.xlu0 %v1865
    %v1867 = vpop.xlane.xlu0 %1866
    %v1868 = vmax.f32 %v776, %v778
    %1869 = vmax.xlane.f32.xlu0 %v1868
    %v1870 = vpop.xlane.xlu0 %1869
    %v1871 = vmax.f32 %v782, %v784
    %1872 = vmax.xlane.f32.xlu0 %v1871
    %v1873 = vpop.xlane.xlu0 %1872
    %v1874 = vmax.f32 %v788, %v790
    %1875 = vmax.xlane.f32.xlu0 %v1874
    %v1876 = vpop.xlane.xlu0 %1875
    %v1877 = vmax.f32 %v794, %v796
    %1878 = vmax.xlane.f32.xlu0 %v1877
    %v1879 = vpop.xlane.xlu0 %1878
    %v1880 = vmax.f32 %v800, %v802
    %1881 = vmax.xlane.f32.xlu0 %v1880
    %v1882 = vpop.xlane.xlu0 %1881
    %v1883 = vmax.f32 %v806, %v808
    %1884 = vmax.xlane.f32.xlu0 %v1883
    %v1885 = vpop.xlane.xlu0 %1884
    %v1886 = vmax.f32 %v812, %v814
    %1887 = vmax.xlane.f32.xlu0 %v1886
    %v1888 = vpop.xlane.xlu0 %1887
    %v1889 = vmax.f32 %v818, %v820
    %1890 = vmax.xlane.f32.xlu0 %v1889
    %v1891 = vpop.xlane.xlu0 %1890
    %v1892 = vmax.f32 %v824, %v826
    %1893 = vmax.xlane.f32.xlu0 %v1892
    %v1894 = vpop.xlane.xlu0 %1893
    %v1895 = vmax.f32 %v830, %v832
    %1896 = vmax.xlane.f32.xlu0 %v1895
    %v1897 = vpop.xlane.xlu0 %1896
    %v1898 = vmax.f32 %v836, %v838
    %1899 = vmax.xlane.f32.xlu0 %v1898
    %v1900 = vpop.xlane.xlu0 %1899
    %v1901 = vmax.f32 %v842, %v844
    %1902 = vmax.xlane.f32.xlu0 %v1901
    %v1903 = vpop.xlane.xlu0 %1902
    %v1904 = vmax.f32 %v848, %v850
    %1905 = vmax.xlane.f32.xlu0 %v1904
    %v1906 = vpop.xlane.xlu0 %1905
    %v1907 = vmax.f32 %v854, %v856
    %1908 = vmax.xlane.f32.xlu0 %v1907
    %v1909 = vpop.xlane.xlu0 %1908
    %v1910 = vmax.f32 %v860, %v862
    %1911 = vmax.xlane.f32.xlu0 %v1910
    %v1912 = vpop.xlane.xlu0 %1911
    %v1913 = vmax.f32 %v866, %v868
    %1914 = vmax.xlane.f32.xlu0 %v1913
    %v1915 = vpop.xlane.xlu0 %1914
    %v1916 = vmax.f32 %v872, %v874
    %1917 = vmax.xlane.f32.xlu0 %v1916
    %v1918 = vpop.xlane.xlu0 %1917
    %v1919 = vmax.f32 %v878, %v880
    %1920 = vmax.xlane.f32.xlu0 %v1919
    %v1921 = vpop.xlane.xlu0 %1920
    %v1922 = vmax.f32 %v884, %v886
    %1923 = vmax.xlane.f32.xlu0 %v1922
    %v1924 = vpop.xlane.xlu0 %1923
    %v1925 = vmax.f32 %v890, %v892
    %1926 = vmax.xlane.f32.xlu0 %v1925
    %v1927 = vpop.xlane.xlu0 %1926
    %v1928 = vmax.f32 %v896, %v898
    %1929 = vmax.xlane.f32.xlu0 %v1928
    %v1930 = vpop.xlane.xlu0 %1929
    %v1931 = vmax.f32 %v902, %v904
    %1932 = vmax.xlane.f32.xlu0 %v1931
    %v1933 = vpop.xlane.xlu0 %1932
    %v1934 = vmax.f32 %v908, %v910
    %1935 = vmax.xlane.f32.xlu0 %v1934
    %v1936 = vpop.xlane.xlu0 %1935
    %v1937 = vsub.f32 %v722, %v1843
    %v1938 = vsub.f32 %v724, %v1843
    %v1939 = vsub.f32 %v728, %v1846
    %v1940 = vsub.f32 %v730, %v1846
    %v1941 = vsub.f32 %v734, %v1849
    %v1942 = vsub.f32 %v736, %v1849
    %v1943 = vsub.f32 %v740, %v1852
    %v1944 = vsub.f32 %v742, %v1852
    %v1945 = vsub.f32 %v746, %v1855
    %v1946 = vsub.f32 %v748, %v1855
    %v1947 = vsub.f32 %v752, %v1858
    %v1948 = vsub.f32 %v754, %v1858
    %v1949 = vsub.f32 %v758, %v1861
    %v1950 = vsub.f32 %v760, %v1861
    %v1951 = vsub.f32 %v764, %v1864
    %v1952 = vsub.f32 %v766, %v1864
    %v1953 = vsub.f32 %v770, %v1867
    %v1954 = vsub.f32 %v772, %v1867
    %v1955 = vsub.f32 %v776, %v1870
    %v1956 = vsub.f32 %v778, %v1870
    %v1957 = vsub.f32 %v782, %v1873
    %v1958 = vsub.f32 %v784, %v1873
    %v1959 = vsub.f32 %v788, %v1876
    %v1960 = vsub.f32 %v790, %v1876
    %v1961 = vsub.f32 %v794, %v1879
    %v1962 = vsub.f32 %v796, %v1879
    %v1963 = vsub.f32 %v800, %v1882
    %v1964 = vsub.f32 %v802, %v1882
    %v1965 = vsub.f32 %v806, %v1885
    %v1966 = vsub.f32 %v808, %v1885
    %v1967 = vsub.f32 %v812, %v1888
    %v1968 = vsub.f32 %v814, %v1888
    %v1969 = vsub.f32 %v818, %v1891
    %v1970 = vsub.f32 %v820, %v1891
    %v1971 = vsub.f32 %v824, %v1894
    %v1972 = vsub.f32 %v826, %v1894
    %v1973 = vsub.f32 %v830, %v1897
    %v1974 = vsub.f32 %v832, %v1897
    %v1975 = vsub.f32 %v836, %v1900
    %v1976 = vsub.f32 %v838, %v1900
    %v1977 = vsub.f32 %v842, %v1903
    %v1978 = vsub.f32 %v844, %v1903
    %v1979 = vsub.f32 %v848, %v1906
    %v1980 = vsub.f32 %v850, %v1906
    %v1981 = vsub.f32 %v854, %v1909
    %v1982 = vsub.f32 %v856, %v1909
    %v1983 = vsub.f32 %v860, %v1912
    %v1984 = vsub.f32 %v862, %v1912
    %v1985 = vsub.f32 %v866, %v1915
    %v1986 = vsub.f32 %v868, %v1915
    %v1987 = vsub.f32 %v872, %v1918
    %v1988 = vsub.f32 %v874, %v1918
    %v1989 = vsub.f32 %v878, %v1921
    %v1990 = vsub.f32 %v880, %v1921
    %v1991 = vsub.f32 %v884, %v1924
    %v1992 = vsub.f32 %v886, %v1924
    %v1993 = vsub.f32 %v890, %v1927
    %v1994 = vsub.f32 %v892, %v1927
    %v1995 = vsub.f32 %v896, %v1930
    %v1996 = vsub.f32 %v898, %v1930
    %v1997 = vsub.f32 %v902, %v1933
    %v1998 = vsub.f32 %v904, %v1933
    %v1999 = vsub.f32 %v908, %v1936
    %v2000 = vsub.f32 %v910, %v1936
    %v2001 = vmul.f32 %v1937, 1.442695
    %v2002 = vpow.pop %v2001
    %v2003 = vmul.f32 %v1938, 1.442695
    %v2004 = vpow.pop %v2003
    %v2005 = vmul.f32 %v1939, 1.442695
    %v2006 = vpow.pop %v2005
    %v2007 = vmul.f32 %v1940, 1.442695
    %v2008 = vpow.pop %v2007
    %v2009 = vmul.f32 %v1941, 1.442695
    %v2010 = vpow.pop %v2009
    %v2011 = vmul.f32 %v1942, 1.442695
    %v2012 = vpow.pop %v2011
    %v2013 = vmul.f32 %v1943, 1.442695
    %v2014 = vpow.pop %v2013
    %v2015 = vmul.f32 %v1944, 1.442695
    %v2016 = vpow.pop %v2015
    %v2017 = vmul.f32 %v1945, 1.442695
    %v2018 = vpow.pop %v2017
    %v2019 = vmul.f32 %v1946, 1.442695
    %v2020 = vpow.pop %v2019
    %v2021 = vmul.f32 %v1947, 1.442695
    %v2022 = vpow.pop %v2021
    %v2023 = vmul.f32 %v1948, 1.442695
    %v2024 = vpow.pop %v2023
    %v2025 = vmul.f32 %v1949, 1.442695
    %v2026 = vpow.pop %v2025
    %v2027 = vmul.f32 %v1950, 1.442695
    %v2028 = vpow.pop %v2027
    %v2029 = vmul.f32 %v1951, 1.442695
    %v2030 = vpow.pop %v2029
    %v2031 = vmul.f32 %v1952, 1.442695
    %v2032 = vpow.pop %v2031
    %v2033 = vmul.f32 %v1953, 1.442695
    %v2034 = vpow.pop %v2033
    %v2035 = vmul.f32 %v1954, 1.442695
    %v2036 = vpow.pop %v2035
    %v2037 = vmul.f32 %v1955, 1.442695
    %v2038 = vpow.pop %v2037
    %v2039 = vmul.f32 %v1956, 1.442695
    %v2040 = vpow.pop %v2039
    %v2041 = vmul.f32 %v1957, 1.442695
    %v2042 = vpow.pop %v2041
    %v2043 = vmul.f32 %v1958, 1.442695
    %v2044 = vpow.pop %v2043
    %v2045 = vmul.f32 %v1959, 1.442695
    %v2046 = vpow.pop %v2045
    %v2047 = vmul.f32 %v1960, 1.442695
    %v2048 = vpow.pop %v2047
    %v2049 = vmul.f32 %v1961, 1.442695
    %v2050 = vpow.pop %v2049
    %v2051 = vmul.f32 %v1962, 1.442695
    %v2052 = vpow.pop %v2051
    %v2053 = vmul.f32 %v1963, 1.442695
    %v2054 = vpow.pop %v2053
    %v2055 = vmul.f32 %v1964, 1.442695
    %v2056 = vpow.pop %v2055
    %v2057 = vmul.f32 %v1965, 1.442695
    %v2058 = vpow.pop %v2057
    %v2059 = vmul.f32 %v1966, 1.442695
    %v2060 = vpow.pop %v2059
    %v2061 = vmul.f32 %v1967, 1.442695
    %v2062 = vpow.pop %v2061
    %v2063 = vmul.f32 %v1968, 1.442695
    %v2064 = vpow.pop %v2063
    %v2065 = vmul.f32 %v1969, 1.442695
    %v2066 = vpow.pop %v2065
    %v2067 = vmul.f32 %v1970, 1.442695
    %v2068 = vpow.pop %v2067
    %v2069 = vmul.f32 %v1971, 1.442695
    %v2070 = vpow.pop %v2069
    %v2071 = vmul.f32 %v1972, 1.442695
    %v2072 = vpow.pop %v2071
    %v2073 = vmul.f32 %v1973, 1.442695
    %v2074 = vpow.pop %v2073
    %v2075 = vmul.f32 %v1974, 1.442695
    %v2076 = vpow.pop %v2075
    %v2077 = vmul.f32 %v1975, 1.442695
    %v2078 = vpow.pop %v2077
    %v2079 = vmul.f32 %v1976, 1.442695
    %v2080 = vpow.pop %v2079
    %v2081 = vmul.f32 %v1977, 1.442695
    %v2082 = vpow.pop %v2081
    %v2083 = vmul.f32 %v1978, 1.442695
    %v2084 = vpow.pop %v2083
    %v2085 = vmul.f32 %v1979, 1.442695
    %v2086 = vpow.pop %v2085
    %v2087 = vmul.f32 %v1980, 1.442695
    %v2088 = vpow.pop %v2087
    %v2089 = vmul.f32 %v1981, 1.442695
    %v2090 = vpow.pop %v2089
    %v2091 = vmul.f32 %v1982, 1.442695
    %v2092 = vpow.pop %v2091
    %v2093 = vmul.f32 %v1983, 1.442695
    %v2094 = vpow.pop %v2093
    %v2095 = vmul.f32 %v1984, 1.442695
    %v2096 = vpow.pop %v2095
    %v2097 = vmul.f32 %v1985, 1.442695
    %v2098 = vpow.pop %v2097
    %v2099 = vmul.f32 %v1986, 1.442695
    %v2100 = vpow.pop %v2099
    %v2101 = vmul.f32 %v1987, 1.442695
    %v2102 = vpow.pop %v2101
    %v2103 = vmul.f32 %v1988, 1.442695
    %v2104 = vpow.pop %v2103
    %v2105 = vmul.f32 %v1989, 1.442695
    %v2106 = vpow.pop %v2105
    %v2107 = vmul.f32 %v1990, 1.442695
    %v2108 = vpow.pop %v2107
    %v2109 = vmul.f32 %v1991, 1.442695
    %v2110 = vpow.pop %v2109
    %v2111 = vmul.f32 %v1992, 1.442695
    %v2112 = vpow.pop %v2111
    %v2113 = vmul.f32 %v1993, 1.442695
    %v2114 = vpow.pop %v2113
    %v2115 = vmul.f32 %v1994, 1.442695
    %v2116 = vpow.pop %v2115
    %v2117 = vmul.f32 %v1995, 1.442695
    %v2118 = vpow.pop %v2117
    %v2119 = vmul.f32 %v1996, 1.442695
    %v2120 = vpow.pop %v2119
    %v2121 = vmul.f32 %v1997, 1.442695
    %v2122 = vpow.pop %v2121
    %v2123 = vmul.f32 %v1998, 1.442695
    %v2124 = vpow.pop %v2123
    %v2125 = vmul.f32 %v1999, 1.442695
    %v2126 = vpow.pop %v2125
    %v2127 = vmul.f32 %v2000, 1.442695
    %v2128 = vpow.pop %v2127
    %v2129 = vadd.f32 %v2002, %v2004
    %2130 = vadd.xlane.f32.xlu0 %v2129
    %v2131 = vpop.xlane.xlu0 %2130
    %v2132 = vadd.f32 %v2006, %v2008
    %2133 = vadd.xlane.f32.xlu0 %v2132
    %v2134 = vpop.xlane.xlu0 %2133
    %v2135 = vadd.f32 %v2010, %v2012
    %2136 = vadd.xlane.f32.xlu0 %v2135
    %v2137 = vpop.xlane.xlu0 %2136
    %v2138 = vadd.f32 %v2014, %v2016
    %2139 = vadd.xlane.f32.xlu0 %v2138
    %v2140 = vpop.xlane.xlu0 %2139
    %v2141 = vadd.f32 %v2018, %v2020
    %2142 = vadd.xlane.f32.xlu0 %v2141
    %v2143 = vpop.xlane.xlu0 %2142
    %v2144 = vadd.f32 %v2022, %v2024
    %2145 = vadd.xlane.f32.xlu0 %v2144
    %v2146 = vpop.xlane.xlu0 %2145
    %v2147 = vadd.f32 %v2026, %v2028
    %2148 = vadd.xlane.f32.xlu0 %v2147
    %v2149 = vpop.xlane.xlu0 %2148
    %v2150 = vadd.f32 %v2030, %v2032
    %2151 = vadd.xlane.f32.xlu0 %v2150
    %v2152 = vpop.xlane.xlu0 %2151
    %v2153 = vadd.f32 %v2034, %v2036
    %2154 = vadd.xlane.f32.xlu0 %v2153
    %v2155 = vpop.xlane.xlu0 %2154
    %v2156 = vadd.f32 %v2038, %v2040
    %2157 = vadd.xlane.f32.xlu0 %v2156
    %v2158 = vpop.xlane.xlu0 %2157
    %v2159 = vadd.f32 %v2042, %v2044
    %2160 = vadd.xlane.f32.xlu0 %v2159
    %v2161 = vpop.xlane.xlu0 %2160
    %v2162 = vadd.f32 %v2046, %v2048
    %2163 = vadd.xlane.f32.xlu0 %v2162
    %v2164 = vpop.xlane.xlu0 %2163
    %v2165 = vadd.f32 %v2050, %v2052
    %2166 = vadd.xlane.f32.xlu0 %v2165
    %v2167 = vpop.xlane.xlu0 %2166
    %v2168 = vadd.f32 %v2054, %v2056
    %2169 = vadd.xlane.f32.xlu0 %v2168
    %v2170 = vpop.xlane.xlu0 %2169
    %v2171 = vadd.f32 %v2058, %v2060
    %2172 = vadd.xlane.f32.xlu0 %v2171
    %v2173 = vpop.xlane.xlu0 %2172
    %v2174 = vadd.f32 %v2062, %v2064
    %2175 = vadd.xlane.f32.xlu0 %v2174
    %v2176 = vpop.xlane.xlu0 %2175
    %v2177 = vadd.f32 %v2066, %v2068
    %2178 = vadd.xlane.f32.xlu0 %v2177
    %v2179 = vpop.xlane.xlu0 %2178
    %v2180 = vadd.f32 %v2070, %v2072
    %2181 = vadd.xlane.f32.xlu0 %v2180
    %v2182 = vpop.xlane.xlu0 %2181
    %v2183 = vadd.f32 %v2074, %v2076
    %2184 = vadd.xlane.f32.xlu0 %v2183
    %v2185 = vpop.xlane.xlu0 %2184
    %v2186 = vadd.f32 %v2078, %v2080
    %2187 = vadd.xlane.f32.xlu0 %v2186
    %v2188 = vpop.xlane.xlu0 %2187
    %v2189 = vadd.f32 %v2082, %v2084
    %2190 = vadd.xlane.f32.xlu0 %v2189
    %v2191 = vpop.xlane.xlu0 %2190
    %v2192 = vadd.f32 %v2086, %v2088
    %2193 = vadd.xlane.f32.xlu0 %v2192
    %v2194 = vpop.xlane.xlu0 %2193
    %v2195 = vadd.f32 %v2090, %v2092
    %2196 = vadd.xlane.f32.xlu0 %v2195
    %v2197 = vpop.xlane.xlu0 %2196
    %v2198 = vadd.f32 %v2094, %v2096
    %2199 = vadd.xlane.f32.xlu0 %v2198
    %v2200 = vpop.xlane.xlu0 %2199
    %v2201 = vadd.f32 %v2098, %v2100
    %2202 = vadd.xlane.f32.xlu0 %v2201
    %v2203 = vpop.xlane.xlu0 %2202
    %v2204 = vadd.f32 %v2102, %v2104
    %2205 = vadd.xlane.f32.xlu0 %v2204
    %v2206 = vpop.xlane.xlu0 %2205
    %v2207 = vadd.f32 %v2106, %v2108
    %2208 = vadd.xlane.f32.xlu0 %v2207
    %v2209 = vpop.xlane.xlu0 %2208
    %v2210 = vadd.f32 %v2110, %v2112
    %2211 = vadd.xlane.f32.xlu0 %v2210
    %v2212 = vpop.xlane.xlu0 %2211
    %v2213 = vadd.f32 %v2114, %v2116
    %2214 = vadd.xlane.f32.xlu0 %v2213
    %v2215 = vpop.xlane.xlu0 %2214
    %v2216 = vadd.f32 %v2118, %v2120
    %2217 = vadd.xlane.f32.xlu0 %v2216
    %v2218 = vpop.xlane.xlu0 %2217
    %v2219 = vadd.f32 %v2122, %v2124
    %2220 = vadd.xlane.f32.xlu0 %v2219
    %v2221 = vpop.xlane.xlu0 %2220
    %v2222 = vadd.f32 %v2126, %v2128
    %2223 = vadd.xlane.f32.xlu0 %v2222
    %v2224 = vpop.xlane.xlu0 %2223
    %v2225 = vrcp.pop %v2131
    %v2226 = vmul.f32 %v2002, %v2225
    %v2227 = vmul.f32 %v2004, %v2225
    %v2228 = vrcp.pop %v2134
    %v2229 = vmul.f32 %v2006, %v2228
    %v2230 = vmul.f32 %v2008, %v2228
    %v2231 = vrcp.pop %v2137
    %v2232 = vmul.f32 %v2010, %v2231
    %v2233 = vmul.f32 %v2012, %v2231
    %v2234 = vrcp.pop %v2140
    %v2235 = vmul.f32 %v2014, %v2234
    %v2236 = vmul.f32 %v2016, %v2234
    %v2237 = vrcp.pop %v2143
    %v2238 = vmul.f32 %v2018, %v2237
    %v2239 = vmul.f32 %v2020, %v2237
    %v2240 = vrcp.pop %v2146
    %v2241 = vmul.f32 %v2022, %v2240
    %v2242 = vmul.f32 %v2024, %v2240
    %v2243 = vrcp.pop %v2149
    %v2244 = vmul.f32 %v2026, %v2243
    %v2245 = vmul.f32 %v2028, %v2243
    %v2246 = vrcp.pop %v2152
    %v2247 = vmul.f32 %v2030, %v2246
    %v2248 = vmul.f32 %v2032, %v2246
    %v2249 = vrcp.pop %v2155
    %v2250 = vmul.f32 %v2034, %v2249
    %v2251 = vmul.f32 %v2036, %v2249
    %v2252 = vrcp.pop %v2158
    %v2253 = vmul.f32 %v2038, %v2252
    %v2254 = vmul.f32 %v2040, %v2252
    %v2255 = vrcp.pop %v2161
    %v2256 = vmul.f32 %v2042, %v2255
    %v2257 = vmul.f32 %v2044, %v2255
    %v2258 = vrcp.pop %v2164
    %v2259 = vmul.f32 %v2046, %v2258
    %v2260 = vmul.f32 %v2048, %v2258
    %v2261 = vrcp.pop %v2167
    %v2262 = vmul.f32 %v2050, %v2261
    %v2263 = vmul.f32 %v2052, %v2261
    %v2264 = vrcp.pop %v2170
    %v2265 = vmul.f32 %v2054, %v2264
    %v2266 = vmul.f32 %v2056, %v2264
    %v2267 = vrcp.pop %v2173
    %v2268 = vmul.f32 %v2058, %v2267
    %v2269 = vmul.f32 %v2060, %v2267
    %v2270 = vrcp.pop %v2176
    %v2271 = vmul.f32 %v2062, %v2270
    %v2272 = vmul.f32 %v2064, %v2270
    %v2273 = vrcp.pop %v2179
    %v2274 = vmul.f32 %v2066, %v2273
    %v2275 = vmul.f32 %v2068, %v2273
    %v2276 = vrcp.pop %v2182
    %v2277 = vmul.f32 %v2070, %v2276
    %v2278 = vmul.f32 %v2072, %v2276
    %v2279 = vrcp.pop %v2185
    %v2280 = vmul.f32 %v2074, %v2279
    %v2281 = vmul.f32 %v2076, %v2279
    %v2282 = vrcp.pop %v2188
    %v2283 = vmul.f32 %v2078, %v2282
    %v2284 = vmul.f32 %v2080, %v2282
    %v2285 = vrcp.pop %v2191
    %v2286 = vmul.f32 %v2082, %v2285
    %v2287 = vmul.f32 %v2084, %v2285
    %v2288 = vrcp.pop %v2194
    %v2289 = vmul.f32 %v2086, %v2288
    %v2290 = vmul.f32 %v2088, %v2288
    %v2291 = vrcp.pop %v2197
    %v2292 = vmul.f32 %v2090, %v2291
    %v2293 = vmul.f32 %v2092, %v2291
    %v2294 = vrcp.pop %v2200
    %v2295 = vmul.f32 %v2094, %v2294
    %v2296 = vmul.f32 %v2096, %v2294
    %v2297 = vrcp.pop %v2203
    %v2298 = vmul.f32 %v2098, %v2297
    %v2299 = vmul.f32 %v2100, %v2297
    %v2300 = vrcp.pop %v2206
    %v2301 = vmul.f32 %v2102, %v2300
    %v2302 = vmul.f32 %v2104, %v2300
    %v2303 = vrcp.pop %v2209
    %v2304 = vmul.f32 %v2106, %v2303
    %v2305 = vmul.f32 %v2108, %v2303
    %v2306 = vrcp.pop %v2212
    %v2307 = vmul.f32 %v2110, %v2306
    %v2308 = vmul.f32 %v2112, %v2306
    %v2309 = vrcp.pop %v2215
    %v2310 = vmul.f32 %v2114, %v2309
    %v2311 = vmul.f32 %v2116, %v2309
    %v2312 = vrcp.pop %v2218
    %v2313 = vmul.f32 %v2118, %v2312
    %v2314 = vmul.f32 %v2120, %v2312
    %v2315 = vrcp.pop %v2221
    %v2316 = vmul.f32 %v2122, %v2315
    %v2317 = vmul.f32 %v2124, %v2315
    %v2318 = vrcp.pop %v2224
    %v2319 = vmul.f32 %v2126, %v2318
    %v2320 = vmul.f32 %v2128, %v2318
    %2321 = vmatprep.subr.mxu0 %v2272
    %2322 = vmatpush1.xpose.msra.mxu0 %v2271
    %2323 = vmatprep.subr.mxu0 %v2269
    %2324 = vmatpush1.xpose.msra.mxu0 %v2268
    %2325 = vmatprep.subr.mxu0 %v2266
    %2326 = vmatpush1.xpose.msra.mxu0 %v2265
    %2327 = vmatprep.subr.mxu0 %v2263
    %2328 = vmatpush1.xpose.msra.mxu0 %v2262
    %2329 = vmatprep.subr.mxu0 %v2260
    %2330 = vmatpush1.xpose.msra.mxu0 %v2259
    %2331 = vmatprep.subr.mxu0 %v2257
    %2332 = vmatpush1.xpose.msra.mxu0 %v2256
    %2333 = vmatprep.subr.mxu0 %v2254
    %2334 = vmatpush1.xpose.msra.mxu0 %v2253
    %2335 = vmatprep.subr.mxu0 %v2251
    %2336 = vmatpush1.xpose.msra.mxu0 %v2250
    %2337 = vmatprep.subr.mxu0 %v2248
    %2338 = vmatpush1.xpose.msra.mxu0 %v2247
    %2339 = vmatprep.subr.mxu0 %v2245
    %2340 = vmatpush1.xpose.msra.mxu0 %v2244
    %2341 = vmatprep.subr.mxu0 %v2242
    %2342 = vmatpush1.xpose.msra.mxu0 %v2241
    %2343 = vmatprep.subr.mxu0 %v2239
    %2344 = vmatpush1.xpose.msra.mxu0 %v2238
    %2345 = vmatprep.subr.mxu0 %v2236
    %2346 = vmatpush1.xpose.msra.mxu0 %v2235
    %2347 = vmatprep.subr.mxu0 %v2233
    %2348 = vmatpush1.xpose.msra.mxu0 %v2232
    %2349 = vmatprep.subr.mxu0 %v2230
    %2350 = vmatpush1.xpose.msra.mxu0 %v2229
    %2351 = vmatprep.subr.mxu0 %v2227
    %2352 = vmatpush1.xpose.msra.mxu0 %v2226
    %2353 = vmatprep.subr.mxu0 %v2320
    %2354 = vmatpush2.xpose.msra.mxu0 %v2319
    %2355 = vmatprep.subr.mxu0 %v2317
    %2356 = vmatpush2.xpose.msra.mxu0 %v2316
    %2357 = vmatprep.subr.mxu0 %v2314
    %2358 = vmatpush2.xpose.msra.mxu0 %v2313
    %2359 = vmatprep.subr.mxu0 %v2311
    %2360 = vmatpush2.xpose.msra.mxu0 %v2310
    %2361 = vmatprep.subr.mxu0 %v2308
    %2362 = vmatpush2.xpose.msra.mxu0 %v2307
    %2363 = vmatprep.subr.mxu0 %v2305
    %2364 = vmatpush2.xpose.msra.mxu0 %v2304
    %2365 = vmatprep.subr.mxu0 %v2302
    %2366 = vmatpush2.xpose.msra.mxu0 %v2301
    %2367 = vmatprep.subr.mxu0 %v2299
    %2368 = vmatpush2.xpose.msra.mxu0 %v2298
    %2369 = vmatprep.subr.mxu0 %v2296
    %2370 = vmatpush2.xpose.msra.mxu0 %v2295
    %2371 = vmatprep.subr.mxu0 %v2293
    %2372 = vmatpush2.xpose.msra.mxu0 %v2292
    %2373 = vmatprep.subr.mxu0 %v2290
    %2374 = vmatpush2.xpose.msra.mxu0 %v2289
    %2375 = vmatprep.subr.mxu0 %v2287
    %2376 = vmatpush2.xpose.msra.mxu0 %v2286
    %2377 = vmatprep.subr.mxu0 %v2284
    %2378 = vmatpush2.xpose.msra.mxu0 %v2283
    %2379 = vmatprep.subr.mxu0 %v2281
    %2380 = vmatpush2.xpose.msra.mxu0 %v2280
    %2381 = vmatprep.subr.mxu0 %v2278
    %2382 = vmatpush2.xpose.msra.mxu0 %v2277
    %2383 = vmatprep.subr.mxu0 %v2275
    %2384 = vmatpush2.xpose.msra.mxu0 %v2274
    %2385 = vmatprep.mubr.f32.mxu0 %v1077
    %2386 = vmatmul.mubr.f32.gmra.mxu0 %v1075
    %v2387 = vpop.f32.mrf.mxu0
    %v2388 = vadd.f32 0.0, %v2387
    %v2389 = vpop.f32.mrf.mxu0
    %v2390 = vadd.f32 0.0, %v2389
    %2391 = vmatprep.mubr.f32.mxu0 %v1083
    %2392 = vmatmul.mubr.f32.gmra.mxu0 %v1081
    %v2393 = vpop.f32.mrf.mxu0
    %v2394 = vadd.f32 0.0, %v2393
    %v2395 = vpop.f32.mrf.mxu0
    %v2396 = vadd.f32 0.0, %v2395
    %2397 = vmatprep.mubr.f32.mxu0 %v1089
    %2398 = vmatmul.mubr.f32.gmra.mxu0 %v1087
    %v2399 = vpop.f32.mrf.mxu0
    %v2400 = vadd.f32 0.0, %v2399
    %v2401 = vpop.f32.mrf.mxu0
    %v2402 = vadd.f32 0.0, %v2401
    %2403 = vmatprep.mubr.f32.mxu0 %v1095
    %2404 = vmatmul.mubr.f32.gmra.mxu0 %v1093
    %v2405 = vpop.f32.mrf.mxu0
    %v2406 = vadd.f32 0.0, %v2405
    %v2407 = vpop.f32.mrf.mxu0
    %v2408 = vadd.f32 0.0, %v2407
    %2409 = vmatprep.mubr.f32.mxu0 %v1101
    %2410 = vmatmul.mubr.f32.gmra.mxu0 %v1099
    %v2411 = vpop.f32.mrf.mxu0
    %v2412 = vadd.f32 0.0, %v2411
    %v2413 = vpop.f32.mrf.mxu0
    %v2414 = vadd.f32 0.0, %v2413
    %2415 = vmatprep.mubr.f32.mxu0 %v1107
    %2416 = vmatmul.mubr.f32.gmra.mxu0 %v1105
    %v2417 = vpop.f32.mrf.mxu0
    %v2418 = vadd.f32 0.0, %v2417
    %v2419 = vpop.f32.mrf.mxu0
    %v2420 = vadd.f32 0.0, %v2419
    %2421 = vmatprep.mubr.f32.mxu0 %v1113
    %2422 = vmatmul.mubr.f32.gmra.mxu0 %v1111
    %v2423 = vpop.f32.mrf.mxu0
    %v2424 = vadd.f32 0.0, %v2423
    %v2425 = vpop.f32.mrf.mxu0
    %v2426 = vadd.f32 0.0, %v2425
    %2427 = vmatprep.mubr.f32.mxu0 %v1119
    %2428 = vmatmul.mubr.f32.gmra.mxu0 %v1117
    %v2429 = vpop.f32.mrf.mxu0
    %v2430 = vadd.f32 0.0, %v2429
    %v2431 = vpop.f32.mrf.mxu0
    %v2432 = vadd.f32 0.0, %v2431
    %2433 = vmatprep.mubr.f32.mxu0 %v1125
    %2434 = vmatmul.mubr.f32.gmra.mxu0 %v1123
    %v2435 = vpop.f32.mrf.mxu0
    %v2436 = vadd.f32 0.0, %v2435
    %v2437 = vpop.f32.mrf.mxu0
    %v2438 = vadd.f32 0.0, %v2437
    %2439 = vmatprep.mubr.f32.mxu0 %v1131
    %2440 = vmatmul.mubr.f32.gmra.mxu0 %v1129
    %v2441 = vpop.f32.mrf.mxu0
    %v2442 = vadd.f32 0.0, %v2441
    %v2443 = vpop.f32.mrf.mxu0
    %v2444 = vadd.f32 0.0, %v2443
    %2445 = vmatprep.mubr.f32.mxu0 %v1137
    %2446 = vmatmul.mubr.f32.gmra.mxu0 %v1135
    %v2447 = vpop.f32.mrf.mxu0
    %v2448 = vadd.f32 0.0, %v2447
    %v2449 = vpop.f32.mrf.mxu0
    %v2450 = vadd.f32 0.0, %v2449
    %2451 = vmatprep.mubr.f32.mxu0 %v1143
    %2452 = vmatmul.mubr.f32.gmra.mxu0 %v1141
    %v2453 = vpop.f32.mrf.mxu0
    %v2454 = vadd.f32 0.0, %v2453
    %v2455 = vpop.f32.mrf.mxu0
    %v2456 = vadd.f32 0.0, %v2455
    %2457 = vmatprep.mubr.f32.mxu0 %v1149
    %2458 = vmatmul.mubr.f32.gmra.mxu0 %v1147
    %v2459 = vpop.f32.mrf.mxu0
    %v2460 = vadd.f32 0.0, %v2459
    %v2461 = vpop.f32.mrf.mxu0
    %v2462 = vadd.f32 0.0, %v2461
    %2463 = vmatprep.mubr.f32.mxu0 %v1155
    %2464 = vmatmul.mubr.f32.gmra.mxu0 %v1153
    %v2465 = vpop.f32.mrf.mxu0
    %v2466 = vadd.f32 0.0, %v2465
    %v2467 = vpop.f32.mrf.mxu0
    %v2468 = vadd.f32 0.0, %v2467
    %2469 = vmatprep.mubr.f32.mxu0 %v1161
    %2470 = vmatmul.mubr.f32.gmra.mxu0 %v1159
    %v2471 = vpop.f32.mrf.mxu0
    %v2472 = vadd.f32 0.0, %v2471
    %v2473 = vpop.f32.mrf.mxu0
    %v2474 = vadd.f32 0.0, %v2473
    %2475 = vmatprep.mubr.f32.mxu0 %v1167
    %2476 = vmatmul.mubr.f32.gmra.mxu0 %v1165
    %v2477 = vpop.f32.mrf.mxu0
    %v2478 = vadd.f32 0.0, %v2477
    %v2479 = vpop.f32.mrf.mxu0
    %v2480 = vadd.f32 0.0, %v2479
    %2481 = vmatprep.mubr.f32.mxu0 %v1173
    %2482 = vmatmul.mubr.f32.gmra.mxu0 %v1171
    %v2483 = vpop.f32.mrf.mxu0
    %v2484 = vadd.f32 0.0, %v2483
    %v2485 = vpop.f32.mrf.mxu0
    %v2486 = vadd.f32 0.0, %v2485
    %2487 = vmatprep.mubr.f32.mxu0 %v1179
    %2488 = vmatmul.mubr.f32.gmra.mxu0 %v1177
    %v2489 = vpop.f32.mrf.mxu0
    %v2490 = vadd.f32 0.0, %v2489
    %v2491 = vpop.f32.mrf.mxu0
    %v2492 = vadd.f32 0.0, %v2491
    %2493 = vmatprep.mubr.f32.mxu0 %v1185
    %2494 = vmatmul.mubr.f32.gmra.mxu0 %v1183
    %v2495 = vpop.f32.mrf.mxu0
    %v2496 = vadd.f32 0.0, %v2495
    %v2497 = vpop.f32.mrf.mxu0
    %v2498 = vadd.f32 0.0, %v2497
    %2499 = vmatprep.mubr.f32.mxu0 %v1191
    %2500 = vmatmul.mubr.f32.gmra.mxu0 %v1189
    %v2501 = vpop.f32.mrf.mxu0
    %v2502 = vadd.f32 0.0, %v2501
    %v2503 = vpop.f32.mrf.mxu0
    %v2504 = vadd.f32 0.0, %v2503
    %2505 = vmatprep.mubr.f32.mxu0 %v1197
    %2506 = vmatmul.mubr.f32.gmra.mxu0 %v1195
    %v2507 = vpop.f32.mrf.mxu0
    %v2508 = vadd.f32 0.0, %v2507
    %v2509 = vpop.f32.mrf.mxu0
    %v2510 = vadd.f32 0.0, %v2509
    %2511 = vmatprep.mubr.f32.mxu0 %v1203
    %2512 = vmatmul.mubr.f32.gmra.mxu0 %v1201
    %v2513 = vpop.f32.mrf.mxu0
    %v2514 = vadd.f32 0.0, %v2513
    %v2515 = vpop.f32.mrf.mxu0
    %v2516 = vadd.f32 0.0, %v2515
    %2517 = vmatprep.mubr.f32.mxu0 %v1209
    %2518 = vmatmul.mubr.f32.gmra.mxu0 %v1207
    %v2519 = vpop.f32.mrf.mxu0
    %v2520 = vadd.f32 0.0, %v2519
    %v2521 = vpop.f32.mrf.mxu0
    %v2522 = vadd.f32 0.0, %v2521
    %2523 = vmatprep.mubr.f32.mxu0 %v1215
    %2524 = vmatmul.mubr.f32.gmra.mxu0 %v1213
    %v2525 = vpop.f32.mrf.mxu0
    %v2526 = vadd.f32 0.0, %v2525
    %v2527 = vpop.f32.mrf.mxu0
    %v2528 = vadd.f32 0.0, %v2527
    %2529 = vmatprep.mubr.f32.mxu0 %v1221
    %2530 = vmatmul.mubr.f32.gmra.mxu0 %v1219
    %v2531 = vpop.f32.mrf.mxu0
    %v2532 = vadd.f32 0.0, %v2531
    %v2533 = vpop.f32.mrf.mxu0
    %v2534 = vadd.f32 0.0, %v2533
    %2535 = vmatprep.mubr.f32.mxu0 %v1227
    %2536 = vmatmul.mubr.f32.gmra.mxu0 %v1225
    %v2537 = vpop.f32.mrf.mxu0
    %v2538 = vadd.f32 0.0, %v2537
    %v2539 = vpop.f32.mrf.mxu0
    %v2540 = vadd.f32 0.0, %v2539
    %2541 = vmatprep.mubr.f32.mxu0 %v1233
    %2542 = vmatmul.mubr.f32.gmra.mxu0 %v1231
    %v2543 = vpop.f32.mrf.mxu0
    %v2544 = vadd.f32 0.0, %v2543
    %v2545 = vpop.f32.mrf.mxu0
    %v2546 = vadd.f32 0.0, %v2545
    %2547 = vmatprep.mubr.f32.mxu0 %v1239
    %2548 = vmatmul.mubr.f32.gmra.mxu0 %v1237
    %v2549 = vpop.f32.mrf.mxu0
    %v2550 = vadd.f32 0.0, %v2549
    %v2551 = vpop.f32.mrf.mxu0
    %v2552 = vadd.f32 0.0, %v2551
    %2553 = vmatprep.mubr.f32.mxu0 %v1245
    %2554 = vmatmul.mubr.f32.gmra.mxu0 %v1243
    %v2555 = vpop.f32.mrf.mxu0
    %v2556 = vadd.f32 0.0, %v2555
    %v2557 = vpop.f32.mrf.mxu0
    %v2558 = vadd.f32 0.0, %v2557
    %2559 = vmatprep.mubr.f32.mxu0 %v1251
    %2560 = vmatmul.mubr.f32.gmra.mxu0 %v1249
    %v2561 = vpop.f32.mrf.mxu0
    %v2562 = vadd.f32 0.0, %v2561
    %v2563 = vpop.f32.mrf.mxu0
    %v2564 = vadd.f32 0.0, %v2563
    %2565 = vmatprep.mubr.f32.mxu0 %v1257
    %2566 = vmatmul.mubr.f32.gmra.mxu0 %v1255
    %v2567 = vpop.f32.mrf.mxu0
    %v2568 = vadd.f32 0.0, %v2567
    %v2569 = vpop.f32.mrf.mxu0
    %v2570 = vadd.f32 0.0, %v2569
    %2571 = vmatprep.mubr.f32.mxu0 %v1263
    %2572 = vmatmul.mubr.f32.gmra.mxu0 %v1261
    %v2573 = vpop.f32.mrf.mxu0
    %v2574 = vadd.f32 0.0, %v2573
    %v2575 = vpop.f32.mrf.mxu0
    %v2576 = vadd.f32 0.0, %v2575
    %2577 = vdwg.mxu0
    %v2578 = vmul.f32 %v2388, %v133
    %v2579 = vmul.f32 %v2390, %v134
    %v2580 = vmul.f32 %v2394, %v135
    %v2581 = vmul.f32 %v2396, %v136
    %v2582 = vmul.f32 %v2400, %v137
    %v2583 = vmul.f32 %v2402, %v138
    %v2584 = vmul.f32 %v2406, %v139
    %v2585 = vmul.f32 %v2408, %v140
    %v2586 = vmul.f32 %v2412, %v141
    %v2587 = vmul.f32 %v2414, %v142
    %v2588 = vmul.f32 %v2418, %v143
    %v2589 = vmul.f32 %v2420, %v144
    %v2590 = vmul.f32 %v2424, %v145
    %v2591 = vmul.f32 %v2426, %v146
    %v2592 = vmul.f32 %v2430, %v147
    %v2593 = vmul.f32 %v2432, %v148
    %v2594 = vmul.f32 %v2436, %v149
    %v2595 = vmul.f32 %v2438, %v150
    %v2596 = vmul.f32 %v2442, %v151
    %v2597 = vmul.f32 %v2444, %v152
    %v2598 = vmul.f32 %v2448, %v153
    %v2599 = vmul.f32 %v2450, %v154
    %v2600 = vmul.f32 %v2454, %v155
    %v2601 = vmul.f32 %v2456, %v156
    %v2602 = vmul.f32 %v2460, %v157
    %v2603 = vmul.f32 %v2462, %v158
    %v2604 = vmul.f32 %v2466, %v159
    %v2605 = vmul.f32 %v2468, %v160
    %v2606 = vmul.f32 %v2472, %v161
    %v2607 = vmul.f32 %v2474, %v162
    %v2608 = vmul.f32 %v2478, %v163
    %v2609 = vmul.f32 %v2480, %v164
    %v2610 = vmul.f32 %v2484, %v165
    %v2611 = vmul.f32 %v2486, %v166
    %v2612 = vmul.f32 %v2490, %v167
    %v2613 = vmul.f32 %v2492, %v168
    %v2614 = vmul.f32 %v2496, %v169
    %v2615 = vmul.f32 %v2498, %v170
    %v2616 = vmul.f32 %v2502, %v171
    %v2617 = vmul.f32 %v2504, %v172
    %v2618 = vmul.f32 %v2508, %v173
    %v2619 = vmul.f32 %v2510, %v174
    %v2620 = vmul.f32 %v2514, %v175
    %v2621 = vmul.f32 %v2516, %v176
    %v2622 = vmul.f32 %v2520, %v177
    %v2623 = vmul.f32 %v2522, %v178
    %v2624 = vmul.f32 %v2526, %v179
    %v2625 = vmul.f32 %v2528, %v180
    %v2626 = vmul.f32 %v2532, %v181
    %v2627 = vmul.f32 %v2534, %v182
    %v2628 = vmul.f32 %v2538, %v183
    %v2629 = vmul.f32 %v2540, %v184
    %v2630 = vmul.f32 %v2544, %v185
    %v2631 = vmul.f32 %v2546, %v186
    %v2632 = vmul.f32 %v2550, %v187
    %v2633 = vmul.f32 %v2552, %v188
    %v2634 = vmul.f32 %v2556, %v189
    %v2635 = vmul.f32 %v2558, %v190
    %v2636 = vmul.f32 %v2562, %v191
    %v2637 = vmul.f32 %v2564, %v192
    %v2638 = vmul.f32 %v2568, %v193
    %v2639 = vmul.f32 %v2570, %v194
    %v2640 = vmul.f32 %v2574, %v195
    %v2641 = vmul.f32 %v2576, %v196
    %2642 = vmatprep.subr.mxu0 %v1808
    %2643 = vmatpush1.msra.mxu0 %v1807
    %2644 = vmatprep.subr.mxu0 %v1806
    %2645 = vmatpush1.msra.mxu0 %v1805
    %2646 = vmatprep.subr.mxu0 %v1804
    %2647 = vmatpush1.msra.mxu0 %v1803
    %2648 = vmatprep.subr.mxu0 %v1802
    %2649 = vmatpush1.msra.mxu0 %v1801
    %2650 = vmatprep.subr.mxu0 %v1800
    %2651 = vmatpush1.msra.mxu0 %v1799
    %2652 = vmatprep.subr.mxu0 %v1798
    %2653 = vmatpush1.msra.mxu0 %v1797
    %2654 = vmatprep.subr.mxu0 %v1796
    %2655 = vmatpush1.msra.mxu0 %v1795
    %2656 = vmatprep.subr.mxu0 %v1794
    %2657 = vmatpush1.msra.mxu0 %v1793
    %2658 = vmatprep.subr.mxu0 %v1792
    %2659 = vmatpush1.msra.mxu0 %v1791
    %2660 = vmatprep.subr.mxu0 %v1790
    %2661 = vmatpush1.msra.mxu0 %v1789
    %2662 = vmatprep.subr.mxu0 %v1788
    %2663 = vmatpush1.msra.mxu0 %v1787
    %2664 = vmatprep.subr.mxu0 %v1786
    %2665 = vmatpush1.msra.mxu0 %v1785
    %2666 = vmatprep.subr.mxu0 %v1784
    %2667 = vmatpush1.msra.mxu0 %v1783
    %2668 = vmatprep.subr.mxu0 %v1782
    %2669 = vmatpush1.msra.mxu0 %v1781
    %2670 = vmatprep.subr.mxu0 %v1780
    %2671 = vmatpush1.msra.mxu0 %v1779
    %2672 = vmatprep.subr.mxu0 %v1778
    %2673 = vmatpush1.msra.mxu0 %v1777
    %2674 = vmatprep.subr.mxu0 %v1840
    %2675 = vmatpush2.msra.mxu0 %v1839
    %2676 = vmatprep.subr.mxu0 %v1838
    %2677 = vmatpush2.msra.mxu0 %v1837
    %2678 = vmatprep.subr.mxu0 %v1836
    %2679 = vmatpush2.msra.mxu0 %v1835
    %2680 = vmatprep.subr.mxu0 %v1834
    %2681 = vmatpush2.msra.mxu0 %v1833
    %2682 = vmatprep.subr.mxu0 %v1832
    %2683 = vmatpush2.msra.mxu0 %v1831
    %2684 = vmatprep.subr.mxu0 %v1830
    %2685 = vmatpush2.msra.mxu0 %v1829
    %2686 = vmatprep.subr.mxu0 %v1828
    %2687 = vmatpush2.msra.mxu0 %v1827
    %2688 = vmatprep.subr.mxu0 %v1826
    %2689 = vmatpush2.msra.mxu0 %v1825
    %2690 = vmatprep.subr.mxu0 %v1824
    %2691 = vmatpush2.msra.mxu0 %v1823
    %2692 = vmatprep.subr.mxu0 %v1822
    %2693 = vmatpush2.msra.mxu0 %v1821
    %2694 = vmatprep.subr.mxu0 %v1820
    %2695 = vmatpush2.msra.mxu0 %v1819
    %2696 = vmatprep.subr.mxu0 %v1818
    %2697 = vmatpush2.msra.mxu0 %v1817
    %2698 = vmatprep.subr.mxu0 %v1816
    %2699 = vmatpush2.msra.mxu0 %v1815
    %2700 = vmatprep.subr.mxu0 %v1814
    %2701 = vmatpush2.msra.mxu0 %v1813
    %2702 = vmatprep.subr.mxu0 %v1812
    %2703 = vmatpush2.msra.mxu0 %v1811
    %2704 = vmatprep.subr.mxu0 %v1810
    %2705 = vmatpush2.msra.mxu0 %v1809
    %2706 = vmatprep.mubr.f32.mxu0 %v2579
    %2707 = vmatmul.mubr.f32.gmra.mxu0 %v2578
    %v2708 = vpop.f32.mrf.mxu0
    %v2709 = vadd.f32 0.0, %v2708
    %v2710 = vpop.f32.mrf.mxu0
    %v2711 = vadd.f32 0.0, %v2710
    %2712 = vmatprep.mubr.f32.mxu0 %v2581
    %2713 = vmatmul.mubr.f32.gmra.mxu0 %v2580
    %v2714 = vpop.f32.mrf.mxu0
    %v2715 = vadd.f32 0.0, %v2714
    %v2716 = vpop.f32.mrf.mxu0
    %v2717 = vadd.f32 0.0, %v2716
    %2718 = vmatprep.mubr.f32.mxu0 %v2583
    %2719 = vmatmul.mubr.f32.gmra.mxu0 %v2582
    %v2720 = vpop.f32.mrf.mxu0
    %v2721 = vadd.f32 0.0, %v2720
    %v2722 = vpop.f32.mrf.mxu0
    %v2723 = vadd.f32 0.0, %v2722
    %2724 = vmatprep.mubr.f32.mxu0 %v2585
    %2725 = vmatmul.mubr.f32.gmra.mxu0 %v2584
    %v2726 = vpop.f32.mrf.mxu0
    %v2727 = vadd.f32 0.0, %v2726
    %v2728 = vpop.f32.mrf.mxu0
    %v2729 = vadd.f32 0.0, %v2728
    %2730 = vmatprep.mubr.f32.mxu0 %v2587
    %2731 = vmatmul.mubr.f32.gmra.mxu0 %v2586
    %v2732 = vpop.f32.mrf.mxu0
    %v2733 = vadd.f32 0.0, %v2732
    %v2734 = vpop.f32.mrf.mxu0
    %v2735 = vadd.f32 0.0, %v2734
    %2736 = vmatprep.mubr.f32.mxu0 %v2589
    %2737 = vmatmul.mubr.f32.gmra.mxu0 %v2588
    %v2738 = vpop.f32.mrf.mxu0
    %v2739 = vadd.f32 0.0, %v2738
    %v2740 = vpop.f32.mrf.mxu0
    %v2741 = vadd.f32 0.0, %v2740
    %2742 = vmatprep.mubr.f32.mxu0 %v2591
    %2743 = vmatmul.mubr.f32.gmra.mxu0 %v2590
    %v2744 = vpop.f32.mrf.mxu0
    %v2745 = vadd.f32 0.0, %v2744
    %v2746 = vpop.f32.mrf.mxu0
    %v2747 = vadd.f32 0.0, %v2746
    %2748 = vmatprep.mubr.f32.mxu0 %v2593
    %2749 = vmatmul.mubr.f32.gmra.mxu0 %v2592
    %v2750 = vpop.f32.mrf.mxu0
    %v2751 = vadd.f32 0.0, %v2750
    %v2752 = vpop.f32.mrf.mxu0
    %v2753 = vadd.f32 0.0, %v2752
    %2754 = vmatprep.mubr.f32.mxu0 %v2595
    %2755 = vmatmul.mubr.f32.gmra.mxu0 %v2594
    %v2756 = vpop.f32.mrf.mxu0
    %v2757 = vadd.f32 0.0, %v2756
    %v2758 = vpop.f32.mrf.mxu0
    %v2759 = vadd.f32 0.0, %v2758
    %2760 = vmatprep.mubr.f32.mxu0 %v2597
    %2761 = vmatmul.mubr.f32.gmra.mxu0 %v2596
    %v2762 = vpop.f32.mrf.mxu0
    %v2763 = vadd.f32 0.0, %v2762
    %v2764 = vpop.f32.mrf.mxu0
    %v2765 = vadd.f32 0.0, %v2764
    %2766 = vmatprep.mubr.f32.mxu0 %v2599
    %2767 = vmatmul.mubr.f32.gmra.mxu0 %v2598
    %v2768 = vpop.f32.mrf.mxu0
    %v2769 = vadd.f32 0.0, %v2768
    %v2770 = vpop.f32.mrf.mxu0
    %v2771 = vadd.f32 0.0, %v2770
    %2772 = vmatprep.mubr.f32.mxu0 %v2601
    %2773 = vmatmul.mubr.f32.gmra.mxu0 %v2600
    %v2774 = vpop.f32.mrf.mxu0
    %v2775 = vadd.f32 0.0, %v2774
    %v2776 = vpop.f32.mrf.mxu0
    %v2777 = vadd.f32 0.0, %v2776
    %2778 = vmatprep.mubr.f32.mxu0 %v2603
    %2779 = vmatmul.mubr.f32.gmra.mxu0 %v2602
    %v2780 = vpop.f32.mrf.mxu0
    %v2781 = vadd.f32 0.0, %v2780
    %v2782 = vpop.f32.mrf.mxu0
    %v2783 = vadd.f32 0.0, %v2782
    %2784 = vmatprep.mubr.f32.mxu0 %v2605
    %2785 = vmatmul.mubr.f32.gmra.mxu0 %v2604
    %v2786 = vpop.f32.mrf.mxu0
    %v2787 = vadd.f32 0.0, %v2786
    %v2788 = vpop.f32.mrf.mxu0
    %v2789 = vadd.f32 0.0, %v2788
    %2790 = vmatprep.mubr.f32.mxu0 %v2607
    %2791 = vmatmul.mubr.f32.gmra.mxu0 %v2606
    %v2792 = vpop.f32.mrf.mxu0
    %v2793 = vadd.f32 0.0, %v2792
    %v2794 = vpop.f32.mrf.mxu0
    %v2795 = vadd.f32 0.0, %v2794
    %2796 = vmatprep.mubr.f32.mxu0 %v2609
    %2797 = vmatmul.mubr.f32.gmra.mxu0 %v2608
    %v2798 = vpop.f32.mrf.mxu0
    %v2799 = vadd.f32 0.0, %v2798
    %v2800 = vpop.f32.mrf.mxu0
    %v2801 = vadd.f32 0.0, %v2800
    %2802 = vmatprep.mubr.f32.mxu0 %v2611
    %2803 = vmatmul.mubr.f32.gmra.mxu0 %v2610
    %v2804 = vpop.f32.mrf.mxu0
    %v2805 = vadd.f32 0.0, %v2804
    %v2806 = vpop.f32.mrf.mxu0
    %v2807 = vadd.f32 0.0, %v2806
    %2808 = vmatprep.mubr.f32.mxu0 %v2613
    %2809 = vmatmul.mubr.f32.gmra.mxu0 %v2612
    %v2810 = vpop.f32.mrf.mxu0
    %v2811 = vadd.f32 0.0, %v2810
    %v2812 = vpop.f32.mrf.mxu0
    %v2813 = vadd.f32 0.0, %v2812
    %2814 = vmatprep.mubr.f32.mxu0 %v2615
    %2815 = vmatmul.mubr.f32.gmra.mxu0 %v2614
    %v2816 = vpop.f32.mrf.mxu0
    %v2817 = vadd.f32 0.0, %v2816
    %v2818 = vpop.f32.mrf.mxu0
    %v2819 = vadd.f32 0.0, %v2818
    %2820 = vmatprep.mubr.f32.mxu0 %v2617
    %2821 = vmatmul.mubr.f32.gmra.mxu0 %v2616
    %v2822 = vpop.f32.mrf.mxu0
    %v2823 = vadd.f32 0.0, %v2822
    %v2824 = vpop.f32.mrf.mxu0
    %v2825 = vadd.f32 0.0, %v2824
    %2826 = vmatprep.mubr.f32.mxu0 %v2619
    %2827 = vmatmul.mubr.f32.gmra.mxu0 %v2618
    %v2828 = vpop.f32.mrf.mxu0
    %v2829 = vadd.f32 0.0, %v2828
    %v2830 = vpop.f32.mrf.mxu0
    %v2831 = vadd.f32 0.0, %v2830
    %2832 = vmatprep.mubr.f32.mxu0 %v2621
    %2833 = vmatmul.mubr.f32.gmra.mxu0 %v2620
    %v2834 = vpop.f32.mrf.mxu0
    %v2835 = vadd.f32 0.0, %v2834
    %v2836 = vpop.f32.mrf.mxu0
    %v2837 = vadd.f32 0.0, %v2836
    %2838 = vmatprep.mubr.f32.mxu0 %v2623
    %2839 = vmatmul.mubr.f32.gmra.mxu0 %v2622
    %v2840 = vpop.f32.mrf.mxu0
    %v2841 = vadd.f32 0.0, %v2840
    %v2842 = vpop.f32.mrf.mxu0
    %v2843 = vadd.f32 0.0, %v2842
    %2844 = vmatprep.mubr.f32.mxu0 %v2625
    %2845 = vmatmul.mubr.f32.gmra.mxu0 %v2624
    %v2846 = vpop.f32.mrf.mxu0
    %v2847 = vadd.f32 0.0, %v2846
    %v2848 = vpop.f32.mrf.mxu0
    %v2849 = vadd.f32 0.0, %v2848
    %2850 = vmatprep.mubr.f32.mxu0 %v2627
    %2851 = vmatmul.mubr.f32.gmra.mxu0 %v2626
    %v2852 = vpop.f32.mrf.mxu0
    %v2853 = vadd.f32 0.0, %v2852
    %v2854 = vpop.f32.mrf.mxu0
    %v2855 = vadd.f32 0.0, %v2854
    %2856 = vmatprep.mubr.f32.mxu0 %v2629
    %2857 = vmatmul.mubr.f32.gmra.mxu0 %v2628
    %v2858 = vpop.f32.mrf.mxu0
    %v2859 = vadd.f32 0.0, %v2858
    %v2860 = vpop.f32.mrf.mxu0
    %v2861 = vadd.f32 0.0, %v2860
    %2862 = vmatprep.mubr.f32.mxu0 %v2631
    %2863 = vmatmul.mubr.f32.gmra.mxu0 %v2630
    %v2864 = vpop.f32.mrf.mxu0
    %v2865 = vadd.f32 0.0, %v2864
    %v2866 = vpop.f32.mrf.mxu0
    %v2867 = vadd.f32 0.0, %v2866
    %2868 = vmatprep.mubr.f32.mxu0 %v2633
    %2869 = vmatmul.mubr.f32.gmra.mxu0 %v2632
    %v2870 = vpop.f32.mrf.mxu0
    %v2871 = vadd.f32 0.0, %v2870
    %v2872 = vpop.f32.mrf.mxu0
    %v2873 = vadd.f32 0.0, %v2872
    %2874 = vmatprep.mubr.f32.mxu0 %v2635
    %2875 = vmatmul.mubr.f32.gmra.mxu0 %v2634
    %v2876 = vpop.f32.mrf.mxu0
    %v2877 = vadd.f32 0.0, %v2876
    %v2878 = vpop.f32.mrf.mxu0
    %v2879 = vadd.f32 0.0, %v2878
    %2880 = vmatprep.mubr.f32.mxu0 %v2637
    %2881 = vmatmul.mubr.f32.gmra.mxu0 %v2636
    %v2882 = vpop.f32.mrf.mxu0
    %v2883 = vadd.f32 0.0, %v2882
    %v2884 = vpop.f32.mrf.mxu0
    %v2885 = vadd.f32 0.0, %v2884
    %2886 = vmatprep.mubr.f32.mxu0 %v2639
    %2887 = vmatmul.mubr.f32.gmra.mxu0 %v2638
    %v2888 = vpop.f32.mrf.mxu0
    %v2889 = vadd.f32 0.0, %v2888
    %v2890 = vpop.f32.mrf.mxu0
    %v2891 = vadd.f32 0.0, %v2890
    %2892 = vmatprep.mubr.f32.mxu0 %v2641
    %2893 = vmatmul.mubr.f32.gmra.mxu0 %v2640
    %v2894 = vpop.f32.mrf.mxu0
    %v2895 = vadd.f32 0.0, %v2894
    %v2896 = vpop.f32.mrf.mxu0
    %v2897 = vadd.f32 0.0, %v2896
    %2898 = vdwg.mxu0
    %2899 = vmatprep.subr.mxu0 %v2801
    %2900 = vmatpush1.msra.mxu0 %v2799
    %2901 = vmatprep.subr.mxu0 %v2795
    %2902 = vmatpush1.msra.mxu0 %v2793
    %2903 = vmatprep.subr.mxu0 %v2789
    %2904 = vmatpush1.msra.mxu0 %v2787
    %2905 = vmatprep.subr.mxu0 %v2783
    %2906 = vmatpush1.msra.mxu0 %v2781
    %2907 = vmatprep.subr.mxu0 %v2777
    %2908 = vmatpush1.msra.mxu0 %v2775
    %2909 = vmatprep.subr.mxu0 %v2771
    %2910 = vmatpush1.msra.mxu0 %v2769
    %2911 = vmatprep.subr.mxu0 %v2765
    %2912 = vmatpush1.msra.mxu0 %v2763
    %2913 = vmatprep.subr.mxu0 %v2759
    %2914 = vmatpush1.msra.mxu0 %v2757
    %2915 = vmatprep.subr.mxu0 %v2753
    %2916 = vmatpush1.msra.mxu0 %v2751
    %2917 = vmatprep.subr.mxu0 %v2747
    %2918 = vmatpush1.msra.mxu0 %v2745
    %2919 = vmatprep.subr.mxu0 %v2741
    %2920 = vmatpush1.msra.mxu0 %v2739
    %2921 = vmatprep.subr.mxu0 %v2735
    %2922 = vmatpush1.msra.mxu0 %v2733
    %2923 = vmatprep.subr.mxu0 %v2729
    %2924 = vmatpush1.msra.mxu0 %v2727
    %2925 = vmatprep.subr.mxu0 %v2723
    %2926 = vmatpush1.msra.mxu0 %v2721
    %2927 = vmatprep.subr.mxu0 %v2717
    %2928 = vmatpush1.msra.mxu0 %v2715
    %2929 = vmatprep.subr.mxu0 %v2711
    %2930 = vmatpush1.msra.mxu0 %v2709
    %2931 = vmatprep.subr.mxu0 %v2897
    %2932 = vmatpush2.msra.mxu0 %v2895
    %2933 = vmatprep.subr.mxu0 %v2891
    %2934 = vmatpush2.msra.mxu0 %v2889
    %2935 = vmatprep.subr.mxu0 %v2885
    %2936 = vmatpush2.msra.mxu0 %v2883
    %2937 = vmatprep.subr.mxu0 %v2879
    %2938 = vmatpush2.msra.mxu0 %v2877
    %2939 = vmatprep.subr.mxu0 %v2873
    %2940 = vmatpush2.msra.mxu0 %v2871
    %2941 = vmatprep.subr.mxu0 %v2867
    %2942 = vmatpush2.msra.mxu0 %v2865
    %2943 = vmatprep.subr.mxu0 %v2861
    %2944 = vmatpush2.msra.mxu0 %v2859
    %2945 = vmatprep.subr.mxu0 %v2855
    %2946 = vmatpush2.msra.mxu0 %v2853
    %2947 = vmatprep.subr.mxu0 %v2849
    %2948 = vmatpush2.msra.mxu0 %v2847
    %2949 = vmatprep.subr.mxu0 %v2843
    %2950 = vmatpush2.msra.mxu0 %v2841
    %2951 = vmatprep.subr.mxu0 %v2837
    %2952 = vmatpush2.msra.mxu0 %v2835
    %2953 = vmatprep.subr.mxu0 %v2831
    %2954 = vmatpush2.msra.mxu0 %v2829
    %2955 = vmatprep.subr.mxu0 %v2825
    %2956 = vmatpush2.msra.mxu0 %v2823
    %2957 = vmatprep.subr.mxu0 %v2819
    %2958 = vmatpush2.msra.mxu0 %v2817
    %2959 = vmatprep.subr.mxu0 %v2813
    %2960 = vmatpush2.msra.mxu0 %v2811
    %2961 = vmatprep.subr.mxu0 %v2807
    %2962 = vmatpush2.msra.mxu0 %v2805
    %2963 = vmatprep.mubr.f32.mxu0 %v130
    %2964 = vmatmul.mubr.f32.gmra.mxu0 %v129
    %v2965 = vpop.f32.mrf.mxu0
    %v2966 = vadd.f32 0.0, %v2965
    %v2967 = vpop.f32.mrf.mxu0
    %v2968 = vadd.f32 0.0, %v2967
    %2969 = vmatprep.mubr.f32.mxu0 %v132
    %2970 = vmatmul.mubr.f32.gmra.mxu0 %v131
    %v2971 = vpop.f32.mrf.mxu0
    %v2972 = vadd.f32 0.0, %v2971
    %v2973 = vpop.f32.mrf.mxu0
    %v2974 = vadd.f32 0.0, %v2973
    %2975 = vdwg.mxu0
    %2977 = vset.pattern.permute.xlu0 0
    %2978 = vperm.xlu0 %2977, %v197
    %v2979 = vpop.permute.xlu0 %2978
    %v2981 = vadd.f32 %v2966, %v2979
    %v2982 = vadd.f32 %v2968, %v2979
    %v2983 = vadd.f32 %v2981, %v2982
    %2984 = vadd.xlane.f32.xlu0 %v2983
    %v2985 = vpop.xlane.xlu0 %2984
    %v2986 = vrot.slane %v2985, 4
    %v2987 = vadd.f32 %v2985, %v2986
    %v2988 = vrot.slane %v2987, 2
    %v2989 = vadd.f32 %v2987, %v2988
    %v2990 = vrot.slane %v2989, 1
    %v2991 = vadd.f32 %v2989, %v2990
    %s2992 = vtos %v2991
    %v2993 = vrcp.pop 2048.0
    %s2994 = vtos %v2993
    %s2995 = smul.f32 %s2992, %s2994
    %v2996 = vstv %s2995
    %v2997 = vsub.f32 %v2981, %v2996
    %v2998 = vsub.f32 %v2982, %v2996
    %v2999 = vmul.f32 %v2997, %v2997
    %v3000 = vmul.f32 %v2998, %v2998
    %v3001 = vadd.f32 %v2999, %v3000
    %3002 = vadd.xlane.f32.xlu0 %v3001
    %v3003 = vpop.xlane.xlu0 %3002
    %v3004 = vrot.slane %v3003, 4
    %v3005 = vadd.f32 %v3003, %v3004
    %v3006 = vrot.slane %v3005, 2
    %v3007 = vadd.f32 %v3005, %v3006
    %v3008 = vrot.slane %v3007, 1
    %v3009 = vadd.f32 %v3007, %v3008
    %s3010 = vtos %v3009
    %v3011 = vrcp.pop 2048.0
    %s3012 = vtos %v3011
    %s3013 = smul.f32 %s3010, %s3012
    %s3014 = sadd.f32 %s3013, 1e-05
    %v3015 = vstv %s3014
    %v3016 = vrsqrt.pop %v3015
    %s3017 = vtos %v3016
    %v3018 = vstv %s3017
    %v3019 = vmul.f32 %v2997, %v3018
    %v3020 = vmul.f32 %v2998, %v3018
    %3022 = vset.pattern.permute.xlu0 0
    %3023 = vperm.xlu0 %3022, %v198
    %v3024 = vpop.permute.xlu0 %3023
    %v3026 = vmul.f32 %v3019, %v3024
    %v3027 = vmul.f32 %v3020, %v3024
    %3029 = vset.pattern.permute.xlu0 0
    %3030 = vperm.xlu0 %3029, %v199
    %v3031 = vpop.permute.xlu0 %3030
    %v3033 = vadd.f32 %v3026, %v3031
    %v3034 = vadd.f32 %v3027, %v3031
    %v3035 = vadd.f32 %v2972, %v2979
    %v3036 = vadd.f32 %v2974, %v2979
    %v3037 = vadd.f32 %v3035, %v3036
    %3038 = vadd.xlane.f32.xlu0 %v3037
    %v3039 = vpop.xlane.xlu0 %3038
    %v3040 = vrot.slane %v3039, 4
    %v3041 = vadd.f32 %v3039, %v3040
    %v3042 = vrot.slane %v3041, 2
    %v3043 = vadd.f32 %v3041, %v3042
    %v3044 = vrot.slane %v3043, 1
    %v3045 = vadd.f32 %v3043, %v3044
    %s3046 = vtos %v3045
    %v3047 = vrcp.pop 2048.0
    %s3048 = vtos %v3047
    %s3049 = smul.f32 %s3046, %s3048
    %v3050 = vstv %s3049
    %v3051 = vsub.f32 %v3035, %v3050
    %v3052 = vsub.f32 %v3036, %v3050
    %v3053 = vmul.f32 %v3051, %v3051
    %v3054 = vmul.f32 %v3052, %v3052
    %v3055 = vadd.f32 %v3053, %v3054
    %3056 = vadd.xlane.f32.xlu0 %v3055
    %v3057 = vpop.xlane.xlu0 %3056
    %v3058 = vrot.slane %v3057, 4
    %v3059 = vadd.f32 %v3057, %v3058
    %v3060 = vrot.slane %v3059, 2
    %v3061 = vadd.f32 %v3059, %v3060
    %v3062 = vrot.slane %v3061, 1
    %v3063 = vadd.f32 %v3061, %v3062
    %s3064 = vtos %v3063
    %v3065 = vrcp.pop 2048.0
    %s3066 = vtos %v3065
    %s3067 = smul.f32 %s3064, %s3066
    %s3068 = sadd.f32 %s3067, 1e-05
    %v3069 = vstv %s3068
    %v3070 = vrsqrt.pop %v3069
    %s3071 = vtos %v3070
    %v3072 = vstv %s3071
    %v3073 = vmul.f32 %v3051, %v3072
    %v3074 = vmul.f32 %v3052, %v3072
    %v3075 = vmul.f32 %v3073, %v3024
    %v3076 = vmul.f32 %v3074, %v3024
    %v3077 = vadd.f32 %v3075, %v3031
    %v3078 = vadd.f32 %v3076, %v3031
    %3079 = vst [vmem:[#allocation2] sm:$0xff] %v3033
    %3080 = vst [vmem:[#allocation2 + $0x8] sm:$0xff] %v3034
    %s3081 = scalar_lea.vmem [#allocation2], 16
    %3082 = vst [vmem:[%s3081] sm:$0xff] %v3077
    %3083 = vst [vmem:[%s3081 + $0x8] sm:$0xff] %v3078
    // Predicated region
    $region38: #{tpu_custom_call.1} parent=1 // pred_check
      _
    $region39: #{tpu_custom_call.1} parent=1 // pred_check_branch
      %3085 = sbr.rel (0) target = $region41
    $region40: #{tpu_custom_call.1} parent=1 // pred_region
      %s3087 = ssub.s32 512, 512
      %3088 = vsyncadd [#allocation3], %s3087
      %s3089 = sshll.u32 [#allocation2], 4
      %s3090 = int_to_ptr.vmem [resolvable:$true] %s3089
      %3095 = dma.vmem_to_hbm [thread:$0]  %s3090, 512, %s9, [#allocation3], 256, 256, 16
    $region41: #{tpu_custom_call.1} parent=1 // pred_fallthru
      _
    // Predicated region
    $region42: #{tpu_custom_call.1} parent=1 // pred_check
      _
    $region43: #{tpu_custom_call.1} parent=1 // pred_check_branch
      %3097 = sbr.rel (0) target = $region45
    $region44: #{tpu_custom_call.1} parent=1 // pred_region
      %3098 = dma.done [#allocation3], 512
    $region45: #{tpu_custom_call.1} parent=1 // pred_fallthru
      _
    %3099 = vsyncpa [#allocation3], 1

</llo_original>
